<compile_context>
chip_gen: v5e
topology: v5e:2x2
jax: 0.10.0
libtpu: 0.0.40
codegen_flags: <defaults>
</compile_context>

<pallas_src>
import jax
import jax.numpy as jnp
from jax.experimental import pallas as pl
from jax.experimental.pallas import tpu as pltpu

NEG_SLOPE = 0.01            # F.leaky_relu default
BN_EPS = 1e-5
HEAD_PAD = 128              # lane-dense packed head width for the decoder output
VMEM_LIMIT = 48 * 1024 * 1024   # fits v7x's 64 MiB physical VMEM (and v5e/v6e)

SAGE_TILES = (512, 256, 128, 64, 32)   # int8 A => row tiles multiples of 32
MLP_TILES = (256, 128, 64, 32, 16)     # bf16 activations => multiples of 16


def _round_up(x, m):
    return ((x + m - 1) // m) * m


def _pad_to(x, rows, cols):
    r, c = x.shape
    return jnp.pad(x, ((0, rows - r), (0, cols - c)))


def _pick_row_tile(m_pad, candidates):
    # Largest tile that divides m_pad while keeping >= 2 row blocks (so v7x's second
    # TensorCore gets work via the "parallel" grid axis); else one full block.
    for c in candidates:
        if m_pad % c == 0 and 2 * c <= m_pad:
            return c
    return m_pad


def _leaky_relu(x):
    return jnp.where(x > 0, x, NEG_SLOPE * x)


def _i8_to_bf16(x):
    # int8 (HBM stream = 1 byte/elem) -> f32 -> bf16 for the MXU.  Portable across
    # v5e / v6e / v7x (no int8/fp8 MXU path needed).
    return x.astype(jnp.float32).astype(jnp.bfloat16)


# ---------------------------------------------------------------------------
# Pallas kernels
# ---------------------------------------------------------------------------

def sage_single_kernel(a_ref, invdeg_ref, xs_ref, xd_ref, wl_ref, wr_ref, b_ref,
                       o_ref):
    """One SAGEConv edge type into one dst node type, + leaky_relu.

    a_ref: (tm, K) int8 edge counts (row block); xs_ref: (K, f_src) bf16 resident.
    Mean aggregation = (counts @ x_src) * inv_deg, accumulated in f32, then two
    separate MXU passes (no in-kernel concat): dot(agg, Wl) + dot(x_dst, Wr) + b.
    """
    agg = jnp.dot(_i8_to_bf16(a_ref[...]), xs_ref[...],
                  preferred_element_type=jnp.float32)
    agg = agg * invdeg_ref[...]                      # per-dst-row 1/deg (f32)
    y = jnp.dot(agg.astype(jnp.bfloat16), wl_ref[...],
                preferred_element_type=jnp.float32)
    y = y + jnp.dot(xd_ref[...], wr_ref[...],
                    preferred_element_type=jnp.float32)
    y = y + b_ref[...]
    o_ref[...] = _leaky_relu(y).astype(o_ref.dtype)


def sage_double_kernel(a1_ref, id1_ref, a2_ref, id2_ref, xs1_ref, xs2_ref, xd_ref,
                       wl1_ref, wl2_ref, wrs_ref, b_ref, o_ref):
    """Two SAGEConv edge types summed into one dst node type (HeteroConv aggr='sum').

    Each source type keeps its own K extent (no shared-tk zero padding); x_dst is
    multiplied once against (Wr1 + Wr2), biases pre-summed on the host.
    """
    agg1 = jnp.dot(_i8_to_bf16(a1_ref[...]), xs1_ref[...],
                   preferred_element_type=jnp.float32) * id1_ref[...]
    agg2 = jnp.dot(_i8_to_bf16(a2_ref[...]), xs2_ref[...],
                   preferred_element_type=jnp.float32) * id2_ref[...]
    y = jnp.dot(agg1.astype(jnp.bfloat16), wl1_ref[...],
                preferred_element_type=jnp.float32)
    y = y + jnp.dot(agg2.astype(jnp.bfloat16), wl2_ref[...],
                    preferred_element_type=jnp.float32)
    y = y + jnp.dot(xd_ref[...], wrs_ref[...],
                    preferred_element_type=jnp.float32)
    y = y + b_ref[...]
    o_ref[...] = _leaky_relu(y).astype(o_ref.dtype)


def mlp_kernel(x_ref, w1_ref, b1_ref, s1_ref, t1_ref,
               w2_ref, b2_ref, s2_ref, t2_ref,
               w3_ref, b3_ref, o_ref):
    """Shared MLP path for both tra/trb edge batches + packed lane-dense lin3 heads.

    Eval-mode BN folded to scale/shift; dropout = identity.  w3 is (256, 128) with
    column 0 = lin3_tra, column 1 = lin3_trb; the final store is an unmasked
    128-wide bf16 slab.
    """
    h = jnp.dot(x_ref[...], w1_ref[...],
                preferred_element_type=jnp.float32) + b1_ref[...]
    h = h * s1_ref[...] + t1_ref[...]          # bn1 (eval mode, folded)
    h = jnp.maximum(h, 0.0)                    # relu ; dropout1 == identity (eval)
    h = jnp.dot(h.astype(jnp.bfloat16), w2_ref[...],
                preferred_element_type=jnp.float32) + b2_ref[...]
    h = h * s2_ref[...] + t2_ref[...]          # bn2
    h = jnp.maximum(h, 0.0)                    # dropout2 == identity, then relu
    y = jnp.dot(h.astype(jnp.bfloat16), w3_ref[...],
                preferred_element_type=jnp.float32) + b3_ref[...]
    o_ref[...] = y.astype(o_ref.dtype)


# ---------------------------------------------------------------------------
# One-time adjacency preprocessing (hoisted out of the layer loop AND out of jit)
# ---------------------------------------------------------------------------

def preprocess_adjacency(src_idx, dst_idx, n_src, n_dst):
    """Dense int8 edge-count matrix (dst x src), padded/aligned, plus f32 1/deg.

    A is identical across all GNN layers and forward calls, so this runs once.
    TODO(synk): int8 saturates for >127 parallel edges between one (src, dst) pair.
    """
    counts = jnp.zeros((n_dst, n_src), jnp.float32).at[dst_idx, src_idx].add(1.0)
    inv_deg = 1.0 / jnp.maximum(counts.sum(axis=1, keepdims=True), 1.0)
    m_pad = _round_up(max(n_dst, 1), 32)      # int8 sublane-pack alignment
    k_pad = _round_up(max(n_src, 1), 128)     # lane alignment
    return dict(
        A=_pad_to(counts, m_pad, k_pad).astype(jnp.int8),
        inv_deg=_pad_to(inv_deg, m_pad, 1).astype(jnp.float32),
    )


# ---------------------------------------------------------------------------
# Wrappers (tiling, padding, bf16 casts)
# ---------------------------------------------------------------------------

def sage_single(adjp, x_src, x_dst, p):
    A, inv_deg = adjp["A"], adjp["inv_deg"]
    m_pad, k_pad = A.shape
    n_dst, f_dst = x_dst.shape
    f_src = x_src.shape[1]
    H = p["wl"].shape[1]
    tm = _pick_row_tile(m_pad, SAGE_TILES)

    xs = _pad_to(x_src, k_pad, f_src).astype(jnp.bfloat16)
    xd = _pad_to(x_dst, m_pad, f_dst).astype(jnp.bfloat16)
    wl = p["wl"].astype(jnp.bfloat16)
    wr = p["wr"].astype(jnp.bfloat16)
    b = p["bl"].reshape(1, -1).astype(jnp.float32)

    out = pl.pallas_call(
        sage_single_kernel,
        out_shape=jax.ShapeDtypeStruct((m_pad, H), jnp.bfloat16),
        grid=(m_pad // tm,),
        in_specs=[
            pl.BlockSpec((tm, k_pad), lambda i: (i, 0)),      # A row block (int8)
            pl.BlockSpec((tm, 1), lambda i: (i, 0)),          # 1/deg
            pl.BlockSpec((k_pad, f_src), lambda i: (0, 0)),   # x_src: resident, DMA'd once
            pl.BlockSpec((tm, f_dst), lambda i: (i, 0)),      # x_dst row block
            pl.BlockSpec((f_src, H), lambda i: (0, 0)),       # Wl
            pl.BlockSpec((f_dst, H), lambda i: (0, 0)),       # Wr
            pl.BlockSpec((1, H), lambda i: (0, 0)),           # bias
        ],
        out_specs=pl.BlockSpec((tm, H), lambda i: (i, 0)),
        compiler_params=pltpu.CompilerParams(
            dimension_semantics=("parallel",),
            vmem_limit_bytes=VMEM_LIMIT),
    )(A, inv_deg, xs, xd, wl, wr, b)
    return out[:n_dst]


def sage_double(adj1, x1, p1, adj2, x2, p2, x_dst):
    A1, id1 = adj1["A"], adj1["inv_deg"]
    A2, id2 = adj2["A"], adj2["inv_deg"]
    m_pad, k1_pad = A1.shape
    m2_pad, k2_pad = A2.shape
    assert m_pad == m2_pad, "both adjacencies must share the dst (cdr3b) padding"
    n_dst, fd = x_dst.shape
    f1, f2 = x1.shape[1], x2.shape[1]
    H = p1["wl"].shape[1]
    tm = _pick_row_tile(m_pad, SAGE_TILES)

    xs1 = _pad_to(x1, k1_pad, f1).astype(jnp.bfloat16)
    xs2 = _pad_to(x2, k2_pad, f2).astype(jnp.bfloat16)
    xd = _pad_to(x_dst, m_pad, fd).astype(jnp.bfloat16)
    wl1 = p1["wl"].astype(jnp.bfloat16)
    wl2 = p2["wl"].astype(jnp.bfloat16)
    wrs = (p1["wr"] + p2["wr"]).astype(jnp.bfloat16)   # one x_dst matmul (aggr='sum')
    b = (p1["bl"] + p2["bl"]).reshape(1, -1).astype(jnp.float32)

    out = pl.pallas_call(
        sage_double_kernel,
        out_shape=jax.ShapeDtypeStruct((m_pad, H), jnp.bfloat16),
        grid=(m_pad // tm,),
        in_specs=[
            pl.BlockSpec((tm, k1_pad), lambda i: (i, 0)),     # A1 row block (int8)
            pl.BlockSpec((tm, 1), lambda i: (i, 0)),          # 1/deg 1
            pl.BlockSpec((tm, k2_pad), lambda i: (i, 0)),     # A2 row block (int8)
            pl.BlockSpec((tm, 1), lambda i: (i, 0)),          # 1/deg 2
            pl.BlockSpec((k1_pad, f1), lambda i: (0, 0)),     # x_src1 resident
            pl.BlockSpec((k2_pad, f2), lambda i: (0, 0)),     # x_src2 resident
            pl.BlockSpec((tm, fd), lambda i: (i, 0)),         # x_dst row block
            pl.BlockSpec((f1, H), lambda i: (0, 0)),          # Wl1
            pl.BlockSpec((f2, H), lambda i: (0, 0)),          # Wl2
            pl.BlockSpec((fd, H), lambda i: (0, 0)),          # Wr1 + Wr2
            pl.BlockSpec((1, H), lambda i: (0, 0)),           # bl1 + bl2
        ],
        out_specs=pl.BlockSpec((tm, H), lambda i: (i, 0)),
        compiler_params=pltpu.CompilerParams(
            dimension_semantics=("parallel",),
            vmem_limit_bytes=VMEM_LIMIT),
    )(A1, id1, A2, id2, xs1, xs2, xd, wl1, wl2, wrs, b)
    return out[:n_dst]


def mlp_decoder(x_rows, mp):
    """Runs all (tra + trb) edge rows through one kernel; returns (E, HEAD_PAD) bf16 slab."""
    E, f_in = x_rows.shape
    e_pad = _round_up(max(E, 1), 16)
    tm = _pick_row_tile(e_pad, MLP_TILES)
    x_p = _pad_to(x_rows, e_pad, f_in).astype(jnp.bfloat16)

    d2 = mp["w2"].shape[1]
    w1 = mp["w1"].astype(jnp.bfloat16)
    w2 = mp["w2"].astype(jnp.bfloat16)
    # Lane-dense packed heads: col 0 = lin3_tra, col 1 = lin3_trb, rest zero.
    w3 = jnp.zeros((d2, HEAD_PAD), jnp.float32)
    w3 = w3.at[:, 0].set(mp["w3_tra"][:, 0]).at[:, 1].set(mp["w3_trb"][:, 0])
    w3 = w3.astype(jnp.bfloat16)
    b3 = jnp.zeros((1, HEAD_PAD), jnp.float32)
    b3 = b3.at[0, 0].set(mp["b3_tra"][0]).at[0, 1].set(mp["b3_trb"][0])

    args = (x_p,
            w1, mp["b1"].reshape(1, -1),
            mp["bn1_scale"].reshape(1, -1), mp["bn1_shift"].reshape(1, -1),
            w2, mp["b2"].reshape(1, -1),
            mp["bn2_scale"].reshape(1, -1), mp["bn2_shift"].reshape(1, -1),
            w3, b3)

    in_specs = ([pl.BlockSpec((tm, f_in), lambda i: (i, 0))]
                + [pl.BlockSpec(a.shape, lambda i: (0, 0)) for a in args[1:]])

    out = pl.pallas_call(
        mlp_kernel,
        out_shape=jax.ShapeDtypeStruct((e_pad, HEAD_PAD), jnp.bfloat16),
        grid=(e_pad // tm,),
        in_specs=in_specs,
        out_specs=pl.BlockSpec((tm, HEAD_PAD), lambda i: (i, 0)),
        compiler_params=pltpu.CompilerParams(
            dimension_semantics=("parallel",),
            vmem_limit_bytes=VMEM_LIMIT),
    )(*args)
    return out[:E]


def hetero_tcr_forward(params, x_dict, adj_prep, edge_index_a, edge_index_b):
    xc = x_dict["cdr3b"].astype(jnp.bfloat16)
    xa = x_dict["tra_peptide"].astype(jnp.bfloat16)
    xb = x_dict["trb_peptide"].astype(jnp.bfloat16)

    # --- HeteroGNN encoder (3 layers); adjacency already preprocessed once ---
    for lp in params["gnn"]:
        xa_new = sage_single(adj_prep["tra_from_cdr"], xc, xa, lp["c2a"])  # cdr3b -> tra
        xb_new = sage_single(adj_prep["trb_from_cdr"], xc, xb, lp["c2b"])  # cdr3b -> trb
        xc_new = sage_double(adj_prep["cdr_from_tra"], xa, lp["a2c"],      # tra -> cdr3b
                             adj_prep["cdr_from_trb"], xb, lp["b2c"],      # trb -> cdr3b
                             xc)
        xc, xa, xb = xc_new, xa_new, xb_new

    # --- MLP decoder: both edge batches through one kernel (shared w1/w2/BN) ---
    # TODO(synk): fold this gather+concat into the MLP kernel via scalar prefetch.
    x_tra = jnp.concatenate([jnp.take(xc, edge_index_a[0], axis=0),
                             jnp.take(xa, edge_index_a[1], axis=0)], axis=1)
    x_trb = jnp.concatenate([jnp.take(xc, edge_index_b[0], axis=0),
                             jnp.take(xb, edge_index_b[1], axis=0)], axis=1)
    e_a = x_tra.shape[0]
    out = mlp_decoder(jnp.concatenate([x_tra, x_trb], axis=0), params["mlp"])
    out_tra = out[:e_a, 0:1].astype(jnp.float32)
    out_trb = out[e_a:, 1:2].astype(jnp.float32)
    return out_tra, out_trb


# ---------------------------------------------------------------------------
# Pure-JAX reference (f32) for a sanity check
# ---------------------------------------------------------------------------

def reference_forward(params, x_dict, adj, edge_index_a, edge_index_b):
    def sage(A, xs, xd, p):
        return (A @ xs) @ p["wl"] + p["bl"] + xd @ p["wr"]

    xc, xa, xb = x_dict["cdr3b"], x_dict["tra_peptide"], x_dict["trb_peptide"]
    for lp in params["gnn"]:
        xa_n = _leaky_relu(sage(adj["tra_from_cdr"], xc, xa, lp["c2a"]))
        xb_n = _leaky_relu(sage(adj["trb_from_cdr"], xc, xb, lp["c2b"]))
        xc_n = _leaky_relu(sage(adj["cdr_from_tra"], xa, xc, lp["a2c"])
                           + sage(adj["cdr_from_trb"], xb, xc, lp["b2c"]))
        xc, xa, xb = xc_n, xa_n, xb_n

    mp = params["mlp"]

    def path(x):
        h = x @ mp["w1"] + mp["b1"]
        h = h * mp["bn1_scale"] + mp["bn1_shift"]
        h = jnp.maximum(h, 0.0)
        h = h @ mp["w2"] + mp["b2"]
        h = h * mp["bn2_scale"] + mp["bn2_shift"]
        return jnp.maximum(h, 0.0)

    x_tra = jnp.concatenate([xc[edge_index_a[0]], xa[edge_index_a[1]]], axis=1)
    x_trb = jnp.concatenate([xc[edge_index_b[0]], xb[edge_index_b[1]]], axis=1)
    out_tra = path(x_tra) @ mp["w3_tra"] + mp["b3_tra"]
    out_trb = path(x_trb) @ mp["w3_trb"] + mp["b3_trb"]
    return out_tra, out_trb


# ---------------------------------------------------------------------------
# Parameter / graph construction (deterministic glue)
# ---------------------------------------------------------------------------

def init_sage(key, in_src, in_dst, hidden):
    k1, k2, k3 = jax.random.split(key, 3)
    return dict(
        wl=jax.random.normal(k1, (in_src, hidden), jnp.float32) * 0.05,
        bl=jax.random.normal(k2, (hidden,), jnp.float32) * 0.05,
        wr=jax.random.normal(k3, (in_dst, hidden), jnp.float32) * 0.05,
    )


def init_params(key, in_dim, hidden, num_layers=3):
    keys = jax.random.split(key, num_layers * 4 + 4)
    gnn = []
    ki = 0
    for layer in range(num_layers):
        d = in_dim if layer == 0 else hidden
        gnn.append(dict(
            c2a=init_sage(keys[ki + 0], d, d, hidden),
            c2b=init_sage(keys[ki + 1], d, d, hidden),
            a2c=init_sage(keys[ki + 2], d, d, hidden),
            b2c=init_sage(keys[ki + 3], d, d, hidden),
        ))
        ki += 4

    def lin(k, fin, fout):
        kw, kb = jax.random.split(k)
        return (jax.random.normal(kw, (fin, fout), jnp.float32) * 0.05,
                jax.random.normal(kb, (fout,), jnp.float32) * 0.05)

    w1, b1 = lin(keys[ki + 0], 2 * hidden, 512)
    w2, b2 = lin(keys[ki + 1], 512, 256)
    w3a, b3a = lin(keys[ki + 2], 256, 1)
    w3b, b3b = lin(keys[ki + 3], 256, 1)
    # eval-mode BatchNorm with fresh stats (mean=0, var=1, gamma=1, beta=0) folded.
    bn_scale = lambda n: jnp.ones((n,), jnp.float32) / jnp.sqrt(1.0 + BN_EPS)
    bn_shift = lambda n: jnp.zeros((n,), jnp.float32)
    mlp = dict(w1=w1, b1=b1, w2=w2, b2=b2,
               bn1_scale=bn_scale(512), bn1_shift=bn_shift(512),
               bn2_scale=bn_scale(256), bn2_shift=bn_shift(256),
               w3_tra=w3a, b3_tra=b3a, w3_trb=w3b, b3_trb=b3b)
    return dict(gnn=gnn, mlp=mlp)


def build_norm_adj(src_idx, dst_idx, n_src, n_dst):
    """Reference-only dense row-normalized adjacency (mean aggregation)."""
    A = jnp.zeros((n_dst, n_src), jnp.float32).at[dst_idx, src_idx].add(1.0)
    deg = A.sum(axis=1, keepdims=True)
    return A / jnp.maximum(deg, 1.0)


if __name__ == "__main__":
    key = jax.random.PRNGKey(0)
    in_dim, hidden = 64, 128
    n_cdr, n_tra, n_trb = 16, 8, 8
    e_a, e_b = 16, 16

    kxc, kxa, kxb, kea_s, kea_d, keb_s, keb_d, kp = jax.random.split(key, 8)
    x_dict = {
        "cdr3b":       jax.random.normal(kxc, (n_cdr, in_dim), jnp.float32),
        "tra_peptide": jax.random.normal(kxa, (n_tra, in_dim), jnp.float32),
        "trb_peptide": jax.random.normal(kxb, (n_trb, in_dim), jnp.float32),
    }
    # binds_to edges (also used as supervision edges edge_index_a / edge_index_b)
    ea_src = jax.random.randint(kea_s, (e_a,), 0, n_cdr)
    ea_dst = jax.random.randint(kea_d, (e_a,), 0, n_tra)
    eb_src = jax.random.randint(keb_s, (e_b,), 0, n_cdr)
    eb_dst = jax.random.randint(keb_d, (e_b,), 0, n_trb)
    edge_index_a = jnp.stack([ea_src, ea_dst])   # cdr3b -> tra_peptide
    edge_index_b = jnp.stack([eb_src, eb_dst])   # cdr3b -> trb_peptide

    # One-time adjacency preprocessing (int8 counts + 1/deg), shared by all layers
    # and all forward calls — hoisted out of jit entirely.
    adj_prep = dict(
        tra_from_cdr=preprocess_adjacency(ea_src, ea_dst, n_cdr, n_tra),
        trb_from_cdr=preprocess_adjacency(eb_src, eb_dst, n_cdr, n_trb),
        cdr_from_tra=preprocess_adjacency(ea_dst, ea_src, n_tra, n_cdr),
        cdr_from_trb=preprocess_adjacency(eb_dst, eb_src, n_trb, n_cdr),
    )
    # Reference-only normalized float adjacency.
    adj_ref = dict(
        tra_from_cdr=build_norm_adj(ea_src, ea_dst, n_cdr, n_tra),
        trb_from_cdr=build_norm_adj(eb_src, eb_dst, n_cdr, n_trb),
        cdr_from_tra=build_norm_adj(ea_dst, ea_src, n_tra, n_cdr),
        cdr_from_trb=build_norm_adj(eb_dst, eb_src, n_trb, n_cdr),
    )

    params = init_params(kp, in_dim, hidden, num_layers=3)

    fwd = jax.jit(hetero_tcr_forward)
    out_tra, out_trb = fwd(params, x_dict, adj_prep, edge_index_a, edge_index_b)
    jax.block_until_ready((out_tra, out_trb))

    assert out_tra.shape == (e_a, 1) and out_trb.shape == (e_b, 1)
    assert bool(jnp.all(jnp.isfinite(out_tra))) and bool(jnp.all(jnp.isfinite(out_trb)))

    # sanity check vs pure-JAX f32 reference (generous tol for the bf16 MXU path)
    ref_tra, ref_trb = reference_forward(params, x_dict, adj_ref,
                                         edge_index_a, edge_index_b)
    max_err = float(jnp.maximum(jnp.max(jnp.abs(out_tra - ref_tra)),
                                jnp.max(jnp.abs(out_trb - ref_trb))))
    assert max_err < 7.5e-2, f"mismatch vs reference: {max_err}"

    print("KERNEL_OK")
</pallas_src>

<mosaic_0001>
module attributes {stable_mosaic.version = 11 : i64} {
  func.func @sage_single_kernel(%arg0: i32, %arg1: memref<32x128xi8, #tpu.memory_space<vmem>>, %arg2: memref<32x1xf32, #tpu.memory_space<vmem>>, %arg3: memref<128x64xbf16, #tpu.memory_space<vmem>>, %arg4: memref<32x64xbf16, #tpu.memory_space<vmem>>, %arg5: memref<64x128xbf16, #tpu.memory_space<vmem>>, %arg6: memref<64x128xbf16, #tpu.memory_space<vmem>>, %arg7: memref<1x128xf32, #tpu.memory_space<vmem>>, %arg8: memref<32x128xbf16, #tpu.memory_space<vmem>>) attributes {dimension_semantics = [#tpu.dimension_semantics<parallel>], iteration_bounds = array<i64: 1>, scalar_prefetch = 0 : i64, scratch_operands = 0 : i64, tpu.core_type = #tpu.core_type<tc>, window_params = [{transform_indices = @transform_0, window_bounds = array<i64: 32, 128>}, {transform_indices = @transform_1, window_bounds = array<i64: 32, 1>}, {pipeline_mode = #tpu.pipeline_mode<synchronous>, transform_indices = @transform_2, window_bounds = array<i64: 128, 64>}, {transform_indices = @transform_3, window_bounds = array<i64: 32, 64>}, {pipeline_mode = #tpu.pipeline_mode<synchronous>, transform_indices = @transform_4, window_bounds = array<i64: 64, 128>}, {pipeline_mode = #tpu.pipeline_mode<synchronous>, transform_indices = @transform_5, window_bounds = array<i64: 64, 128>}, {pipeline_mode = #tpu.pipeline_mode<synchronous>, transform_indices = @transform_6, window_bounds = array<i64: 1, 128>}, {transform_indices = @transform_7, window_bounds = array<i64: 32, 128>}]} {
    %c0 = arith.constant 0 : index
    %c0_0 = arith.constant 0 : index
    %0 = vector.load %arg1[%c0, %c0_0] : memref<32x128xi8, #tpu.memory_space<vmem>>, vector<32x128xi8>
    %1 = arith.sitofp %0 : vector<32x128xi8> to vector<32x128xf32>
    %2 = arith.truncf %1 : vector<32x128xf32> to vector<32x128xbf16>
    %c0_1 = arith.constant 0 : index
    %c0_2 = arith.constant 0 : index
    %3 = vector.load %arg3[%c0_1, %c0_2] : memref<128x64xbf16, #tpu.memory_space<vmem>>, vector<128x64xbf16>
    %cst = arith.constant dense<0.000000e+00> : vector<32x64xf32>
    %4 = tpu.matmul %2, %3, %cst {dimension_numbers = #tpu.dot_dimension_numbers<[1], [0], [0], [1], [0, 0, 1, 1], [], []>} : vector<32x128xbf16>, vector<128x64xbf16>, vector<32x64xf32> -> vector<32x64xf32>
    %c0_3 = arith.constant 0 : index
    %c0_4 = arith.constant 0 : index
    %5 = vector.load %arg2[%c0_3, %c0_4] : memref<32x1xf32, #tpu.memory_space<vmem>>, vector<32x1xf32>
    %6 = vector.broadcast %5 : vector<32x1xf32> to vector<32x64xf32>
    %7 = arith.mulf %4, %6 : vector<32x64xf32>
    %8 = arith.truncf %7 : vector<32x64xf32> to vector<32x64xbf16>
    %c0_5 = arith.constant 0 : index
    %c0_6 = arith.constant 0 : index
    %9 = vector.load %arg5[%c0_5, %c0_6] : memref<64x128xbf16, #tpu.memory_space<vmem>>, vector<64x128xbf16>
    %cst_7 = arith.constant dense<0.000000e+00> : vector<32x128xf32>
    %10 = tpu.matmul %8, %9, %cst_7 {dimension_numbers = #tpu.dot_dimension_numbers<[1], [0], [0], [1], [0, 0, 1, 1], [], []>} : vector<32x64xbf16>, vector<64x128xbf16>, vector<32x128xf32> -> vector<32x128xf32>
    %c0_8 = arith.constant 0 : index
    %c0_9 = arith.constant 0 : index
    %11 = vector.load %arg4[%c0_8, %c0_9] : memref<32x64xbf16, #tpu.memory_space<vmem>>, vector<32x64xbf16>
    %c0_10 = arith.constant 0 : index
    %c0_11 = arith.constant 0 : index
    %12 = vector.load %arg6[%c0_10, %c0_11] : memref<64x128xbf16, #tpu.memory_space<vmem>>, vector<64x128xbf16>
    %cst_12 = arith.constant dense<0.000000e+00> : vector<32x128xf32>
    %13 = tpu.matmul %11, %12, %cst_12 {dimension_numbers = #tpu.dot_dimension_numbers<[1], [0], [0], [1], [0, 0, 1, 1], [], []>} : vector<32x64xbf16>, vector<64x128xbf16>, vector<32x128xf32> -> vector<32x128xf32>
    %14 = arith.addf %10, %13 : vector<32x128xf32>
    %c0_13 = arith.constant 0 : index
    %c0_14 = arith.constant 0 : index
    %15 = vector.load %arg7[%c0_13, %c0_14] : memref<1x128xf32, #tpu.memory_space<vmem>>, vector<1x128xf32>
    %16 = vector.broadcast %15 : vector<1x128xf32> to vector<32x128xf32>
    %17 = arith.addf %14, %16 : vector<32x128xf32>
    %cst_15 = arith.constant 0.000000e+00 : f32
    %18 = vector.broadcast %cst_15 : f32 to vector<32x128xf32>
    %19 = arith.cmpf ogt, %17, %18 : vector<32x128xf32>
    %cst_16 = arith.constant 0.00999999977 : f32
    %20 = vector.broadcast %cst_16 : f32 to vector<32x128xf32>
    %21 = arith.mulf %20, %17 : vector<32x128xf32>
    %22 = arith.select %19, %17, %21 : vector<32x128xi1>, vector<32x128xf32>
    %23 = arith.truncf %22 : vector<32x128xf32> to vector<32x128xbf16>
    %c0_17 = arith.constant 0 : index
    %c0_18 = arith.constant 0 : index
    %24 = vector.load %arg8[%c0_17, %c0_18] : memref<32x128xbf16, #tpu.memory_space<vmem>>, vector<32x128xbf16>
    tpu.vector_store %arg8[%c0_17, %c0_18], %23 {strides = array<i32>} : memref<32x128xbf16, #tpu.memory_space<vmem>>, vector<32x128xbf16>,
    return
  }
  func.func @transform_0(%arg0: i32) -> (i32, i32) {
    %c0_i32 = arith.constant 0 : i32
    %c0_i32_0 = arith.constant 0 : i32
    return %arg0, %c0_i32 : i32, i32
  }
  func.func @transform_1(%arg0: i32) -> (i32, i32) {
    %c0_i32 = arith.constant 0 : i32
    %c0_i32_0 = arith.constant 0 : i32
    return %arg0, %c0_i32 : i32, i32
  }
  func.func @transform_2(%arg0: i32) -> (i32, i32) {
    %c0_i32 = arith.constant 0 : i32
    %c0_i32_0 = arith.constant 0 : i32
    %c0_i32_1 = arith.constant 0 : i32
    return %c0_i32, %c0_i32_0 : i32, i32
  }
  func.func @transform_3(%arg0: i32) -> (i32, i32) {
    %c0_i32 = arith.constant 0 : i32
    %c0_i32_0 = arith.constant 0 : i32
    return %arg0, %c0_i32 : i32, i32
  }
  func.func @transform_4(%arg0: i32) -> (i32, i32) {
    %c0_i32 = arith.constant 0 : i32
    %c0_i32_0 = arith.constant 0 : i32
    %c0_i32_1 = arith.constant 0 : i32
    return %c0_i32, %c0_i32_0 : i32, i32
  }
  func.func @transform_5(%arg0: i32) -> (i32, i32) {
    %c0_i32 = arith.constant 0 : i32
    %c0_i32_0 = arith.constant 0 : i32
    %c0_i32_1 = arith.constant 0 : i32
    return %c0_i32, %c0_i32_0 : i32, i32
  }
  func.func @transform_6(%arg0: i32) -> (i32, i32) {
    %c0_i32 = arith.constant 0 : i32
    %c0_i32_0 = arith.constant 0 : i32
    %c0_i32_1 = arith.constant 0 : i32
    return %c0_i32, %c0_i32_0 : i32, i32
  }
  func.func @transform_7(%arg0: i32) -> (i32, i32) {
    %c0_i32 = arith.constant 0 : i32
    %c0_i32_0 = arith.constant 0 : i32
    return %arg0, %c0_i32 : i32, i32
  }
}

module attributes {stable_mosaic.version = 11 : i64} {
  func.func @sage_double_kernel(%arg0: i32, %arg1: memref<32x128xi8, #tpu.memory_space<vmem>>, %arg2: memref<32x1xf32, #tpu.memory_space<vmem>>, %arg3: memref<32x128xi8, #tpu.memory_space<vmem>>, %arg4: memref<32x1xf32, #tpu.memory_space<vmem>>, %arg5: memref<128x64xbf16, #tpu.memory_space<vmem>>, %arg6: memref<128x64xbf16, #tpu.memory_space<vmem>>, %arg7: memref<32x64xbf16, #tpu.memory_space<vmem>>, %arg8: memref<64x128xbf16, #tpu.memory_space<vmem>>, %arg9: memref<64x128xbf16, #tpu.memory_space<vmem>>, %arg10: memref<64x128xbf16, #tpu.memory_space<vmem>>, %arg11: memref<1x128xf32, #tpu.memory_space<vmem>>, %arg12: memref<32x128xbf16, #tpu.memory_space<vmem>>) attributes {dimension_semantics = [#tpu.dimension_semantics<parallel>], iteration_bounds = array<i64: 1>, scalar_prefetch = 0 : i64, scratch_operands = 0 : i64, tpu.core_type = #tpu.core_type<tc>, window_params = [{transform_indices = @transform_0, window_bounds = array<i64: 32, 128>}, {transform_indices = @transform_1, window_bounds = array<i64: 32, 1>}, {transform_indices = @transform_2, window_bounds = array<i64: 32, 128>}, {transform_indices = @transform_3, window_bounds = array<i64: 32, 1>}, {pipeline_mode = #tpu.pipeline_mode<synchronous>, transform_indices = @transform_4, window_bounds = array<i64: 128, 64>}, {pipeline_mode = #tpu.pipeline_mode<synchronous>, transform_indices = @transform_5, window_bounds = array<i64: 128, 64>}, {transform_indices = @transform_6, window_bounds = array<i64: 32, 64>}, {pipeline_mode = #tpu.pipeline_mode<synchronous>, transform_indices = @transform_7, window_bounds = array<i64: 64, 128>}, {pipeline_mode = #tpu.pipeline_mode<synchronous>, transform_indices = @transform_8, window_bounds = array<i64: 64, 128>}, {pipeline_mode = #tpu.pipeline_mode<synchronous>, transform_indices = @transform_9, window_bounds = array<i64: 64, 128>}, {pipeline_mode = #tpu.pipeline_mode<synchronous>, transform_indices = @transform_10, window_bounds = array<i64: 1, 128>}, {transform_indices = @transform_11, window_bounds = array<i64: 32, 128>}]} {
    %c0 = arith.constant 0 : index
    %c0_0 = arith.constant 0 : index
    %0 = vector.load %arg1[%c0, %c0_0] : memref<32x128xi8, #tpu.memory_space<vmem>>, vector<32x128xi8>
    %1 = arith.sitofp %0 : vector<32x128xi8> to vector<32x128xf32>
    %2 = arith.truncf %1 : vector<32x128xf32> to vector<32x128xbf16>
    %c0_1 = arith.constant 0 : index
    %c0_2 = arith.constant 0 : index
    %3 = vector.load %arg5[%c0_1, %c0_2] : memref<128x64xbf16, #tpu.memory_space<vmem>>, vector<128x64xbf16>
    %cst = arith.constant dense<0.000000e+00> : vector<32x64xf32>
    %4 = tpu.matmul %2, %3, %cst {dimension_numbers = #tpu.dot_dimension_numbers<[1], [0], [0], [1], [0, 0, 1, 1], [], []>} : vector<32x128xbf16>, vector<128x64xbf16>, vector<32x64xf32> -> vector<32x64xf32>
    %c0_3 = arith.constant 0 : index
    %c0_4 = arith.constant 0 : index
    %5 = vector.load %arg2[%c0_3, %c0_4] : memref<32x1xf32, #tpu.memory_space<vmem>>, vector<32x1xf32>
    %6 = vector.broadcast %5 : vector<32x1xf32> to vector<32x64xf32>
    %7 = arith.mulf %4, %6 : vector<32x64xf32>
    %c0_5 = arith.constant 0 : index
    %c0_6 = arith.constant 0 : index
    %8 = vector.load %arg3[%c0_5, %c0_6] : memref<32x128xi8, #tpu.memory_space<vmem>>, vector<32x128xi8>
    %9 = arith.sitofp %8 : vector<32x128xi8> to vector<32x128xf32>
    %10 = arith.truncf %9 : vector<32x128xf32> to vector<32x128xbf16>
    %c0_7 = arith.constant 0 : index
    %c0_8 = arith.constant 0 : index
    %11 = vector.load %arg6[%c0_7, %c0_8] : memref<128x64xbf16, #tpu.memory_space<vmem>>, vector<128x64xbf16>
    %cst_9 = arith.constant dense<0.000000e+00> : vector<32x64xf32>
    %12 = tpu.matmul %10, %11, %cst_9 {dimension_numbers = #tpu.dot_dimension_numbers<[1], [0], [0], [1], [0, 0, 1, 1], [], []>} : vector<32x128xbf16>, vector<128x64xbf16>, vector<32x64xf32> -> vector<32x64xf32>
    %c0_10 = arith.constant 0 : index
    %c0_11 = arith.constant 0 : index
    %13 = vector.load %arg4[%c0_10, %c0_11] : memref<32x1xf32, #tpu.memory_space<vmem>>, vector<32x1xf32>
    %14 = vector.broadcast %13 : vector<32x1xf32> to vector<32x64xf32>
    %15 = arith.mulf %12, %14 : vector<32x64xf32>
    %16 = arith.truncf %7 : vector<32x64xf32> to vector<32x64xbf16>
    %c0_12 = arith.constant 0 : index
    %c0_13 = arith.constant 0 : index
    %17 = vector.load %arg8[%c0_12, %c0_13] : memref<64x128xbf16, #tpu.memory_space<vmem>>, vector<64x128xbf16>
    %cst_14 = arith.constant dense<0.000000e+00> : vector<32x128xf32>
    %18 = tpu.matmul %16, %17, %cst_14 {dimension_numbers = #tpu.dot_dimension_numbers<[1], [0], [0], [1], [0, 0, 1, 1], [], []>} : vector<32x64xbf16>, vector<64x128xbf16>, vector<32x128xf32> -> vector<32x128xf32>
    %19 = arith.truncf %15 : vector<32x64xf32> to vector<32x64xbf16>
    %c0_15 = arith.constant 0 : index
    %c0_16 = arith.constant 0 : index
    %20 = vector.load %arg9[%c0_15, %c0_16] : memref<64x128xbf16, #tpu.memory_space<vmem>>, vector<64x128xbf16>
    %cst_17 = arith.constant dense<0.000000e+00> : vector<32x128xf32>
    %21 = tpu.matmul %19, %20, %cst_17 {dimension_numbers = #tpu.dot_dimension_numbers<[1], [0], [0], [1], [0, 0, 1, 1], [], []>} : vector<32x64xbf16>, vector<64x128xbf16>, vector<32x128xf32> -> vector<32x128xf32>
    %22 = arith.addf %18, %21 : vector<32x128xf32>
    %c0_18 = arith.constant 0 : index
    %c0_19 = arith.constant 0 : index
    %23 = vector.load %arg7[%c0_18, %c0_19] : memref<32x64xbf16, #tpu.memory_space<vmem>>, vector<32x64xbf16>
    %c0_20 = arith.constant 0 : index
    %c0_21 = arith.constant 0 : index
    %24 = vector.load %arg10[%c0_20, %c0_21] : memref<64x128xbf16, #tpu.memory_space<vmem>>, vector<64x128xbf16>
    %cst_22 = arith.constant dense<0.000000e+00> : vector<32x128xf32>
    %25 = tpu.matmul %23, %24, %cst_22 {dimension_numbers = #tpu.dot_dimension_numbers<[1], [0], [0], [1], [0, 0, 1, 1], [], []>} : vector<32x64xbf16>, vector<64x128xbf16>, vector<32x128xf32> -> vector<32x128xf32>
    %26 = arith.addf %22, %25 : vector<32x128xf32>
    %c0_23 = arith.constant 0 : index
    %c0_24 = arith.constant 0 : index
    %27 = vector.load %arg11[%c0_23, %c0_24] : memref<1x128xf32, #tpu.memory_space<vmem>>, vector<1x128xf32>
    %28 = vector.broadcast %27 : vector<1x128xf32> to vector<32x128xf32>
    %29 = arith.addf %26, %28 : vector<32x128xf32>
    %cst_25 = arith.constant 0.000000e+00 : f32
    %30 = vector.broadcast %cst_25 : f32 to vector<32x128xf32>
    %31 = arith.cmpf ogt, %29, %30 : vector<32x128xf32>
    %cst_26 = arith.constant 0.00999999977 : f32
    %32 = vector.broadcast %cst_26 : f32 to vector<32x128xf32>
    %33 = arith.mulf %32, %29 : vector<32x128xf32>
    %34 = arith.select %31, %29, %33 : vector<32x128xi1>, vector<32x128xf32>
    %35 = arith.truncf %34 : vector<32x128xf32> to vector<32x128xbf16>
    %c0_27 = arith.constant 0 : index
    %c0_28 = arith.constant 0 : index
    %36 = vector.load %arg12[%c0_27, %c0_28] : memref<32x128xbf16, #tpu.memory_space<vmem>>, vector<32x128xbf16>
    tpu.vector_store %arg12[%c0_27, %c0_28], %35 {strides = array<i32>} : memref<32x128xbf16, #tpu.memory_space<vmem>>, vector<32x128xbf16>,
    return
  }
  func.func @transform_0(%arg0: i32) -> (i32, i32) {
    %c0_i32 = arith.constant 0 : i32
    %c0_i32_0 = arith.constant 0 : i32
    return %arg0, %c0_i32 : i32, i32
  }
  func.func @transform_1(%arg0: i32) -> (i32, i32) {
    %c0_i32 = arith.constant 0 : i32
    %c0_i32_0 = arith.constant 0 : i32
    return %arg0, %c0_i32 : i32, i32
  }
  func.func @transform_2(%arg0: i32) -> (i32, i32) {
    %c0_i32 = arith.constant 0 : i32
    %c0_i32_0 = arith.constant 0 : i32
    return %arg0, %c0_i32 : i32, i32
  }
  func.func @transform_3(%arg0: i32) -> (i32, i32) {
    %c0_i32 = arith.constant 0 : i32
    %c0_i32_0 = arith.constant 0 : i32
    return %arg0, %c0_i32 : i32, i32
  }
  func.func @transform_4(%arg0: i32) -> (i32, i32) {
    %c0_i32 = arith.constant 0 : i32
    %c0_i32_0 = arith.constant 0 : i32
    %c0_i32_1 = arith.constant 0 : i32
    return %c0_i32, %c0_i32_0 : i32, i32
  }
  func.func @transform_5(%arg0: i32) -> (i32, i32) {
    %c0_i32 = arith.constant 0 : i32
    %c0_i32_0 = arith.constant 0 : i32
    %c0_i32_1 = arith.constant 0 : i32
    return %c0_i32, %c0_i32_0 : i32, i32
  }
  func.func @transform_6(%arg0: i32) -> (i32, i32) {
    %c0_i32 = arith.constant 0 : i32
    %c0_i32_0 = arith.constant 0 : i32
    return %arg0, %c0_i32 : i32, i32
  }
  func.func @transform_7(%arg0: i32) -> (i32, i32) {
    %c0_i32 = arith.constant 0 : i32
    %c0_i32_0 = arith.constant 0 : i32
    %c0_i32_1 = arith.constant 0 : i32
    return %c0_i32, %c0_i32_0 : i32, i32
  }
  func.func @transform_8(%arg0: i32) -> (i32, i32) {
    %c0_i32 = arith.constant 0 : i32
    %c0_i32_0 = arith.constant 0 : i32
    %c0_i32_1 = arith.constant 0 : i32
    return %c0_i32, %c0_i32_0 : i32, i32
  }
  func.func @transform_9(%arg0: i32) -> (i32, i32) {
    %c0_i32 = arith.constant 0 : i32
    %c0_i32_0 = arith.constant 0 : i32
    %c0_i32_1 = arith.constant 0 : i32
    return %c0_i32, %c0_i32_0 : i32, i32
  }
  func.func @transform_10(%arg0: i32) -> (i32, i32) {
    %c0_i32 = arith.constant 0 : i32
    %c0_i32_0 = arith.constant 0 : i32
    %c0_i32_1 = arith.constant 0 : i32
    return %c0_i32, %c0_i32_0 : i32, i32
  }
  func.func @transform_11(%arg0: i32) -> (i32, i32) {
    %c0_i32 = arith.constant 0 : i32
    %c0_i32_0 = arith.constant 0 : i32
    return %arg0, %c0_i32 : i32, i32
  }
}

module attributes {stable_mosaic.version = 11 : i64} {
  func.func @sage_double_kernel(%arg0: i32, %arg1: memref<32x128xi8, #tpu.memory_space<vmem>>, %arg2: memref<32x1xf32, #tpu.memory_space<vmem>>, %arg3: memref<32x128xi8, #tpu.memory_space<vmem>>, %arg4: memref<32x1xf32, #tpu.memory_space<vmem>>, %arg5: memref<128x128xbf16, #tpu.memory_space<vmem>>, %arg6: memref<128x128xbf16, #tpu.memory_space<vmem>>, %arg7: memref<32x128xbf16, #tpu.memory_space<vmem>>, %arg8: memref<128x128xbf16, #tpu.memory_space<vmem>>, %arg9: memref<128x128xbf16, #tpu.memory_space<vmem>>, %arg10: memref<128x128xbf16, #tpu.memory_space<vmem>>, %arg11: memref<1x128xf32, #tpu.memory_space<vmem>>, %arg12: memref<32x128xbf16, #tpu.memory_space<vmem>>) attributes {dimension_semantics = [#tpu.dimension_semantics<parallel>], iteration_bounds = array<i64: 1>, scalar_prefetch = 0 : i64, scratch_operands = 0 : i64, tpu.core_type = #tpu.core_type<tc>, window_params = [{transform_indices = @transform_0, window_bounds = array<i64: 32, 128>}, {transform_indices = @transform_1, window_bounds = array<i64: 32, 1>}, {transform_indices = @transform_2, window_bounds = array<i64: 32, 128>}, {transform_indices = @transform_3, window_bounds = array<i64: 32, 1>}, {pipeline_mode = #tpu.pipeline_mode<synchronous>, transform_indices = @transform_4, window_bounds = array<i64: 128, 128>}, {pipeline_mode = #tpu.pipeline_mode<synchronous>, transform_indices = @transform_5, window_bounds = array<i64: 128, 128>}, {transform_indices = @transform_6, window_bounds = array<i64: 32, 128>}, {pipeline_mode = #tpu.pipeline_mode<synchronous>, transform_indices = @transform_7, window_bounds = array<i64: 128, 128>}, {pipeline_mode = #tpu.pipeline_mode<synchronous>, transform_indices = @transform_8, window_bounds = array<i64: 128, 128>}, {pipeline_mode = #tpu.pipeline_mode<synchronous>, transform_indices = @transform_9, window_bounds = array<i64: 128, 128>}, {pipeline_mode = #tpu.pipeline_mode<synchronous>, transform_indices = @transform_10, window_bounds = array<i64: 1, 128>}, {transform_indices = @transform_11, window_bounds = array<i64: 32, 128>}]} {
    %c0 = arith.constant 0 : index
    %c0_0 = arith.constant 0 : index
    %0 = vector.load %arg1[%c0, %c0_0] : memref<32x128xi8, #tpu.memory_space<vmem>>, vector<32x128xi8>
    %1 = arith.sitofp %0 : vector<32x128xi8> to vector<32x128xf32>
    %2 = arith.truncf %1 : vector<32x128xf32> to vector<32x128xbf16>
    %c0_1 = arith.constant 0 : index
    %c0_2 = arith.constant 0 : index
    %3 = vector.load %arg5[%c0_1, %c0_2] : memref<128x128xbf16, #tpu.memory_space<vmem>>, vector<128x128xbf16>
    %cst = arith.constant dense<0.000000e+00> : vector<32x128xf32>
    %4 = tpu.matmul %2, %3, %cst {dimension_numbers = #tpu.dot_dimension_numbers<[1], [0], [0], [1], [0, 0, 1, 1], [], []>} : vector<32x128xbf16>, vector<128x128xbf16>, vector<32x128xf32> -> vector<32x128xf32>
    %c0_3 = arith.constant 0 : index
    %c0_4 = arith.constant 0 : index
    %5 = vector.load %arg2[%c0_3, %c0_4] : memref<32x1xf32, #tpu.memory_space<vmem>>, vector<32x1xf32>
    %6 = vector.broadcast %5 : vector<32x1xf32> to vector<32x128xf32>
    %7 = arith.mulf %4, %6 : vector<32x128xf32>
    %c0_5 = arith.constant 0 : index
    %c0_6 = arith.constant 0 : index
    %8 = vector.load %arg3[%c0_5, %c0_6] : memref<32x128xi8, #tpu.memory_space<vmem>>, vector<32x128xi8>
    %9 = arith.sitofp %8 : vector<32x128xi8> to vector<32x128xf32>
    %10 = arith.truncf %9 : vector<32x128xf32> to vector<32x128xbf16>
    %c0_7 = arith.constant 0 : index
    %c0_8 = arith.constant 0 : index
    %11 = vector.load %arg6[%c0_7, %c0_8] : memref<128x128xbf16, #tpu.memory_space<vmem>>, vector<128x128xbf16>
    %cst_9 = arith.constant dense<0.000000e+00> : vector<32x128xf32>
    %12 = tpu.matmul %10, %11, %cst_9 {dimension_numbers = #tpu.dot_dimension_numbers<[1], [0], [0], [1], [0, 0, 1, 1], [], []>} : vector<32x128xbf16>, vector<128x128xbf16>, vector<32x128xf32> -> vector<32x128xf32>
    %c0_10 = arith.constant 0 : index
    %c0_11 = arith.constant 0 : index
    %13 = vector.load %arg4[%c0_10, %c0_11] : memref<32x1xf32, #tpu.memory_space<vmem>>, vector<32x1xf32>
    %14 = vector.broadcast %13 : vector<32x1xf32> to vector<32x128xf32>
    %15 = arith.mulf %12, %14 : vector<32x128xf32>
    %16 = arith.truncf %7 : vector<32x128xf32> to vector<32x128xbf16>
    %c0_12 = arith.constant 0 : index
    %c0_13 = arith.constant 0 : index
    %17 = vector.load %arg8[%c0_12, %c0_13] : memref<128x128xbf16, #tpu.memory_space<vmem>>, vector<128x128xbf16>
    %cst_14 = arith.constant dense<0.000000e+00> : vector<32x128xf32>
    %18 = tpu.matmul %16, %17, %cst_14 {dimension_numbers = #tpu.dot_dimension_numbers<[1], [0], [0], [1], [0, 0, 1, 1], [], []>} : vector<32x128xbf16>, vector<128x128xbf16>, vector<32x128xf32> -> vector<32x128xf32>
    %19 = arith.truncf %15 : vector<32x128xf32> to vector<32x128xbf16>
    %c0_15 = arith.constant 0 : index
    %c0_16 = arith.constant 0 : index
    %20 = vector.load %arg9[%c0_15, %c0_16] : memref<128x128xbf16, #tpu.memory_space<vmem>>, vector<128x128xbf16>
    %cst_17 = arith.constant dense<0.000000e+00> : vector<32x128xf32>
    %21 = tpu.matmul %19, %20, %cst_17 {dimension_numbers = #tpu.dot_dimension_numbers<[1], [0], [0], [1], [0, 0, 1, 1], [], []>} : vector<32x128xbf16>, vector<128x128xbf16>, vector<32x128xf32> -> vector<32x128xf32>
    %22 = arith.addf %18, %21 : vector<32x128xf32>
    %c0_18 = arith.constant 0 : index
    %c0_19 = arith.constant 0 : index
    %23 = vector.load %arg7[%c0_18, %c0_19] : memref<32x128xbf16, #tpu.memory_space<vmem>>, vector<32x128xbf16>
    %c0_20 = arith.constant 0 : index
    %c0_21 = arith.constant 0 : index
    %24 = vector.load %arg10[%c0_20, %c0_21] : memref<128x128xbf16, #tpu.memory_space<vmem>>, vector<128x128xbf16>
    %cst_22 = arith.constant dense<0.000000e+00> : vector<32x128xf32>
    %25 = tpu.matmul %23, %24, %cst_22 {dimension_numbers = #tpu.dot_dimension_numbers<[1], [0], [0], [1], [0, 0, 1, 1], [], []>} : vector<32x128xbf16>, vector<128x128xbf16>, vector<32x128xf32> -> vector<32x128xf32>
    %26 = arith.addf %22, %25 : vector<32x128xf32>
    %c0_23 = arith.constant 0 : index
    %c0_24 = arith.constant 0 : index
    %27 = vector.load %arg11[%c0_23, %c0_24] : memref<1x128xf32, #tpu.memory_space<vmem>>, vector<1x128xf32>
    %28 = vector.broadcast %27 : vector<1x128xf32> to vector<32x128xf32>
    %29 = arith.addf %26, %28 : vector<32x128xf32>
    %cst_25 = arith.constant 0.000000e+00 : f32
    %30 = vector.broadcast %cst_25 : f32 to vector<32x128xf32>
    %31 = arith.cmpf ogt, %29, %30 : vector<32x128xf32>
    %cst_26 = arith.constant 0.00999999977 : f32
    %32 = vector.broadcast %cst_26 : f32 to vector<32x128xf32>
    %33 = arith.mulf %32, %29 : vector<32x128xf32>
    %34 = arith.select %31, %29, %33 : vector<32x128xi1>, vector<32x128xf32>
    %35 = arith.truncf %34 : vector<32x128xf32> to vector<32x128xbf16>
    %c0_27 = arith.constant 0 : index
    %c0_28 = arith.constant 0 : index
    %36 = vector.load %arg12[%c0_27, %c0_28] : memref<32x128xbf16, #tpu.memory_space<vmem>>, vector<32x128xbf16>
    tpu.vector_store %arg12[%c0_27, %c0_28], %35 {strides = array<i32>} : memref<32x128xbf16, #tpu.memory_space<vmem>>, vector<32x128xbf16>,
    return
  }
  func.func @transform_0(%arg0: i32) -> (i32, i32) {
    %c0_i32 = arith.constant 0 : i32
    %c0_i32_0 = arith.constant 0 : i32
    return %arg0, %c0_i32 : i32, i32
  }
  func.func @transform_1(%arg0: i32) -> (i32, i32) {
    %c0_i32 = arith.constant 0 : i32
    %c0_i32_0 = arith.constant 0 : i32
    return %arg0, %c0_i32 : i32, i32
  }
  func.func @transform_2(%arg0: i32) -> (i32, i32) {
    %c0_i32 = arith.constant 0 : i32
    %c0_i32_0 = arith.constant 0 : i32
    return %arg0, %c0_i32 : i32, i32
  }
  func.func @transform_3(%arg0: i32) -> (i32, i32) {
    %c0_i32 = arith.constant 0 : i32
    %c0_i32_0 = arith.constant 0 : i32
    return %arg0, %c0_i32 : i32, i32
  }
  func.func @transform_4(%arg0: i32) -> (i32, i32) {
    %c0_i32 = arith.constant 0 : i32
    %c0_i32_0 = arith.constant 0 : i32
    %c0_i32_1 = arith.constant 0 : i32
    return %c0_i32, %c0_i32_0 : i32, i32
  }
  func.func @transform_5(%arg0: i32) -> (i32, i32) {
    %c0_i32 = arith.constant 0 : i32
    %c0_i32_0 = arith.constant 0 : i32
    %c0_i32_1 = arith.constant 0 : i32
    return %c0_i32, %c0_i32_0 : i32, i32
  }
  func.func @transform_6(%arg0: i32) -> (i32, i32) {
    %c0_i32 = arith.constant 0 : i32
    %c0_i32_0 = arith.constant 0 : i32
    return %arg0, %c0_i32 : i32, i32
  }
  func.func @transform_7(%arg0: i32) -> (i32, i32) {
    %c0_i32 = arith.constant 0 : i32
    %c0_i32_0 = arith.constant 0 : i32
    %c0_i32_1 = arith.constant 0 : i32
    return %c0_i32, %c0_i32_0 : i32, i32
  }
  func.func @transform_8(%arg0: i32) -> (i32, i32) {
    %c0_i32 = arith.constant 0 : i32
    %c0_i32_0 = arith.constant 0 : i32
    %c0_i32_1 = arith.constant 0 : i32
    return %c0_i32, %c0_i32_0 : i32, i32
  }
  func.func @transform_9(%arg0: i32) -> (i32, i32) {
    %c0_i32 = arith.constant 0 : i32
    %c0_i32_0 = arith.constant 0 : i32
    %c0_i32_1 = arith.constant 0 : i32
    return %c0_i32, %c0_i32_0 : i32, i32
  }
  func.func @transform_10(%arg0: i32) -> (i32, i32) {
    %c0_i32 = arith.constant 0 : i32
    %c0_i32_0 = arith.constant 0 : i32
    %c0_i32_1 = arith.constant 0 : i32
    return %c0_i32, %c0_i32_0 : i32, i32
  }
  func.func @transform_11(%arg0: i32) -> (i32, i32) {
    %c0_i32 = arith.constant 0 : i32
    %c0_i32_0 = arith.constant 0 : i32
    return %arg0, %c0_i32 : i32, i32
  }
}

module attributes {stable_mosaic.version = 11 : i64} {
  func.func @sage_single_kernel(%arg0: i32, %arg1: memref<32x128xi8, #tpu.memory_space<vmem>>, %arg2: memref<32x1xf32, #tpu.memory_space<vmem>>, %arg3: memref<128x128xbf16, #tpu.memory_space<vmem>>, %arg4: memref<32x128xbf16, #tpu.memory_space<vmem>>, %arg5: memref<128x128xbf16, #tpu.memory_space<vmem>>, %arg6: memref<128x128xbf16, #tpu.memory_space<vmem>>, %arg7: memref<1x128xf32, #tpu.memory_space<vmem>>, %arg8: memref<32x128xbf16, #tpu.memory_space<vmem>>) attributes {dimension_semantics = [#tpu.dimension_semantics<parallel>], iteration_bounds = array<i64: 1>, scalar_prefetch = 0 : i64, scratch_operands = 0 : i64, tpu.core_type = #tpu.core_type<tc>, window_params = [{transform_indices = @transform_0, window_bounds = array<i64: 32, 128>}, {transform_indices = @transform_1, window_bounds = array<i64: 32, 1>}, {pipeline_mode = #tpu.pipeline_mode<synchronous>, transform_indices = @transform_2, window_bounds = array<i64: 128, 128>}, {transform_indices = @transform_3, window_bounds = array<i64: 32, 128>}, {pipeline_mode = #tpu.pipeline_mode<synchronous>, transform_indices = @transform_4, window_bounds = array<i64: 128, 128>}, {pipeline_mode = #tpu.pipeline_mode<synchronous>, transform_indices = @transform_5, window_bounds = array<i64: 128, 128>}, {pipeline_mode = #tpu.pipeline_mode<synchronous>, transform_indices = @transform_6, window_bounds = array<i64: 1, 128>}, {transform_indices = @transform_7, window_bounds = array<i64: 32, 128>}]} {
    %c0 = arith.constant 0 : index
    %c0_0 = arith.constant 0 : index
    %0 = vector.load %arg1[%c0, %c0_0] : memref<32x128xi8, #tpu.memory_space<vmem>>, vector<32x128xi8>
    %1 = arith.sitofp %0 : vector<32x128xi8> to vector<32x128xf32>
    %2 = arith.truncf %1 : vector<32x128xf32> to vector<32x128xbf16>
    %c0_1 = arith.constant 0 : index
    %c0_2 = arith.constant 0 : index
    %3 = vector.load %arg3[%c0_1, %c0_2] : memref<128x128xbf16, #tpu.memory_space<vmem>>, vector<128x128xbf16>
    %cst = arith.constant dense<0.000000e+00> : vector<32x128xf32>
    %4 = tpu.matmul %2, %3, %cst {dimension_numbers = #tpu.dot_dimension_numbers<[1], [0], [0], [1], [0, 0, 1, 1], [], []>} : vector<32x128xbf16>, vector<128x128xbf16>, vector<32x128xf32> -> vector<32x128xf32>
    %c0_3 = arith.constant 0 : index
    %c0_4 = arith.constant 0 : index
    %5 = vector.load %arg2[%c0_3, %c0_4] : memref<32x1xf32, #tpu.memory_space<vmem>>, vector<32x1xf32>
    %6 = vector.broadcast %5 : vector<32x1xf32> to vector<32x128xf32>
    %7 = arith.mulf %4, %6 : vector<32x128xf32>
    %8 = arith.truncf %7 : vector<32x128xf32> to vector<32x128xbf16>
    %c0_5 = arith.constant 0 : index
    %c0_6 = arith.constant 0 : index
    %9 = vector.load %arg5[%c0_5, %c0_6] : memref<128x128xbf16, #tpu.memory_space<vmem>>, vector<128x128xbf16>
    %cst_7 = arith.constant dense<0.000000e+00> : vector<32x128xf32>
    %10 = tpu.matmul %8, %9, %cst_7 {dimension_numbers = #tpu.dot_dimension_numbers<[1], [0], [0], [1], [0, 0, 1, 1], [], []>} : vector<32x128xbf16>, vector<128x128xbf16>, vector<32x128xf32> -> vector<32x128xf32>
    %c0_8 = arith.constant 0 : index
    %c0_9 = arith.constant 0 : index
    %11 = vector.load %arg4[%c0_8, %c0_9] : memref<32x128xbf16, #tpu.memory_space<vmem>>, vector<32x128xbf16>
    %c0_10 = arith.constant 0 : index
    %c0_11 = arith.constant 0 : index
    %12 = vector.load %arg6[%c0_10, %c0_11] : memref<128x128xbf16, #tpu.memory_space<vmem>>, vector<128x128xbf16>
    %cst_12 = arith.constant dense<0.000000e+00> : vector<32x128xf32>
    %13 = tpu.matmul %11, %12, %cst_12 {dimension_numbers = #tpu.dot_dimension_numbers<[1], [0], [0], [1], [0, 0, 1, 1], [], []>} : vector<32x128xbf16>, vector<128x128xbf16>, vector<32x128xf32> -> vector<32x128xf32>
    %14 = arith.addf %10, %13 : vector<32x128xf32>
    %c0_13 = arith.constant 0 : index
    %c0_14 = arith.constant 0 : index
    %15 = vector.load %arg7[%c0_13, %c0_14] : memref<1x128xf32, #tpu.memory_space<vmem>>, vector<1x128xf32>
    %16 = vector.broadcast %15 : vector<1x128xf32> to vector<32x128xf32>
    %17 = arith.addf %14, %16 : vector<32x128xf32>
    %cst_15 = arith.constant 0.000000e+00 : f32
    %18 = vector.broadcast %cst_15 : f32 to vector<32x128xf32>
    %19 = arith.cmpf ogt, %17, %18 : vector<32x128xf32>
    %cst_16 = arith.constant 0.00999999977 : f32
    %20 = vector.broadcast %cst_16 : f32 to vector<32x128xf32>
    %21 = arith.mulf %20, %17 : vector<32x128xf32>
    %22 = arith.select %19, %17, %21 : vector<32x128xi1>, vector<32x128xf32>
    %23 = arith.truncf %22 : vector<32x128xf32> to vector<32x128xbf16>
    %c0_17 = arith.constant 0 : index
    %c0_18 = arith.constant 0 : index
    %24 = vector.load %arg8[%c0_17, %c0_18] : memref<32x128xbf16, #tpu.memory_space<vmem>>, vector<32x128xbf16>
    tpu.vector_store %arg8[%c0_17, %c0_18], %23 {strides = array<i32>} : memref<32x128xbf16, #tpu.memory_space<vmem>>, vector<32x128xbf16>,
    return
  }
  func.func @transform_0(%arg0: i32) -> (i32, i32) {
    %c0_i32 = arith.constant 0 : i32
    %c0_i32_0 = arith.constant 0 : i32
    return %arg0, %c0_i32 : i32, i32
  }
  func.func @transform_1(%arg0: i32) -> (i32, i32) {
    %c0_i32 = arith.constant 0 : i32
    %c0_i32_0 = arith.constant 0 : i32
    return %arg0, %c0_i32 : i32, i32
  }
  func.func @transform_2(%arg0: i32) -> (i32, i32) {
    %c0_i32 = arith.constant 0 : i32
    %c0_i32_0 = arith.constant 0 : i32
    %c0_i32_1 = arith.constant 0 : i32
    return %c0_i32, %c0_i32_0 : i32, i32
  }
  func.func @transform_3(%arg0: i32) -> (i32, i32) {
    %c0_i32 = arith.constant 0 : i32
    %c0_i32_0 = arith.constant 0 : i32
    return %arg0, %c0_i32 : i32, i32
  }
  func.func @transform_4(%arg0: i32) -> (i32, i32) {
    %c0_i32 = arith.constant 0 : i32
    %c0_i32_0 = arith.constant 0 : i32
    %c0_i32_1 = arith.constant 0 : i32
    return %c0_i32, %c0_i32_0 : i32, i32
  }
  func.func @transform_5(%arg0: i32) -> (i32, i32) {
    %c0_i32 = arith.constant 0 : i32
    %c0_i32_0 = arith.constant 0 : i32
    %c0_i32_1 = arith.constant 0 : i32
    return %c0_i32, %c0_i32_0 : i32, i32
  }
  func.func @transform_6(%arg0: i32) -> (i32, i32) {
    %c0_i32 = arith.constant 0 : i32
    %c0_i32_0 = arith.constant 0 : i32
    %c0_i32_1 = arith.constant 0 : i32
    return %c0_i32, %c0_i32_0 : i32, i32
  }
  func.func @transform_7(%arg0: i32) -> (i32, i32) {
    %c0_i32 = arith.constant 0 : i32
    %c0_i32_0 = arith.constant 0 : i32
    return %arg0, %c0_i32 : i32, i32
  }
}

module attributes {stable_mosaic.version = 11 : i64} {
  func.func @mlp_kernel(%arg0: i32, %arg1: memref<16x256xbf16, #tpu.memory_space<vmem>>, %arg2: memref<256x512xbf16, #tpu.memory_space<vmem>>, %arg3: memref<1x512xf32, #tpu.memory_space<vmem>>, %arg4: memref<1x512xf32, #tpu.memory_space<vmem>>, %arg5: memref<1x512xf32, #tpu.memory_space<vmem>>, %arg6: memref<512x256xbf16, #tpu.memory_space<vmem>>, %arg7: memref<1x256xf32, #tpu.memory_space<vmem>>, %arg8: memref<1x256xf32, #tpu.memory_space<vmem>>, %arg9: memref<1x256xf32, #tpu.memory_space<vmem>>, %arg10: memref<256x128xbf16, #tpu.memory_space<vmem>>, %arg11: memref<1x128xf32, #tpu.memory_space<vmem>>, %arg12: memref<16x128xbf16, #tpu.memory_space<vmem>>) attributes {dimension_semantics = [#tpu.dimension_semantics<parallel>], iteration_bounds = array<i64: 2>, scalar_prefetch = 0 : i64, scratch_operands = 0 : i64, tpu.core_type = #tpu.core_type<tc>, window_params = [{transform_indices = @transform_0, window_bounds = array<i64: 16, 256>}, {pipeline_mode = #tpu.pipeline_mode<synchronous>, transform_indices = @transform_1, window_bounds = array<i64: 256, 512>}, {pipeline_mode = #tpu.pipeline_mode<synchronous>, transform_indices = @transform_2, window_bounds = array<i64: 1, 512>}, {pipeline_mode = #tpu.pipeline_mode<synchronous>, transform_indices = @transform_3, window_bounds = array<i64: 1, 512>}, {pipeline_mode = #tpu.pipeline_mode<synchronous>, transform_indices = @transform_4, window_bounds = array<i64: 1, 512>}, {pipeline_mode = #tpu.pipeline_mode<synchronous>, transform_indices = @transform_5, window_bounds = array<i64: 512, 256>}, {pipeline_mode = #tpu.pipeline_mode<synchronous>, transform_indices = @transform_6, window_bounds = array<i64: 1, 256>}, {pipeline_mode = #tpu.pipeline_mode<synchronous>, transform_indices = @transform_7, window_bounds = array<i64: 1, 256>}, {pipeline_mode = #tpu.pipeline_mode<synchronous>, transform_indices = @transform_8, window_bounds = array<i64: 1, 256>}, {pipeline_mode = #tpu.pipeline_mode<synchronous>, transform_indices = @transform_9, window_bounds = array<i64: 256, 128>}, {pipeline_mode = #tpu.pipeline_mode<synchronous>, transform_indices = @transform_10, window_bounds = array<i64: 1, 128>}, {transform_indices = @transform_11, window_bounds = array<i64: 16, 128>}]} {
    %c0 = arith.constant 0 : index
    %c0_0 = arith.constant 0 : index
    %0 = vector.load %arg1[%c0, %c0_0] : memref<16x256xbf16, #tpu.memory_space<vmem>>, vector<16x256xbf16>
    %c0_1 = arith.constant 0 : index
    %c0_2 = arith.constant 0 : index
    %1 = vector.load %arg2[%c0_1, %c0_2] : memref<256x512xbf16, #tpu.memory_space<vmem>>, vector<256x512xbf16>
    %cst = arith.constant dense<0.000000e+00> : vector<16x512xf32>
    %2 = tpu.matmul %0, %1, %cst {dimension_numbers = #tpu.dot_dimension_numbers<[1], [0], [0], [1], [0, 0, 1, 1], [], []>} : vector<16x256xbf16>, vector<256x512xbf16>, vector<16x512xf32> -> vector<16x512xf32>
    %c0_3 = arith.constant 0 : index
    %c0_4 = arith.constant 0 : index
    %3 = vector.load %arg3[%c0_3, %c0_4] : memref<1x512xf32, #tpu.memory_space<vmem>>, vector<1x512xf32>
    %4 = vector.broadcast %3 : vector<1x512xf32> to vector<16x512xf32>
    %5 = arith.addf %2, %4 : vector<16x512xf32>
    %c0_5 = arith.constant 0 : index
    %c0_6 = arith.constant 0 : index
    %6 = vector.load %arg4[%c0_5, %c0_6] : memref<1x512xf32, #tpu.memory_space<vmem>>, vector<1x512xf32>
    %7 = vector.broadcast %6 : vector<1x512xf32> to vector<16x512xf32>
    %8 = arith.mulf %5, %7 : vector<16x512xf32>
    %c0_7 = arith.constant 0 : index
    %c0_8 = arith.constant 0 : index
    %9 = vector.load %arg5[%c0_7, %c0_8] : memref<1x512xf32, #tpu.memory_space<vmem>>, vector<1x512xf32>
    %10 = vector.broadcast %9 : vector<1x512xf32> to vector<16x512xf32>
    %11 = arith.addf %8, %10 : vector<16x512xf32>
    %cst_9 = arith.constant 0.000000e+00 : f32
    %12 = vector.broadcast %cst_9 : f32 to vector<16x512xf32>
    %13 = arith.maximumf %11, %12 : vector<16x512xf32>
    %14 = arith.truncf %13 : vector<16x512xf32> to vector<16x512xbf16>
    %c0_10 = arith.constant 0 : index
    %c0_11 = arith.constant 0 : index
    %15 = vector.load %arg6[%c0_10, %c0_11] : memref<512x256xbf16, #tpu.memory_space<vmem>>, vector<512x256xbf16>
    %cst_12 = arith.constant dense<0.000000e+00> : vector<16x256xf32>
    %16 = tpu.matmul %14, %15, %cst_12 {dimension_numbers = #tpu.dot_dimension_numbers<[1], [0], [0], [1], [0, 0, 1, 1], [], []>} : vector<16x512xbf16>, vector<512x256xbf16>, vector<16x256xf32> -> vector<16x256xf32>
    %c0_13 = arith.constant 0 : index
    %c0_14 = arith.constant 0 : index
    %17 = vector.load %arg7[%c0_13, %c0_14] : memref<1x256xf32, #tpu.memory_space<vmem>>, vector<1x256xf32>
    %18 = vector.broadcast %17 : vector<1x256xf32> to vector<16x256xf32>
    %19 = arith.addf %16, %18 : vector<16x256xf32>
    %c0_15 = arith.constant 0 : index
    %c0_16 = arith.constant 0 : index
    %20 = vector.load %arg8[%c0_15, %c0_16] : memref<1x256xf32, #tpu.memory_space<vmem>>, vector<1x256xf32>
    %21 = vector.broadcast %20 : vector<1x256xf32> to vector<16x256xf32>
    %22 = arith.mulf %19, %21 : vector<16x256xf32>
    %c0_17 = arith.constant 0 : index
    %c0_18 = arith.constant 0 : index
    %23 = vector.load %arg9[%c0_17, %c0_18] : memref<1x256xf32, #tpu.memory_space<vmem>>, vector<1x256xf32>
    %24 = vector.broadcast %23 : vector<1x256xf32> to vector<16x256xf32>
    %25 = arith.addf %22, %24 : vector<16x256xf32>
    %cst_19 = arith.constant 0.000000e+00 : f32
    %26 = vector.broadcast %cst_19 : f32 to vector<16x256xf32>
    %27 = arith.maximumf %25, %26 : vector<16x256xf32>
    %28 = arith.truncf %27 : vector<16x256xf32> to vector<16x256xbf16>
    %c0_20 = arith.constant 0 : index
    %c0_21 = arith.constant 0 : index
    %29 = vector.load %arg10[%c0_20, %c0_21] : memref<256x128xbf16, #tpu.memory_space<vmem>>, vector<256x128xbf16>
    %cst_22 = arith.constant dense<0.000000e+00> : vector<16x128xf32>
    %30 = tpu.matmul %28, %29, %cst_22 {dimension_numbers = #tpu.dot_dimension_numbers<[1], [0], [0], [1], [0, 0, 1, 1], [], []>} : vector<16x256xbf16>, vector<256x128xbf16>, vector<16x128xf32> -> vector<16x128xf32>
    %c0_23 = arith.constant 0 : index
    %c0_24 = arith.constant 0 : index
    %31 = vector.load %arg11[%c0_23, %c0_24] : memref<1x128xf32, #tpu.memory_space<vmem>>, vector<1x128xf32>
    %32 = vector.broadcast %31 : vector<1x128xf32> to vector<16x128xf32>
    %33 = arith.addf %30, %32 : vector<16x128xf32>
    %34 = arith.truncf %33 : vector<16x128xf32> to vector<16x128xbf16>
    %c0_25 = arith.constant 0 : index
    %c0_26 = arith.constant 0 : index
    %35 = vector.load %arg12[%c0_25, %c0_26] : memref<16x128xbf16, #tpu.memory_space<vmem>>, vector<16x128xbf16>
    tpu.vector_store %arg12[%c0_25, %c0_26], %34 {strides = array<i32>} : memref<16x128xbf16, #tpu.memory_space<vmem>>, vector<16x128xbf16>,
    return
  }
  func.func @transform_0(%arg0: i32) -> (i32, i32) {
    %c0_i32 = arith.constant 0 : i32
    %c0_i32_0 = arith.constant 0 : i32
    return %arg0, %c0_i32 : i32, i32
  }
  func.func @transform_1(%arg0: i32) -> (i32, i32) {
    %c0_i32 = arith.constant 0 : i32
    %c0_i32_0 = arith.constant 0 : i32
    %c0_i32_1 = arith.constant 0 : i32
    return %c0_i32, %c0_i32_0 : i32, i32
  }
  func.func @transform_2(%arg0: i32) -> (i32, i32) {
    %c0_i32 = arith.constant 0 : i32
    %c0_i32_0 = arith.constant 0 : i32
    %c0_i32_1 = arith.constant 0 : i32
    return %c0_i32, %c0_i32_0 : i32, i32
  }
  func.func @transform_3(%arg0: i32) -> (i32, i32) {
    %c0_i32 = arith.constant 0 : i32
    %c0_i32_0 = arith.constant 0 : i32
    %c0_i32_1 = arith.constant 0 : i32
    return %c0_i32, %c0_i32_0 : i32, i32
  }
  func.func @transform_4(%arg0: i32) -> (i32, i32) {
    %c0_i32 = arith.constant 0 : i32
    %c0_i32_0 = arith.constant 0 : i32
    %c0_i32_1 = arith.constant 0 : i32
    return %c0_i32, %c0_i32_0 : i32, i32
  }
  func.func @transform_5(%arg0: i32) -> (i32, i32) {
    %c0_i32 = arith.constant 0 : i32
    %c0_i32_0 = arith.constant 0 : i32
    %c0_i32_1 = arith.constant 0 : i32
    return %c0_i32, %c0_i32_0 : i32, i32
  }
  func.func @transform_6(%arg0: i32) -> (i32, i32) {
    %c0_i32 = arith.constant 0 : i32
    %c0_i32_0 = arith.constant 0 : i32
    %c0_i32_1 = arith.constant 0 : i32
    return %c0_i32, %c0_i32_0 : i32, i32
  }
  func.func @transform_7(%arg0: i32) -> (i32, i32) {
    %c0_i32 = arith.constant 0 : i32
    %c0_i32_0 = arith.constant 0 : i32
    %c0_i32_1 = arith.constant 0 : i32
    return %c0_i32, %c0_i32_0 : i32, i32
  }
  func.func @transform_8(%arg0: i32) -> (i32, i32) {
    %c0_i32 = arith.constant 0 : i32
    %c0_i32_0 = arith.constant 0 : i32
    %c0_i32_1 = arith.constant 0 : i32
    return %c0_i32, %c0_i32_0 : i32, i32
  }
  func.func @transform_9(%arg0: i32) -> (i32, i32) {
    %c0_i32 = arith.constant 0 : i32
    %c0_i32_0 = arith.constant 0 : i32
    %c0_i32_1 = arith.constant 0 : i32
    return %c0_i32, %c0_i32_0 : i32, i32
  }
  func.func @transform_10(%arg0: i32) -> (i32, i32) {
    %c0_i32 = arith.constant 0 : i32
    %c0_i32_0 = arith.constant 0 : i32
    %c0_i32_1 = arith.constant 0 : i32
    return %c0_i32, %c0_i32_0 : i32, i32
  }
  func.func @transform_11(%arg0: i32) -> (i32, i32) {
    %c0_i32 = arith.constant 0 : i32
    %c0_i32_0 = arith.constant 0 : i32
    return %arg0, %c0_i32 : i32, i32
  }
}

</mosaic_0001>

<llo_original>
// kernel: hetero_tcr_forward.12
$region0: #{hetero_tcr_forward.12}
  #allocation0 [shape = 'u32[]', space=smem, size = 0x4, offset = 0x4, fixed_abs, tag = 'smem constant byte address 0x4 - core index']
  #allocation1 [shape = 'u32[72,128]{1,0:T(1,128)}', space=vmem, size = 0x9000, scoped, tag = 'internal scratch']
  %s0 = inlined_call_operand.vmem [shape: s8[32,128], index: 0, kind: input, shape index: {}]
  %s1 = inlined_call_operand.vmem [shape: f32[32,1], index: 1, kind: input, shape index: {}]
  %s2 = inlined_call_operand.vmem [shape: s8[32,128], index: 2, kind: input, shape index: {}]
  %s3 = inlined_call_operand.vmem [shape: f32[32,1], index: 3, kind: input, shape index: {}]
  %s4 = inlined_call_operand.vmem [shape: bf16[128,64], index: 4, kind: input, shape index: {}]
  %s5 = inlined_call_operand.vmem [shape: bf16[128,64], index: 5, kind: input, shape index: {}]
  %s6 = inlined_call_operand.vmem [shape: bf16[32,64], index: 6, kind: input, shape index: {}]
  %s7 = inlined_call_operand.vmem [shape: bf16[64,128], index: 7, kind: input, shape index: {}]
  %s8 = inlined_call_operand.vmem [shape: bf16[64,128], index: 8, kind: input, shape index: {}]
  %s9 = inlined_call_operand.vmem [shape: bf16[64,128], index: 9, kind: input, shape index: {}]
  %s10 = inlined_call_operand.vmem [shape: f32[1,128], index: 10, kind: input, shape index: {}]
  %s11 = inlined_call_operand.vmem [shape: bf16[32,128], index: 11, kind: output, shape index: {}]
  %s12 = sld [smem:[#allocation0]]
  $region54: #{hetero_tcr_forward.12} parent=0
    _
  %s14 = ssub.s32 1, %s12
  %s15 = scalar_select 0, %s14, %s12
  // Predicated region
  $region2: #{hetero_tcr_forward.12} parent=0 // pred_check
    _
  $region3: #{hetero_tcr_forward.12} parent=0 // pred_check_branch
    %17 = sbr.rel (0) target = $region5
  $region4: #{hetero_tcr_forward.12} parent=0 // pred_region
    _
  $region5: #{hetero_tcr_forward.12} parent=0 // pred_fallthru
    _
  // Predicated region
  $region6: #{hetero_tcr_forward.12} parent=0 // pred_check
    _
  $region7: #{hetero_tcr_forward.12} parent=0 // pred_check_branch
    %19 = sbr.rel (0) target = $region9
  $region8: #{hetero_tcr_forward.12} parent=0 // pred_region
    _
  $region9: #{hetero_tcr_forward.12} parent=0 // pred_fallthru
    _
  // Predicated region
  $region10: #{hetero_tcr_forward.12} parent=0 // pred_check
    _
  $region11: #{hetero_tcr_forward.12} parent=0 // pred_check_branch
    %21 = sbr.rel (0) target = $region13
  $region12: #{hetero_tcr_forward.12} parent=0 // pred_region
    _
  $region13: #{hetero_tcr_forward.12} parent=0 // pred_fallthru
    _
  // Predicated region
  $region14: #{hetero_tcr_forward.12} parent=0 // pred_check
    _
  $region15: #{hetero_tcr_forward.12} parent=0 // pred_check_branch
    %23 = sbr.rel (0) target = $region17
  $region16: #{hetero_tcr_forward.12} parent=0 // pred_region
    _
  $region17: #{hetero_tcr_forward.12} parent=0 // pred_fallthru
    _
  // Predicated region
  $region18: #{hetero_tcr_forward.12} parent=0 // pred_check
    _
  $region19: #{hetero_tcr_forward.12} parent=0 // pred_check_branch
    %25 = sbr.rel (0) target = $region21
  $region20: #{hetero_tcr_forward.12} parent=0 // pred_region
    _
  $region21: #{hetero_tcr_forward.12} parent=0 // pred_fallthru
    _
  // Predicated region
  $region22: #{hetero_tcr_forward.12} parent=0 // pred_check
    _
  $region23: #{hetero_tcr_forward.12} parent=0 // pred_check_branch
    %27 = sbr.rel (0) target = $region25
  $region24: #{hetero_tcr_forward.12} parent=0 // pred_region
    _
  $region25: #{hetero_tcr_forward.12} parent=0 // pred_fallthru
    _
  // Predicated region
  $region26: #{hetero_tcr_forward.12} parent=0 // pred_check
    _
  $region27: #{hetero_tcr_forward.12} parent=0 // pred_check_branch
    %29 = sbr.rel (0) target = $region29
  $region28: #{hetero_tcr_forward.12} parent=0 // pred_region
    _
  $region29: #{hetero_tcr_forward.12} parent=0 // pred_fallthru
    _
  // Predicated region
  $region30: #{hetero_tcr_forward.12} parent=0 // pred_check
    _
  $region31: #{hetero_tcr_forward.12} parent=0 // pred_check_branch
    %31 = sbr.rel (0) target = $region33
  $region32: #{hetero_tcr_forward.12} parent=0 // pred_region
    _
  $region33: #{hetero_tcr_forward.12} parent=0 // pred_fallthru
    _
  // Predicated region
  $region34: #{hetero_tcr_forward.12} parent=0 // pred_check
    _
  $region35: #{hetero_tcr_forward.12} parent=0 // pred_check_branch
    %33 = sbr.rel (0) target = $region37
  $region36: #{hetero_tcr_forward.12} parent=0 // pred_region
    _
  $region37: #{hetero_tcr_forward.12} parent=0 // pred_fallthru
    _
  // Predicated region
  $region38: #{hetero_tcr_forward.12} parent=0 // pred_check
    _
  $region39: #{hetero_tcr_forward.12} parent=0 // pred_check_branch
    %35 = sbr.rel (0) target = $region41
  $region40: #{hetero_tcr_forward.12} parent=0 // pred_region
    _
  $region41: #{hetero_tcr_forward.12} parent=0 // pred_fallthru
    _
  // Predicated region
  $region42: #{hetero_tcr_forward.12} parent=0 // pred_check
    _
  $region43: #{hetero_tcr_forward.12} parent=0 // pred_check_branch
    %37 = sbr.rel (0) target = $region45
  $region44: #{hetero_tcr_forward.12} parent=0 // pred_region
    _
  $region45: #{hetero_tcr_forward.12} parent=0 // pred_fallthru
    _
  %v39 = vld [vmem:[%s0] sm:$0xff]
  %v40 = vunpack.c.0.s8 %v39
  %v41 = vunpack.c.1.s8 %v39
  %v42 = vunpack.c.2.s8 %v39
  %v43 = vunpack.c.3.s8 %v39
  %v44 = vcvt.s32.f32 %v40
  %v45 = vcvt.s32.f32 %v41
  %v46 = vcvt.s32.f32 %v42
  %v47 = vcvt.s32.f32 %v43
  %v48 = vpack.c.bf16 %v45, %v44
  %v49 = vpack.c.bf16 %v47, %v46
  %v50 = vld [vmem:[%s4] sm:$0xf]
  %v51 = vld [vmem:[%s4 + $0x4] sm:$0xf]
  %v52 = vld [vmem:[%s4 + $0x8] sm:$0xf]
  %v53 = vld [vmem:[%s4 + $0xc] sm:$0xf]
  %v54 = vld [vmem:[%s4 + $0x10] sm:$0xf]
  %v55 = vld [vmem:[%s4 + $0x14] sm:$0xf]
  %v56 = vld [vmem:[%s4 + $0x18] sm:$0xf]
  %v57 = vld [vmem:[%s4 + $0x1c] sm:$0xf]
  %v58 = vld [vmem:[%s4 + $0x20] sm:$0xf]
  %v59 = vld [vmem:[%s4 + $0x24] sm:$0xf]
  %v60 = vld [vmem:[%s4 + $0x28] sm:$0xf]
  %v61 = vld [vmem:[%s4 + $0x2c] sm:$0xf]
  %v62 = vld [vmem:[%s4 + $0x30] sm:$0xf]
  %v63 = vld [vmem:[%s4 + $0x34] sm:$0xf]
  %v64 = vld [vmem:[%s4 + $0x38] sm:$0xf]
  %v65 = vld [vmem:[%s4 + $0x3c] sm:$0xf]
  %v82 = vunpack.c.l.b16 %v50
  %v83 = vunpack.c.l.b16 %v51
  %v84 = vunpack.c.l.b16 %v52
  %v85 = vunpack.c.l.b16 %v53
  %v86 = vunpack.c.l.b16 %v54
  %v87 = vunpack.c.l.b16 %v55
  %v88 = vunpack.c.l.b16 %v56
  %v89 = vunpack.c.l.b16 %v57
  %v90 = vunpack.c.l.b16 %v58
  %v91 = vunpack.c.l.b16 %v59
  %v92 = vunpack.c.l.b16 %v60
  %v93 = vunpack.c.l.b16 %v61
  %v94 = vunpack.c.l.b16 %v62
  %v95 = vunpack.c.l.b16 %v63
  %v96 = vunpack.c.l.b16 %v64
  %v97 = vunpack.c.l.b16 %v65
  %v98 = vpack.c.b16 %v83, %v82
  %v99 = vpack.c.b16 %v85, %v84
  %v100 = vpack.c.b16 %v87, %v86
  %v101 = vpack.c.b16 %v89, %v88
  %v102 = vpack.c.b16 %v91, %v90
  %v103 = vpack.c.b16 %v93, %v92
  %v104 = vpack.c.b16 %v95, %v94
  %v105 = vpack.c.b16 %v97, %v96
  %114 = vmatpush.bf16.msra.mxu0 %v105
  %115 = vmatpush.bf16.msra.mxu0 %v104
  %116 = vmatpush.bf16.msra.mxu0 %v103
  %117 = vmatpush.bf16.msra.mxu0 %v102
  %118 = vmatpush.bf16.msra.mxu0 %v101
  %119 = vmatpush.bf16.msra.mxu0 %v100
  %120 = vmatpush.bf16.msra.mxu0 %v99
  %121 = vmatpush.bf16.msra.mxu0 %v98
  %122 = vmatmul.bf16.gmra.mxu0 %v48
  %v123 = vpop.f32.mrf.mxu0
  %v124 = vadd.f32 0.0, %v123
  %v125 = vpop.f32.mrf.mxu0
  %v126 = vadd.f32 0.0, %v125
  %127 = vmatmul.bf16.gmra.mxu0 %v49
  %v128 = vpop.f32.mrf.mxu0
  %v129 = vadd.f32 0.0, %v128
  %v130 = vpop.f32.mrf.mxu0
  %v131 = vadd.f32 0.0, %v130
  %132 = vdwg.mxu0
  %v133 = vld [vmem:[%s1] sm:$0xff]
  %v134 = vld [vmem:[%s1 + $0x8] sm:$0xff]
  %v135 = vld [vmem:[%s1 + $0x10] sm:$0xff]
  %v136 = vld [vmem:[%s1 + $0x18] sm:$0xff]
  %138 = vset.pattern.permute.xlu0 0
  %139 = vperm.xlu0 %138, %v133
  %v140 = vpop.permute.xlu0 %139
  %143 = vset.pattern.permute.xlu0 0
  %144 = vperm.xlu0 %143, %v134
  %v145 = vpop.permute.xlu0 %144
  %148 = vset.pattern.permute.xlu0 0
  %149 = vperm.xlu0 %148, %v135
  %v150 = vpop.permute.xlu0 %149
  %153 = vset.pattern.permute.xlu0 0
  %154 = vperm.xlu0 %153, %v136
  %v155 = vpop.permute.xlu0 %154
  %v157 = vmul.f32 %v124, %v140
  %v158 = vmul.f32 %v126, %v145
  %v159 = vmul.f32 %v129, %v150
  %v160 = vmul.f32 %v131, %v155
  %v161 = vld [vmem:[%s2] sm:$0xff]
  %v162 = vunpack.c.0.s8 %v161
  %v163 = vunpack.c.1.s8 %v161
  %v164 = vunpack.c.2.s8 %v161
  %v165 = vunpack.c.3.s8 %v161
  %v166 = vcvt.s32.f32 %v162
  %v167 = vcvt.s32.f32 %v163
  %v168 = vcvt.s32.f32 %v164
  %v169 = vcvt.s32.f32 %v165
  %v170 = vpack.c.bf16 %v167, %v166
  %v171 = vpack.c.bf16 %v169, %v168
  %v172 = vld [vmem:[%s5] sm:$0xf]
  %v173 = vld [vmem:[%s5 + $0x4] sm:$0xf]
  %v174 = vld [vmem:[%s5 + $0x8] sm:$0xf]
  %v175 = vld [vmem:[%s5 + $0xc] sm:$0xf]
  %v176 = vld [vmem:[%s5 + $0x10] sm:$0xf]
  %v177 = vld [vmem:[%s5 + $0x14] sm:$0xf]
  %v178 = vld [vmem:[%s5 + $0x18] sm:$0xf]
  %v179 = vld [vmem:[%s5 + $0x1c] sm:$0xf]
  %v180 = vld [vmem:[%s5 + $0x20] sm:$0xf]
  %v181 = vld [vmem:[%s5 + $0x24] sm:$0xf]
  %v182 = vld [vmem:[%s5 + $0x28] sm:$0xf]
  %v183 = vld [vmem:[%s5 + $0x2c] sm:$0xf]
  %v184 = vld [vmem:[%s5 + $0x30] sm:$0xf]
  %v185 = vld [vmem:[%s5 + $0x34] sm:$0xf]
  %v186 = vld [vmem:[%s5 + $0x38] sm:$0xf]
  %v187 = vld [vmem:[%s5 + $0x3c] sm:$0xf]
  %v204 = vunpack.c.l.b16 %v172
  %v205 = vunpack.c.l.b16 %v173
  %v206 = vunpack.c.l.b16 %v174
  %v207 = vunpack.c.l.b16 %v175
  %v208 = vunpack.c.l.b16 %v176
  %v209 = vunpack.c.l.b16 %v177
  %v210 = vunpack.c.l.b16 %v178
  %v211 = vunpack.c.l.b16 %v179
  %v212 = vunpack.c.l.b16 %v180
  %v213 = vunpack.c.l.b16 %v181
  %v214 = vunpack.c.l.b16 %v182
  %v215 = vunpack.c.l.b16 %v183
  %v216 = vunpack.c.l.b16 %v184
  %v217 = vunpack.c.l.b16 %v185
  %v218 = vunpack.c.l.b16 %v186
  %v219 = vunpack.c.l.b16 %v187
  %v220 = vpack.c.b16 %v205, %v204
  %v221 = vpack.c.b16 %v207, %v206
  %v222 = vpack.c.b16 %v209, %v208
  %v223 = vpack.c.b16 %v211, %v210
  %v224 = vpack.c.b16 %v213, %v212
  %v225 = vpack.c.b16 %v215, %v214
  %v226 = vpack.c.b16 %v217, %v216
  %v227 = vpack.c.b16 %v219, %v218
  %236 = vmatpush.bf16.msra.mxu0 %v227
  %237 = vmatpush.bf16.msra.mxu0 %v226
  %238 = vmatpush.bf16.msra.mxu0 %v225
  %239 = vmatpush.bf16.msra.mxu0 %v224
  %240 = vmatpush.bf16.msra.mxu0 %v223
  %241 = vmatpush.bf16.msra.mxu0 %v222
  %242 = vmatpush.bf16.msra.mxu0 %v221
  %243 = vmatpush.bf16.msra.mxu0 %v220
  %244 = vmatmul.bf16.gmra.mxu0 %v170
  %v245 = vpop.f32.mrf.mxu0
  %v246 = vadd.f32 0.0, %v245
  %v247 = vpop.f32.mrf.mxu0
  %v248 = vadd.f32 0.0, %v247
  %249 = vmatmul.bf16.gmra.mxu0 %v171
  %v250 = vpop.f32.mrf.mxu0
  %v251 = vadd.f32 0.0, %v250
  %v252 = vpop.f32.mrf.mxu0
  %v253 = vadd.f32 0.0, %v252
  %254 = vdwg.mxu0
  %v255 = vld [vmem:[%s3] sm:$0xff]
  %v256 = vld [vmem:[%s3 + $0x8] sm:$0xff]
  %v257 = vld [vmem:[%s3 + $0x10] sm:$0xff]
  %v258 = vld [vmem:[%s3 + $0x18] sm:$0xff]
  %260 = vset.pattern.permute.xlu0 0
  %261 = vperm.xlu0 %260, %v255
  %v262 = vpop.permute.xlu0 %261
  %265 = vset.pattern.permute.xlu0 0
  %266 = vperm.xlu0 %265, %v256
  %v267 = vpop.permute.xlu0 %266
  %270 = vset.pattern.permute.xlu0 0
  %271 = vperm.xlu0 %270, %v257
  %v272 = vpop.permute.xlu0 %271
  %275 = vset.pattern.permute.xlu0 0
  %276 = vperm.xlu0 %275, %v258
  %v277 = vpop.permute.xlu0 %276
  %v279 = vmul.f32 %v246, %v262
  %v280 = vmul.f32 %v248, %v267
  %v281 = vmul.f32 %v251, %v272
  %v282 = vmul.f32 %v253, %v277
  %v283 = vpack.c.bf16 %v158, %v157
  %v284 = vpack.c.bf16 %v160, %v159
  %v285 = vld [vmem:[%s7] sm:$0xf]
  %v286 = vld [vmem:[%s7 + $0x4] sm:$0xf]
  %v287 = vld [vmem:[%s7 + $0x8] sm:$0xf]
  %v288 = vld [vmem:[%s7 + $0xc] sm:$0xf]
  %v289 = vld [vmem:[%s7 + $0x10] sm:$0xf]
  %v290 = vld [vmem:[%s7 + $0x14] sm:$0xf]
  %v291 = vld [vmem:[%s7 + $0x18] sm:$0xf]
  %v292 = vld [vmem:[%s7 + $0x1c] sm:$0xf]
  %v293 = vpack.c.bf16 %v280, %v279
  %v294 = vpack.c.bf16 %v282, %v281
  %v295 = vld [vmem:[%s8] sm:$0xf]
  %v296 = vld [vmem:[%s8 + $0x4] sm:$0xf]
  %v297 = vld [vmem:[%s8 + $0x8] sm:$0xf]
  %v298 = vld [vmem:[%s8 + $0xc] sm:$0xf]
  %v299 = vld [vmem:[%s8 + $0x10] sm:$0xf]
  %v300 = vld [vmem:[%s8 + $0x14] sm:$0xf]
  %v301 = vld [vmem:[%s8 + $0x18] sm:$0xf]
  %v302 = vld [vmem:[%s8 + $0x1c] sm:$0xf]
  %v311 = vunpack.c.l.b16 %v295
  %v312 = vunpack.c.l.b16 %v296
  %v313 = vunpack.c.l.b16 %v297
  %v314 = vunpack.c.l.b16 %v298
  %v315 = vunpack.c.l.b16 %v299
  %v316 = vunpack.c.l.b16 %v300
  %v317 = vunpack.c.l.b16 %v301
  %v318 = vunpack.c.l.b16 %v302
  %v319 = vpack.c.b16 %v312, %v311
  %v320 = vpack.c.b16 %v314, %v313
  %v321 = vpack.c.b16 %v316, %v315
  %v322 = vpack.c.b16 %v318, %v317
  %vm327 = vcmask 523264
  %v329 = vsel %vm327, %v293, 0
  %v332 = vsel %vm327, %v294, 0
  %334 = vmatpush.bf16.msra.mxu0 0
  %335 = vmatpush.bf16.msra.mxu0 0
  %336 = vmatpush.bf16.msra.mxu0 0
  %337 = vmatpush.bf16.msra.mxu0 0
  %338 = vmatpush.bf16.msra.mxu0 %v322
  %339 = vmatpush.bf16.msra.mxu0 %v321
  %340 = vmatpush.bf16.msra.mxu0 %v320
  %341 = vmatpush.bf16.msra.mxu0 %v319
  %342 = vmatmul.bf16.gmra.mxu0 %v329
  %v343 = vpop.f32.mrf.mxu0
  %v344 = vadd.f32 0.0, %v343
  %v345 = vpop.f32.mrf.mxu0
  %v346 = vadd.f32 0.0, %v345
  %347 = vmatmul.bf16.gmra.mxu0 %v332
  %v348 = vpop.f32.mrf.mxu0
  %v349 = vadd.f32 0.0, %v348
  %v350 = vpop.f32.mrf.mxu0
  %v351 = vadd.f32 0.0, %v350
  %352 = vdwg.mxu0
  %v361 = vunpack.c.l.b16 %v285
  %v362 = vunpack.c.l.b16 %v286
  %v363 = vunpack.c.l.b16 %v287
  %v364 = vunpack.c.l.b16 %v288
  %v365 = vunpack.c.l.b16 %v289
  %v366 = vunpack.c.l.b16 %v290
  %v367 = vunpack.c.l.b16 %v291
  %v368 = vunpack.c.l.b16 %v292
  %v369 = vpack.c.b16 %v362, %v361
  %v370 = vpack.c.b16 %v364, %v363
  %v371 = vpack.c.b16 %v366, %v365
  %v372 = vpack.c.b16 %v368, %v367
  %v378 = vsel %vm327, %v283, 0
  %v381 = vsel %vm327, %v284, 0
  %383 = vmatpush.bf16.msra.mxu0 0
  %384 = vmatpush.bf16.msra.mxu0 0
  %385 = vmatpush.bf16.msra.mxu0 0
  %386 = vmatpush.bf16.msra.mxu0 0
  %387 = vmatpush.bf16.msra.mxu0 %v372
  %388 = vmatpush.bf16.msra.mxu0 %v371
  %389 = vmatpush.bf16.msra.mxu0 %v370
  %390 = vmatpush.bf16.msra.mxu0 %v369
  %391 = vmatmul.bf16.gmra.mxu0 %v378
  %v392 = vpop.f32.mrf.mxu0
  %v393 = vadd.f32 %v344, %v392
  %v394 = vpop.f32.mrf.mxu0
  %v395 = vadd.f32 %v346, %v394
  %396 = vmatmul.bf16.gmra.mxu0 %v381
  %v397 = vpop.f32.mrf.mxu0
  %v398 = vadd.f32 %v349, %v397
  %v399 = vpop.f32.mrf.mxu0
  %v400 = vadd.f32 %v351, %v399
  %401 = vdwg.mxu0
  %v402 = vld [vmem:[%s6] sm:$0xf]
  %v403 = vld [vmem:[%s6 + $0x4] sm:$0xf]
  %v404 = vld [vmem:[%s6 + $0x8] sm:$0xf]
  %v405 = vld [vmem:[%s6 + $0xc] sm:$0xf]
  %v406 = vld [vmem:[%s9] sm:$0xf]
  %v407 = vld [vmem:[%s9 + $0x4] sm:$0xf]
  %v408 = vld [vmem:[%s9 + $0x8] sm:$0xf]
  %v409 = vld [vmem:[%s9 + $0xc] sm:$0xf]
  %v410 = vld [vmem:[%s9 + $0x10] sm:$0xf]
  %v411 = vld [vmem:[%s9 + $0x14] sm:$0xf]
  %v412 = vld [vmem:[%s9 + $0x18] sm:$0xf]
  %v413 = vld [vmem:[%s9 + $0x1c] sm:$0xf]
  %v418 = vunpack.c.l.b16 %v402
  %v419 = vunpack.c.l.b16 %v403
  %v420 = vunpack.c.l.b16 %v404
  %v421 = vunpack.c.l.b16 %v405
  %v422 = vpack.c.b16 %v419, %v418
  %v423 = vpack.c.b16 %v421, %v420
  %v432 = vunpack.c.l.b16 %v406
  %v433 = vunpack.c.l.b16 %v407
  %v434 = vunpack.c.l.b16 %v408
  %v435 = vunpack.c.l.b16 %v409
  %v436 = vunpack.c.l.b16 %v410
  %v437 = vunpack.c.l.b16 %v411
  %v438 = vunpack.c.l.b16 %v412
  %v439 = vunpack.c.l.b16 %v413
  %v440 = vpack.c.b16 %v433, %v432
  %v441 = vpack.c.b16 %v435, %v434
  %v442 = vpack.c.b16 %v437, %v436
  %v443 = vpack.c.b16 %v439, %v438
  %v449 = vsel %vm327, %v422, 0
  %v452 = vsel %vm327, %v423, 0
  %454 = vmatpush.bf16.msra.mxu0 0
  %455 = vmatpush.bf16.msra.mxu0 0
  %456 = vmatpush.bf16.msra.mxu0 0
  %457 = vmatpush.bf16.msra.mxu0 0
  %458 = vmatpush.bf16.msra.mxu0 %v443
  %459 = vmatpush.bf16.msra.mxu0 %v442
  %460 = vmatpush.bf16.msra.mxu0 %v441
  %461 = vmatpush.bf16.msra.mxu0 %v440
  %462 = vmatmul.bf16.gmra.mxu0 %v449
  %v463 = vpop.f32.mrf.mxu0
  %v464 = vadd.f32 0.0, %v463
  %v465 = vpop.f32.mrf.mxu0
  %v466 = vadd.f32 0.0, %v465
  %467 = vmatmul.bf16.gmra.mxu0 %v452
  %v468 = vpop.f32.mrf.mxu0
  %v469 = vadd.f32 0.0, %v468
  %v470 = vpop.f32.mrf.mxu0
  %v471 = vadd.f32 0.0, %v470
  %472 = vdwg.mxu0
  %v473 = vadd.f32 %v393, %v464
  %v474 = vadd.f32 %v395, %v466
  %v475 = vadd.f32 %v398, %v469
  %v476 = vadd.f32 %v400, %v471
  %v477 = vld [vmem:[%s10] sm:$0x1]
  %v479 = vperm.slane %v477, 0
  %v481 = vadd.f32 %v473, %v479
  %v482 = vadd.f32 %v474, %v479
  %v483 = vadd.f32 %v475, %v479
  %v484 = vadd.f32 %v476, %v479
  %vm485 = vcmp.gt.f32.partialorder %v481, 0.0
  %vm486 = vcmp.gt.f32.partialorder %v482, 0.0
  %vm487 = vcmp.gt.f32.partialorder %v483, 0.0
  %vm488 = vcmp.gt.f32.partialorder %v484, 0.0
  %v489 = vmul.f32 %v481, 0.01
  %v490 = vmul.f32 %v482, 0.01
  %v491 = vmul.f32 %v483, 0.01
  %v492 = vmul.f32 %v484, 0.01
  %v493 = vsel %vm485, %v481, %v489
  %v494 = vsel %vm486, %v482, %v490
  %v495 = vsel %vm487, %v483, %v491
  %v496 = vsel %vm488, %v484, %v492
  %v497 = vpack.c.bf16 %v493, %v493
  %v498 = vpack.c.bf16 %v494, %v494
  %v499 = vpack.c.bf16 %v495, %v495
  %v500 = vpack.c.bf16 %v496, %v496
  %501 = vst [vmem:[%s11] sm:$0xf] %v497
  %502 = vst [vmem:[%s11 + $0x4] sm:$0xf] %v498
  %503 = vst [vmem:[%s11 + $0x8] sm:$0xf] %v499
  %504 = vst [vmem:[%s11 + $0xc] sm:$0xf] %v500
  // Predicated region
  $region46: #{hetero_tcr_forward.12} parent=0 // pred_check
    _
  $region47: #{hetero_tcr_forward.12} parent=0 // pred_check_branch
    %506 = sbr.rel (0) target = $region49
  $region48: #{hetero_tcr_forward.12} parent=0 // pred_region
    _
  $region49: #{hetero_tcr_forward.12} parent=0 // pred_fallthru
    _
  // Predicated region
  $region50: #{hetero_tcr_forward.12} parent=0 // pred_check
    _
  $region51: #{hetero_tcr_forward.12} parent=0 // pred_check_branch
    %508 = sbr.rel (0) target = $region53
  $region52: #{hetero_tcr_forward.12} parent=0 // pred_region
    _
  $region53: #{hetero_tcr_forward.12} parent=0 // pred_fallthru
    _

// kernel: hetero_tcr_forward.13
$region0: #{hetero_tcr_forward.13}
  #allocation0 [shape = 'u32[]', space=smem, size = 0x4, offset = 0x4, fixed_abs, tag = 'smem constant byte address 0x4 - core index']
  #allocation1 [shape = 'u32[72,128]{1,0:T(1,128)}', space=vmem, size = 0x9000, scoped, tag = 'internal scratch']
  %s0 = inlined_call_operand.vmem [shape: s8[32,128], index: 0, kind: input, shape index: {}]
  %s1 = inlined_call_operand.vmem [shape: f32[32,1], index: 1, kind: input, shape index: {}]
  %s2 = inlined_call_operand.vmem [shape: bf16[128,128], index: 2, kind: input, shape index: {}]
  %s3 = inlined_call_operand.vmem [shape: bf16[32,128], index: 3, kind: input, shape index: {}]
  %s4 = inlined_call_operand.vmem [shape: bf16[128,128], index: 4, kind: input, shape index: {}]
  %s5 = inlined_call_operand.vmem [shape: bf16[128,128], index: 5, kind: input, shape index: {}]
  %s6 = inlined_call_operand.vmem [shape: f32[1,128], index: 6, kind: input, shape index: {}]
  %s7 = inlined_call_operand.vmem [shape: bf16[32,128], index: 7, kind: output, shape index: {}]
  %s8 = sld [smem:[#allocation0]]
  $region38: #{hetero_tcr_forward.13} parent=0
    _
  %s10 = ssub.s32 1, %s8
  %s11 = scalar_select 0, %s10, %s8
  // Predicated region
  $region2: #{hetero_tcr_forward.13} parent=0 // pred_check
    _
  $region3: #{hetero_tcr_forward.13} parent=0 // pred_check_branch
    %13 = sbr.rel (0) target = $region5
  $region4: #{hetero_tcr_forward.13} parent=0 // pred_region
    _
  $region5: #{hetero_tcr_forward.13} parent=0 // pred_fallthru
    _
  // Predicated region
  $region6: #{hetero_tcr_forward.13} parent=0 // pred_check
    _
  $region7: #{hetero_tcr_forward.13} parent=0 // pred_check_branch
    %15 = sbr.rel (0) target = $region9
  $region8: #{hetero_tcr_forward.13} parent=0 // pred_region
    _
  $region9: #{hetero_tcr_forward.13} parent=0 // pred_fallthru
    _
  // Predicated region
  $region10: #{hetero_tcr_forward.13} parent=0 // pred_check
    _
  $region11: #{hetero_tcr_forward.13} parent=0 // pred_check_branch
    %17 = sbr.rel (0) target = $region13
  $region12: #{hetero_tcr_forward.13} parent=0 // pred_region
    _
  $region13: #{hetero_tcr_forward.13} parent=0 // pred_fallthru
    _
  // Predicated region
  $region14: #{hetero_tcr_forward.13} parent=0 // pred_check
    _
  $region15: #{hetero_tcr_forward.13} parent=0 // pred_check_branch
    %19 = sbr.rel (0) target = $region17
  $region16: #{hetero_tcr_forward.13} parent=0 // pred_region
    _
  $region17: #{hetero_tcr_forward.13} parent=0 // pred_fallthru
    _
  // Predicated region
  $region18: #{hetero_tcr_forward.13} parent=0 // pred_check
    _
  $region19: #{hetero_tcr_forward.13} parent=0 // pred_check_branch
    %21 = sbr.rel (0) target = $region21
  $region20: #{hetero_tcr_forward.13} parent=0 // pred_region
    _
  $region21: #{hetero_tcr_forward.13} parent=0 // pred_fallthru
    _
  // Predicated region
  $region22: #{hetero_tcr_forward.13} parent=0 // pred_check
    _
  $region23: #{hetero_tcr_forward.13} parent=0 // pred_check_branch
    %23 = sbr.rel (0) target = $region25
  $region24: #{hetero_tcr_forward.13} parent=0 // pred_region
    _
  $region25: #{hetero_tcr_forward.13} parent=0 // pred_fallthru
    _
  // Predicated region
  $region26: #{hetero_tcr_forward.13} parent=0 // pred_check
    _
  $region27: #{hetero_tcr_forward.13} parent=0 // pred_check_branch
    %25 = sbr.rel (0) target = $region29
  $region28: #{hetero_tcr_forward.13} parent=0 // pred_region
    _
  $region29: #{hetero_tcr_forward.13} parent=0 // pred_fallthru
    _
  %v26 = vld [vmem:[%s0] sm:$0xff]
  %v27 = vunpack.c.0.s8 %v26
  %v28 = vunpack.c.1.s8 %v26
  %v29 = vunpack.c.2.s8 %v26
  %v30 = vunpack.c.3.s8 %v26
  %v31 = vcvt.s32.f32 %v27
  %v32 = vcvt.s32.f32 %v28
  %v33 = vcvt.s32.f32 %v29
  %v34 = vcvt.s32.f32 %v30
  %v35 = vpack.c.bf16 %v32, %v31
  %v36 = vpack.c.bf16 %v34, %v33
  %v37 = vld [vmem:[%s2] sm:$0xf]
  %v38 = vld [vmem:[%s2 + $0x4] sm:$0xf]
  %v39 = vld [vmem:[%s2 + $0x8] sm:$0xf]
  %v40 = vld [vmem:[%s2 + $0xc] sm:$0xf]
  %v41 = vld [vmem:[%s2 + $0x10] sm:$0xf]
  %v42 = vld [vmem:[%s2 + $0x14] sm:$0xf]
  %v43 = vld [vmem:[%s2 + $0x18] sm:$0xf]
  %v44 = vld [vmem:[%s2 + $0x1c] sm:$0xf]
  %v45 = vld [vmem:[%s2 + $0x20] sm:$0xf]
  %v46 = vld [vmem:[%s2 + $0x24] sm:$0xf]
  %v47 = vld [vmem:[%s2 + $0x28] sm:$0xf]
  %v48 = vld [vmem:[%s2 + $0x2c] sm:$0xf]
  %v49 = vld [vmem:[%s2 + $0x30] sm:$0xf]
  %v50 = vld [vmem:[%s2 + $0x34] sm:$0xf]
  %v51 = vld [vmem:[%s2 + $0x38] sm:$0xf]
  %v52 = vld [vmem:[%s2 + $0x3c] sm:$0xf]
  %v69 = vunpack.c.l.b16 %v37
  %v70 = vunpack.c.l.b16 %v38
  %v71 = vunpack.c.l.b16 %v39
  %v72 = vunpack.c.l.b16 %v40
  %v73 = vunpack.c.l.b16 %v41
  %v74 = vunpack.c.l.b16 %v42
  %v75 = vunpack.c.l.b16 %v43
  %v76 = vunpack.c.l.b16 %v44
  %v77 = vunpack.c.l.b16 %v45
  %v78 = vunpack.c.l.b16 %v46
  %v79 = vunpack.c.l.b16 %v47
  %v80 = vunpack.c.l.b16 %v48
  %v81 = vunpack.c.l.b16 %v49
  %v82 = vunpack.c.l.b16 %v50
  %v83 = vunpack.c.l.b16 %v51
  %v84 = vunpack.c.l.b16 %v52
  %v85 = vpack.c.b16 %v70, %v69
  %v86 = vpack.c.b16 %v72, %v71
  %v87 = vpack.c.b16 %v74, %v73
  %v88 = vpack.c.b16 %v76, %v75
  %v89 = vpack.c.b16 %v78, %v77
  %v90 = vpack.c.b16 %v80, %v79
  %v91 = vpack.c.b16 %v82, %v81
  %v92 = vpack.c.b16 %v84, %v83
  %101 = vmatpush.bf16.msra.mxu0 %v92
  %102 = vmatpush.bf16.msra.mxu0 %v91
  %103 = vmatpush.bf16.msra.mxu0 %v90
  %104 = vmatpush.bf16.msra.mxu0 %v89
  %105 = vmatpush.bf16.msra.mxu0 %v88
  %106 = vmatpush.bf16.msra.mxu0 %v87
  %107 = vmatpush.bf16.msra.mxu0 %v86
  %108 = vmatpush.bf16.msra.mxu0 %v85
  %109 = vmatmul.bf16.gmra.mxu0 %v35
  %v110 = vpop.f32.mrf.mxu0
  %v111 = vadd.f32 0.0, %v110
  %v112 = vpop.f32.mrf.mxu0
  %v113 = vadd.f32 0.0, %v112
  %114 = vmatmul.bf16.gmra.mxu0 %v36
  %v115 = vpop.f32.mrf.mxu0
  %v116 = vadd.f32 0.0, %v115
  %v117 = vpop.f32.mrf.mxu0
  %v118 = vadd.f32 0.0, %v117
  %119 = vdwg.mxu0
  %v120 = vld [vmem:[%s1] sm:$0xff]
  %v121 = vld [vmem:[%s1 + $0x8] sm:$0xff]
  %v122 = vld [vmem:[%s1 + $0x10] sm:$0xff]
  %v123 = vld [vmem:[%s1 + $0x18] sm:$0xff]
  %125 = vset.pattern.permute.xlu0 0
  %126 = vperm.xlu0 %125, %v120
  %v127 = vpop.permute.xlu0 %126
  %130 = vset.pattern.permute.xlu0 0
  %131 = vperm.xlu0 %130, %v121
  %v132 = vpop.permute.xlu0 %131
  %135 = vset.pattern.permute.xlu0 0
  %136 = vperm.xlu0 %135, %v122
  %v137 = vpop.permute.xlu0 %136
  %140 = vset.pattern.permute.xlu0 0
  %141 = vperm.xlu0 %140, %v123
  %v142 = vpop.permute.xlu0 %141
  %v144 = vmul.f32 %v111, %v127
  %v145 = vmul.f32 %v113, %v132
  %v146 = vmul.f32 %v116, %v137
  %v147 = vmul.f32 %v118, %v142
  %v148 = vpack.c.bf16 %v145, %v144
  %v149 = vpack.c.bf16 %v147, %v146
  %v150 = vld [vmem:[%s4] sm:$0xf]
  %v151 = vld [vmem:[%s4 + $0x4] sm:$0xf]
  %v152 = vld [vmem:[%s4 + $0x8] sm:$0xf]
  %v153 = vld [vmem:[%s4 + $0xc] sm:$0xf]
  %v154 = vld [vmem:[%s4 + $0x10] sm:$0xf]
  %v155 = vld [vmem:[%s4 + $0x14] sm:$0xf]
  %v156 = vld [vmem:[%s4 + $0x18] sm:$0xf]
  %v157 = vld [vmem:[%s4 + $0x1c] sm:$0xf]
  %v158 = vld [vmem:[%s4 + $0x20] sm:$0xf]
  %v159 = vld [vmem:[%s4 + $0x24] sm:$0xf]
  %v160 = vld [vmem:[%s4 + $0x28] sm:$0xf]
  %v161 = vld [vmem:[%s4 + $0x2c] sm:$0xf]
  %v162 = vld [vmem:[%s4 + $0x30] sm:$0xf]
  %v163 = vld [vmem:[%s4 + $0x34] sm:$0xf]
  %v164 = vld [vmem:[%s4 + $0x38] sm:$0xf]
  %v165 = vld [vmem:[%s4 + $0x3c] sm:$0xf]
  %v166 = vld [vmem:[%s3] sm:$0xf]
  %v167 = vld [vmem:[%s3 + $0x4] sm:$0xf]
  %v168 = vld [vmem:[%s3 + $0x8] sm:$0xf]
  %v169 = vld [vmem:[%s3 + $0xc] sm:$0xf]
  %v170 = vld [vmem:[%s5] sm:$0xf]
  %v171 = vld [vmem:[%s5 + $0x4] sm:$0xf]
  %v172 = vld [vmem:[%s5 + $0x8] sm:$0xf]
  %v173 = vld [vmem:[%s5 + $0xc] sm:$0xf]
  %v174 = vld [vmem:[%s5 + $0x10] sm:$0xf]
  %v175 = vld [vmem:[%s5 + $0x14] sm:$0xf]
  %v176 = vld [vmem:[%s5 + $0x18] sm:$0xf]
  %v177 = vld [vmem:[%s5 + $0x1c] sm:$0xf]
  %v178 = vld [vmem:[%s5 + $0x20] sm:$0xf]
  %v179 = vld [vmem:[%s5 + $0x24] sm:$0xf]
  %v180 = vld [vmem:[%s5 + $0x28] sm:$0xf]
  %v181 = vld [vmem:[%s5 + $0x2c] sm:$0xf]
  %v182 = vld [vmem:[%s5 + $0x30] sm:$0xf]
  %v183 = vld [vmem:[%s5 + $0x34] sm:$0xf]
  %v184 = vld [vmem:[%s5 + $0x38] sm:$0xf]
  %v185 = vld [vmem:[%s5 + $0x3c] sm:$0xf]
  %v190 = vunpack.c.l.b16 %v166
  %v191 = vunpack.c.l.b16 %v167
  %v192 = vunpack.c.l.b16 %v168
  %v193 = vunpack.c.l.b16 %v169
  %v194 = vpack.c.b16 %v191, %v190
  %v195 = vpack.c.b16 %v193, %v192
  %v214 = vunpack.c.l.b16 %v170
  %v215 = vunpack.c.l.b16 %v171
  %v216 = vunpack.c.l.b16 %v172
  %v217 = vunpack.c.l.b16 %v173
  %v218 = vunpack.c.l.b16 %v174
  %v219 = vunpack.c.l.b16 %v175
  %v220 = vunpack.c.l.b16 %v176
  %v221 = vunpack.c.l.b16 %v177
  %v222 = vunpack.c.l.b16 %v178
  %v223 = vunpack.c.l.b16 %v179
  %v224 = vunpack.c.l.b16 %v180
  %v225 = vunpack.c.l.b16 %v181
  %v226 = vunpack.c.l.b16 %v182
  %v227 = vunpack.c.l.b16 %v183
  %v228 = vunpack.c.l.b16 %v184
  %v229 = vunpack.c.l.b16 %v185
  %v230 = vpack.c.b16 %v215, %v214
  %v231 = vpack.c.b16 %v217, %v216
  %v232 = vpack.c.b16 %v219, %v218
  %v233 = vpack.c.b16 %v221, %v220
  %v234 = vpack.c.b16 %v223, %v222
  %v235 = vpack.c.b16 %v225, %v224
  %v236 = vpack.c.b16 %v227, %v226
  %v237 = vpack.c.b16 %v229, %v228
  %246 = vmatpush.bf16.msra.mxu0 %v237
  %247 = vmatpush.bf16.msra.mxu0 %v236
  %248 = vmatpush.bf16.msra.mxu0 %v235
  %249 = vmatpush.bf16.msra.mxu0 %v234
  %250 = vmatpush.bf16.msra.mxu0 %v233
  %251 = vmatpush.bf16.msra.mxu0 %v232
  %252 = vmatpush.bf16.msra.mxu0 %v231
  %253 = vmatpush.bf16.msra.mxu0 %v230
  %254 = vmatmul.bf16.gmra.mxu0 %v194
  %v255 = vpop.f32.mrf.mxu0
  %v256 = vadd.f32 0.0, %v255
  %v257 = vpop.f32.mrf.mxu0
  %v258 = vadd.f32 0.0, %v257
  %259 = vmatmul.bf16.gmra.mxu0 %v195
  %v260 = vpop.f32.mrf.mxu0
  %v261 = vadd.f32 0.0, %v260
  %v262 = vpop.f32.mrf.mxu0
  %v263 = vadd.f32 0.0, %v262
  %264 = vdwg.mxu0
  %v281 = vunpack.c.l.b16 %v150
  %v282 = vunpack.c.l.b16 %v151
  %v283 = vunpack.c.l.b16 %v152
  %v284 = vunpack.c.l.b16 %v153
  %v285 = vunpack.c.l.b16 %v154
  %v286 = vunpack.c.l.b16 %v155
  %v287 = vunpack.c.l.b16 %v156
  %v288 = vunpack.c.l.b16 %v157
  %v289 = vunpack.c.l.b16 %v158
  %v290 = vunpack.c.l.b16 %v159
  %v291 = vunpack.c.l.b16 %v160
  %v292 = vunpack.c.l.b16 %v161
  %v293 = vunpack.c.l.b16 %v162
  %v294 = vunpack.c.l.b16 %v163
  %v295 = vunpack.c.l.b16 %v164
  %v296 = vunpack.c.l.b16 %v165
  %v297 = vpack.c.b16 %v282, %v281
  %v298 = vpack.c.b16 %v284, %v283
  %v299 = vpack.c.b16 %v286, %v285
  %v300 = vpack.c.b16 %v288, %v287
  %v301 = vpack.c.b16 %v290, %v289
  %v302 = vpack.c.b16 %v292, %v291
  %v303 = vpack.c.b16 %v294, %v293
  %v304 = vpack.c.b16 %v296, %v295
  %313 = vmatpush.bf16.msra.mxu0 %v304
  %314 = vmatpush.bf16.msra.mxu0 %v303
  %315 = vmatpush.bf16.msra.mxu0 %v302
  %316 = vmatpush.bf16.msra.mxu0 %v301
  %317 = vmatpush.bf16.msra.mxu0 %v300
  %318 = vmatpush.bf16.msra.mxu0 %v299
  %319 = vmatpush.bf16.msra.mxu0 %v298
  %320 = vmatpush.bf16.msra.mxu0 %v297
  %321 = vmatmul.bf16.gmra.mxu0 %v148
  %v322 = vpop.f32.mrf.mxu0
  %v323 = vadd.f32 %v256, %v322
  %v324 = vpop.f32.mrf.mxu0
  %v325 = vadd.f32 %v258, %v324
  %326 = vmatmul.bf16.gmra.mxu0 %v149
  %v327 = vpop.f32.mrf.mxu0
  %v328 = vadd.f32 %v261, %v327
  %v329 = vpop.f32.mrf.mxu0
  %v330 = vadd.f32 %v263, %v329
  %331 = vdwg.mxu0
  %v332 = vld [vmem:[%s6] sm:$0x1]
  %v334 = vperm.slane %v332, 0
  %v336 = vadd.f32 %v323, %v334
  %v337 = vadd.f32 %v325, %v334
  %v338 = vadd.f32 %v328, %v334
  %v339 = vadd.f32 %v330, %v334
  %vm340 = vcmp.gt.f32.partialorder %v336, 0.0
  %vm341 = vcmp.gt.f32.partialorder %v337, 0.0
  %vm342 = vcmp.gt.f32.partialorder %v338, 0.0
  %vm343 = vcmp.gt.f32.partialorder %v339, 0.0
  %v344 = vmul.f32 %v336, 0.01
  %v345 = vmul.f32 %v337, 0.01
  %v346 = vmul.f32 %v338, 0.01
  %v347 = vmul.f32 %v339, 0.01
  %v348 = vsel %vm340, %v336, %v344
  %v349 = vsel %vm341, %v337, %v345
  %v350 = vsel %vm342, %v338, %v346
  %v351 = vsel %vm343, %v339, %v347
  %v352 = vpack.c.bf16 %v348, %v348
  %v353 = vpack.c.bf16 %v349, %v349
  %v354 = vpack.c.bf16 %v350, %v350
  %v355 = vpack.c.bf16 %v351, %v351
  %356 = vst [vmem:[%s7] sm:$0xf] %v352
  %357 = vst [vmem:[%s7 + $0x4] sm:$0xf] %v353
  %358 = vst [vmem:[%s7 + $0x8] sm:$0xf] %v354
  %359 = vst [vmem:[%s7 + $0xc] sm:$0xf] %v355
  // Predicated region
  $region30: #{hetero_tcr_forward.13} parent=0 // pred_check
    _
  $region31: #{hetero_tcr_forward.13} parent=0 // pred_check_branch
    %361 = sbr.rel (0) target = $region33
  $region32: #{hetero_tcr_forward.13} parent=0 // pred_region
    _
  $region33: #{hetero_tcr_forward.13} parent=0 // pred_fallthru
    _
  // Predicated region
  $region34: #{hetero_tcr_forward.13} parent=0 // pred_check
    _
  $region35: #{hetero_tcr_forward.13} parent=0 // pred_check_branch
    %363 = sbr.rel (0) target = $region37
  $region36: #{hetero_tcr_forward.13} parent=0 // pred_region
    _
  $region37: #{hetero_tcr_forward.13} parent=0 // pred_fallthru
    _

// kernel: hetero_tcr_forward.11
$region0: #{hetero_tcr_forward.11}
  #allocation0 [shape = 'u32[]', space=smem, size = 0x4, offset = 0x4, fixed_abs, tag = 'smem constant byte address 0x4 - core index']
  #allocation1 [shape = 'u32[72,128]{1,0:T(1,128)}', space=vmem, size = 0x9000, scoped, tag = 'internal scratch']
  %s0 = inlined_call_operand.vmem [shape: s8[32,128], index: 0, kind: input, shape index: {}]
  %s1 = inlined_call_operand.vmem [shape: f32[32,1], index: 1, kind: input, shape index: {}]
  %s2 = inlined_call_operand.vmem [shape: bf16[128,64], index: 2, kind: input, shape index: {}]
  %s3 = inlined_call_operand.vmem [shape: bf16[32,64], index: 3, kind: input, shape index: {}]
  %s4 = inlined_call_operand.vmem [shape: bf16[64,128], index: 4, kind: input, shape index: {}]
  %s5 = inlined_call_operand.vmem [shape: bf16[64,128], index: 5, kind: input, shape index: {}]
  %s6 = inlined_call_operand.vmem [shape: f32[1,128], index: 6, kind: input, shape index: {}]
  %s7 = inlined_call_operand.vmem [shape: bf16[32,128], index: 7, kind: output, shape index: {}]
  %s8 = sld [smem:[#allocation0]]
  $region38: #{hetero_tcr_forward.11} parent=0
    _
  %s10 = ssub.s32 1, %s8
  %s11 = scalar_select 0, %s10, %s8
  // Predicated region
  $region2: #{hetero_tcr_forward.11} parent=0 // pred_check
    _
  $region3: #{hetero_tcr_forward.11} parent=0 // pred_check_branch
    %13 = sbr.rel (0) target = $region5
  $region4: #{hetero_tcr_forward.11} parent=0 // pred_region
    _
  $region5: #{hetero_tcr_forward.11} parent=0 // pred_fallthru
    _
  // Predicated region
  $region6: #{hetero_tcr_forward.11} parent=0 // pred_check
    _
  $region7: #{hetero_tcr_forward.11} parent=0 // pred_check_branch
    %15 = sbr.rel (0) target = $region9
  $region8: #{hetero_tcr_forward.11} parent=0 // pred_region
    _
  $region9: #{hetero_tcr_forward.11} parent=0 // pred_fallthru
    _
  // Predicated region
  $region10: #{hetero_tcr_forward.11} parent=0 // pred_check
    _
  $region11: #{hetero_tcr_forward.11} parent=0 // pred_check_branch
    %17 = sbr.rel (0) target = $region13
  $region12: #{hetero_tcr_forward.11} parent=0 // pred_region
    _
  $region13: #{hetero_tcr_forward.11} parent=0 // pred_fallthru
    _
  // Predicated region
  $region14: #{hetero_tcr_forward.11} parent=0 // pred_check
    _
  $region15: #{hetero_tcr_forward.11} parent=0 // pred_check_branch
    %19 = sbr.rel (0) target = $region17
  $region16: #{hetero_tcr_forward.11} parent=0 // pred_region
    _
  $region17: #{hetero_tcr_forward.11} parent=0 // pred_fallthru
    _
  // Predicated region
  $region18: #{hetero_tcr_forward.11} parent=0 // pred_check
    _
  $region19: #{hetero_tcr_forward.11} parent=0 // pred_check_branch
    %21 = sbr.rel (0) target = $region21
  $region20: #{hetero_tcr_forward.11} parent=0 // pred_region
    _
  $region21: #{hetero_tcr_forward.11} parent=0 // pred_fallthru
    _
  // Predicated region
  $region22: #{hetero_tcr_forward.11} parent=0 // pred_check
    _
  $region23: #{hetero_tcr_forward.11} parent=0 // pred_check_branch
    %23 = sbr.rel (0) target = $region25
  $region24: #{hetero_tcr_forward.11} parent=0 // pred_region
    _
  $region25: #{hetero_tcr_forward.11} parent=0 // pred_fallthru
    _
  // Predicated region
  $region26: #{hetero_tcr_forward.11} parent=0 // pred_check
    _
  $region27: #{hetero_tcr_forward.11} parent=0 // pred_check_branch
    %25 = sbr.rel (0) target = $region29
  $region28: #{hetero_tcr_forward.11} parent=0 // pred_region
    _
  $region29: #{hetero_tcr_forward.11} parent=0 // pred_fallthru
    _
  %v27 = vld [vmem:[%s0] sm:$0xff]
  %v28 = vunpack.c.0.s8 %v27
  %v29 = vunpack.c.1.s8 %v27
  %v30 = vunpack.c.2.s8 %v27
  %v31 = vunpack.c.3.s8 %v27
  %v32 = vcvt.s32.f32 %v28
  %v33 = vcvt.s32.f32 %v29
  %v34 = vcvt.s32.f32 %v30
  %v35 = vcvt.s32.f32 %v31
  %v36 = vpack.c.bf16 %v33, %v32
  %v37 = vpack.c.bf16 %v35, %v34
  %v38 = vld [vmem:[%s2] sm:$0xf]
  %v39 = vld [vmem:[%s2 + $0x4] sm:$0xf]
  %v40 = vld [vmem:[%s2 + $0x8] sm:$0xf]
  %v41 = vld [vmem:[%s2 + $0xc] sm:$0xf]
  %v42 = vld [vmem:[%s2 + $0x10] sm:$0xf]
  %v43 = vld [vmem:[%s2 + $0x14] sm:$0xf]
  %v44 = vld [vmem:[%s2 + $0x18] sm:$0xf]
  %v45 = vld [vmem:[%s2 + $0x1c] sm:$0xf]
  %v46 = vld [vmem:[%s2 + $0x20] sm:$0xf]
  %v47 = vld [vmem:[%s2 + $0x24] sm:$0xf]
  %v48 = vld [vmem:[%s2 + $0x28] sm:$0xf]
  %v49 = vld [vmem:[%s2 + $0x2c] sm:$0xf]
  %v50 = vld [vmem:[%s2 + $0x30] sm:$0xf]
  %v51 = vld [vmem:[%s2 + $0x34] sm:$0xf]
  %v52 = vld [vmem:[%s2 + $0x38] sm:$0xf]
  %v53 = vld [vmem:[%s2 + $0x3c] sm:$0xf]
  %v70 = vunpack.c.l.b16 %v38
  %v71 = vunpack.c.l.b16 %v39
  %v72 = vunpack.c.l.b16 %v40
  %v73 = vunpack.c.l.b16 %v41
  %v74 = vunpack.c.l.b16 %v42
  %v75 = vunpack.c.l.b16 %v43
  %v76 = vunpack.c.l.b16 %v44
  %v77 = vunpack.c.l.b16 %v45
  %v78 = vunpack.c.l.b16 %v46
  %v79 = vunpack.c.l.b16 %v47
  %v80 = vunpack.c.l.b16 %v48
  %v81 = vunpack.c.l.b16 %v49
  %v82 = vunpack.c.l.b16 %v50
  %v83 = vunpack.c.l.b16 %v51
  %v84 = vunpack.c.l.b16 %v52
  %v85 = vunpack.c.l.b16 %v53
  %v86 = vpack.c.b16 %v71, %v70
  %v87 = vpack.c.b16 %v73, %v72
  %v88 = vpack.c.b16 %v75, %v74
  %v89 = vpack.c.b16 %v77, %v76
  %v90 = vpack.c.b16 %v79, %v78
  %v91 = vpack.c.b16 %v81, %v80
  %v92 = vpack.c.b16 %v83, %v82
  %v93 = vpack.c.b16 %v85, %v84
  %102 = vmatpush.bf16.msra.mxu0 %v93
  %103 = vmatpush.bf16.msra.mxu0 %v92
  %104 = vmatpush.bf16.msra.mxu0 %v91
  %105 = vmatpush.bf16.msra.mxu0 %v90
  %106 = vmatpush.bf16.msra.mxu0 %v89
  %107 = vmatpush.bf16.msra.mxu0 %v88
  %108 = vmatpush.bf16.msra.mxu0 %v87
  %109 = vmatpush.bf16.msra.mxu0 %v86
  %110 = vmatmul.bf16.gmra.mxu0 %v36
  %v111 = vpop.f32.mrf.mxu0
  %v112 = vadd.f32 0.0, %v111
  %v113 = vpop.f32.mrf.mxu0
  %v114 = vadd.f32 0.0, %v113
  %115 = vmatmul.bf16.gmra.mxu0 %v37
  %v116 = vpop.f32.mrf.mxu0
  %v117 = vadd.f32 0.0, %v116
  %v118 = vpop.f32.mrf.mxu0
  %v119 = vadd.f32 0.0, %v118
  %120 = vdwg.mxu0
  %v121 = vld [vmem:[%s1] sm:$0xff]
  %v122 = vld [vmem:[%s1 + $0x8] sm:$0xff]
  %v123 = vld [vmem:[%s1 + $0x10] sm:$0xff]
  %v124 = vld [vmem:[%s1 + $0x18] sm:$0xff]
  %126 = vset.pattern.permute.xlu0 0
  %127 = vperm.xlu0 %126, %v121
  %v128 = vpop.permute.xlu0 %127
  %131 = vset.pattern.permute.xlu0 0
  %132 = vperm.xlu0 %131, %v122
  %v133 = vpop.permute.xlu0 %132
  %136 = vset.pattern.permute.xlu0 0
  %137 = vperm.xlu0 %136, %v123
  %v138 = vpop.permute.xlu0 %137
  %141 = vset.pattern.permute.xlu0 0
  %142 = vperm.xlu0 %141, %v124
  %v143 = vpop.permute.xlu0 %142
  %v145 = vmul.f32 %v112, %v128
  %v146 = vmul.f32 %v114, %v133
  %v147 = vmul.f32 %v117, %v138
  %v148 = vmul.f32 %v119, %v143
  %v149 = vpack.c.bf16 %v146, %v145
  %v150 = vpack.c.bf16 %v148, %v147
  %v151 = vld [vmem:[%s4] sm:$0xf]
  %v152 = vld [vmem:[%s4 + $0x4] sm:$0xf]
  %v153 = vld [vmem:[%s4 + $0x8] sm:$0xf]
  %v154 = vld [vmem:[%s4 + $0xc] sm:$0xf]
  %v155 = vld [vmem:[%s4 + $0x10] sm:$0xf]
  %v156 = vld [vmem:[%s4 + $0x14] sm:$0xf]
  %v157 = vld [vmem:[%s4 + $0x18] sm:$0xf]
  %v158 = vld [vmem:[%s4 + $0x1c] sm:$0xf]
  %v159 = vld [vmem:[%s3] sm:$0xf]
  %v160 = vld [vmem:[%s3 + $0x4] sm:$0xf]
  %v161 = vld [vmem:[%s3 + $0x8] sm:$0xf]
  %v162 = vld [vmem:[%s3 + $0xc] sm:$0xf]
  %v163 = vld [vmem:[%s5] sm:$0xf]
  %v164 = vld [vmem:[%s5 + $0x4] sm:$0xf]
  %v165 = vld [vmem:[%s5 + $0x8] sm:$0xf]
  %v166 = vld [vmem:[%s5 + $0xc] sm:$0xf]
  %v167 = vld [vmem:[%s5 + $0x10] sm:$0xf]
  %v168 = vld [vmem:[%s5 + $0x14] sm:$0xf]
  %v169 = vld [vmem:[%s5 + $0x18] sm:$0xf]
  %v170 = vld [vmem:[%s5 + $0x1c] sm:$0xf]
  %v175 = vunpack.c.l.b16 %v159
  %v176 = vunpack.c.l.b16 %v160
  %v177 = vunpack.c.l.b16 %v161
  %v178 = vunpack.c.l.b16 %v162
  %v179 = vpack.c.b16 %v176, %v175
  %v180 = vpack.c.b16 %v178, %v177
  %v189 = vunpack.c.l.b16 %v163
  %v190 = vunpack.c.l.b16 %v164
  %v191 = vunpack.c.l.b16 %v165
  %v192 = vunpack.c.l.b16 %v166
  %v193 = vunpack.c.l.b16 %v167
  %v194 = vunpack.c.l.b16 %v168
  %v195 = vunpack.c.l.b16 %v169
  %v196 = vunpack.c.l.b16 %v170
  %v197 = vpack.c.b16 %v190, %v189
  %v198 = vpack.c.b16 %v192, %v191
  %v199 = vpack.c.b16 %v194, %v193
  %v200 = vpack.c.b16 %v196, %v195
  %vm205 = vcmask 523264
  %v207 = vsel %vm205, %v179, 0
  %v210 = vsel %vm205, %v180, 0
  %212 = vmatpush.bf16.msra.mxu0 0
  %213 = vmatpush.bf16.msra.mxu0 0
  %214 = vmatpush.bf16.msra.mxu0 0
  %215 = vmatpush.bf16.msra.mxu0 0
  %216 = vmatpush.bf16.msra.mxu0 %v200
  %217 = vmatpush.bf16.msra.mxu0 %v199
  %218 = vmatpush.bf16.msra.mxu0 %v198
  %219 = vmatpush.bf16.msra.mxu0 %v197
  %220 = vmatmul.bf16.gmra.mxu0 %v207
  %v221 = vpop.f32.mrf.mxu0
  %v222 = vadd.f32 0.0, %v221
  %v223 = vpop.f32.mrf.mxu0
  %v224 = vadd.f32 0.0, %v223
  %225 = vmatmul.bf16.gmra.mxu0 %v210
  %v226 = vpop.f32.mrf.mxu0
  %v227 = vadd.f32 0.0, %v226
  %v228 = vpop.f32.mrf.mxu0
  %v229 = vadd.f32 0.0, %v228
  %230 = vdwg.mxu0
  %v239 = vunpack.c.l.b16 %v151
  %v240 = vunpack.c.l.b16 %v152
  %v241 = vunpack.c.l.b16 %v153
  %v242 = vunpack.c.l.b16 %v154
  %v243 = vunpack.c.l.b16 %v155
  %v244 = vunpack.c.l.b16 %v156
  %v245 = vunpack.c.l.b16 %v157
  %v246 = vunpack.c.l.b16 %v158
  %v247 = vpack.c.b16 %v240, %v239
  %v248 = vpack.c.b16 %v242, %v241
  %v249 = vpack.c.b16 %v244, %v243
  %v250 = vpack.c.b16 %v246, %v245
  %v256 = vsel %vm205, %v149, 0
  %v259 = vsel %vm205, %v150, 0
  %261 = vmatpush.bf16.msra.mxu0 0
  %262 = vmatpush.bf16.msra.mxu0 0
  %263 = vmatpush.bf16.msra.mxu0 0
  %264 = vmatpush.bf16.msra.mxu0 0
  %265 = vmatpush.bf16.msra.mxu0 %v250
  %266 = vmatpush.bf16.msra.mxu0 %v249
  %267 = vmatpush.bf16.msra.mxu0 %v248
  %268 = vmatpush.bf16.msra.mxu0 %v247
  %269 = vmatmul.bf16.gmra.mxu0 %v256
  %v270 = vpop.f32.mrf.mxu0
  %v271 = vadd.f32 %v222, %v270
  %v272 = vpop.f32.mrf.mxu0
  %v273 = vadd.f32 %v224, %v272
  %274 = vmatmul.bf16.gmra.mxu0 %v259
  %v275 = vpop.f32.mrf.mxu0
  %v276 = vadd.f32 %v227, %v275
  %v277 = vpop.f32.mrf.mxu0
  %v278 = vadd.f32 %v229, %v277
  %279 = vdwg.mxu0
  %v280 = vld [vmem:[%s6] sm:$0x1]
  %v282 = vperm.slane %v280, 0
  %v284 = vadd.f32 %v271, %v282
  %v285 = vadd.f32 %v273, %v282
  %v286 = vadd.f32 %v276, %v282
  %v287 = vadd.f32 %v278, %v282
  %vm288 = vcmp.gt.f32.partialorder %v284, 0.0
  %vm289 = vcmp.gt.f32.partialorder %v285, 0.0
  %vm290 = vcmp.gt.f32.partialorder %v286, 0.0
  %vm291 = vcmp.gt.f32.partialorder %v287, 0.0
  %v292 = vmul.f32 %v284, 0.01
  %v293 = vmul.f32 %v285, 0.01
  %v294 = vmul.f32 %v286, 0.01
  %v295 = vmul.f32 %v287, 0.01
  %v296 = vsel %vm288, %v284, %v292
  %v297 = vsel %vm289, %v285, %v293
  %v298 = vsel %vm290, %v286, %v294
  %v299 = vsel %vm291, %v287, %v295
  %v300 = vpack.c.bf16 %v296, %v296
  %v301 = vpack.c.bf16 %v297, %v297
  %v302 = vpack.c.bf16 %v298, %v298
  %v303 = vpack.c.bf16 %v299, %v299
  %304 = vst [vmem:[%s7] sm:$0xf] %v300
  %305 = vst [vmem:[%s7 + $0x4] sm:$0xf] %v301
  %306 = vst [vmem:[%s7 + $0x8] sm:$0xf] %v302
  %307 = vst [vmem:[%s7 + $0xc] sm:$0xf] %v303
  // Predicated region
  $region30: #{hetero_tcr_forward.11} parent=0 // pred_check
    _
  $region31: #{hetero_tcr_forward.11} parent=0 // pred_check_branch
    %309 = sbr.rel (0) target = $region33
  $region32: #{hetero_tcr_forward.11} parent=0 // pred_region
    _
  $region33: #{hetero_tcr_forward.11} parent=0 // pred_fallthru
    _
  // Predicated region
  $region34: #{hetero_tcr_forward.11} parent=0 // pred_check
    _
  $region35: #{hetero_tcr_forward.11} parent=0 // pred_check_branch
    %311 = sbr.rel (0) target = $region37
  $region36: #{hetero_tcr_forward.11} parent=0 // pred_region
    _
  $region37: #{hetero_tcr_forward.11} parent=0 // pred_fallthru
    _

// kernel: hetero_tcr_forward.15
$region0: #{hetero_tcr_forward.15}
  #allocation0 [shape = 'u32[]', space=smem, size = 0x4, offset = 0x4, fixed_abs, tag = 'smem constant byte address 0x4 - core index']
  #allocation1 [shape = 'u32[72,128]{1,0:T(1,128)}', space=vmem, size = 0x9000, scoped, tag = 'internal scratch']
  %s0 = inlined_call_operand.vmem [shape: s8[32,128], index: 0, kind: input, shape index: {}]
  %s1 = inlined_call_operand.vmem [shape: f32[32,1], index: 1, kind: input, shape index: {}]
  %s2 = inlined_call_operand.vmem [shape: s8[32,128], index: 2, kind: input, shape index: {}]
  %s3 = inlined_call_operand.vmem [shape: f32[32,1], index: 3, kind: input, shape index: {}]
  %s4 = inlined_call_operand.vmem [shape: bf16[128,128], index: 4, kind: input, shape index: {}]
  %s5 = inlined_call_operand.vmem [shape: bf16[128,128], index: 5, kind: input, shape index: {}]
  %s6 = inlined_call_operand.vmem [shape: bf16[32,128], index: 6, kind: input, shape index: {}]
  %s7 = inlined_call_operand.vmem [shape: bf16[128,128], index: 7, kind: input, shape index: {}]
  %s8 = inlined_call_operand.vmem [shape: bf16[128,128], index: 8, kind: input, shape index: {}]
  %s9 = inlined_call_operand.vmem [shape: bf16[128,128], index: 9, kind: input, shape index: {}]
  %s10 = inlined_call_operand.vmem [shape: f32[1,128], index: 10, kind: input, shape index: {}]
  %s11 = inlined_call_operand.vmem [shape: bf16[32,128], index: 11, kind: output, shape index: {}]
  %s12 = sld [smem:[#allocation0]]
  $region54: #{hetero_tcr_forward.15} parent=0
    _
  %s14 = ssub.s32 1, %s12
  %s15 = scalar_select 0, %s14, %s12
  // Predicated region
  $region2: #{hetero_tcr_forward.15} parent=0 // pred_check
    _
  $region3: #{hetero_tcr_forward.15} parent=0 // pred_check_branch
    %17 = sbr.rel (0) target = $region5
  $region4: #{hetero_tcr_forward.15} parent=0 // pred_region
    _
  $region5: #{hetero_tcr_forward.15} parent=0 // pred_fallthru
    _
  // Predicated region
  $region6: #{hetero_tcr_forward.15} parent=0 // pred_check
    _
  $region7: #{hetero_tcr_forward.15} parent=0 // pred_check_branch
    %19 = sbr.rel (0) target = $region9
  $region8: #{hetero_tcr_forward.15} parent=0 // pred_region
    _
  $region9: #{hetero_tcr_forward.15} parent=0 // pred_fallthru
    _
  // Predicated region
  $region10: #{hetero_tcr_forward.15} parent=0 // pred_check
    _
  $region11: #{hetero_tcr_forward.15} parent=0 // pred_check_branch
    %21 = sbr.rel (0) target = $region13
  $region12: #{hetero_tcr_forward.15} parent=0 // pred_region
    _
  $region13: #{hetero_tcr_forward.15} parent=0 // pred_fallthru
    _
  // Predicated region
  $region14: #{hetero_tcr_forward.15} parent=0 // pred_check
    _
  $region15: #{hetero_tcr_forward.15} parent=0 // pred_check_branch
    %23 = sbr.rel (0) target = $region17
  $region16: #{hetero_tcr_forward.15} parent=0 // pred_region
    _
  $region17: #{hetero_tcr_forward.15} parent=0 // pred_fallthru
    _
  // Predicated region
  $region18: #{hetero_tcr_forward.15} parent=0 // pred_check
    _
  $region19: #{hetero_tcr_forward.15} parent=0 // pred_check_branch
    %25 = sbr.rel (0) target = $region21
  $region20: #{hetero_tcr_forward.15} parent=0 // pred_region
    _
  $region21: #{hetero_tcr_forward.15} parent=0 // pred_fallthru
    _
  // Predicated region
  $region22: #{hetero_tcr_forward.15} parent=0 // pred_check
    _
  $region23: #{hetero_tcr_forward.15} parent=0 // pred_check_branch
    %27 = sbr.rel (0) target = $region25
  $region24: #{hetero_tcr_forward.15} parent=0 // pred_region
    _
  $region25: #{hetero_tcr_forward.15} parent=0 // pred_fallthru
    _
  // Predicated region
  $region26: #{hetero_tcr_forward.15} parent=0 // pred_check
    _
  $region27: #{hetero_tcr_forward.15} parent=0 // pred_check_branch
    %29 = sbr.rel (0) target = $region29
  $region28: #{hetero_tcr_forward.15} parent=0 // pred_region
    _
  $region29: #{hetero_tcr_forward.15} parent=0 // pred_fallthru
    _
  // Predicated region
  $region30: #{hetero_tcr_forward.15} parent=0 // pred_check
    _
  $region31: #{hetero_tcr_forward.15} parent=0 // pred_check_branch
    %31 = sbr.rel (0) target = $region33
  $region32: #{hetero_tcr_forward.15} parent=0 // pred_region
    _
  $region33: #{hetero_tcr_forward.15} parent=0 // pred_fallthru
    _
  // Predicated region
  $region34: #{hetero_tcr_forward.15} parent=0 // pred_check
    _
  $region35: #{hetero_tcr_forward.15} parent=0 // pred_check_branch
    %33 = sbr.rel (0) target = $region37
  $region36: #{hetero_tcr_forward.15} parent=0 // pred_region
    _
  $region37: #{hetero_tcr_forward.15} parent=0 // pred_fallthru
    _
  // Predicated region
  $region38: #{hetero_tcr_forward.15} parent=0 // pred_check
    _
  $region39: #{hetero_tcr_forward.15} parent=0 // pred_check_branch
    %35 = sbr.rel (0) target = $region41
  $region40: #{hetero_tcr_forward.15} parent=0 // pred_region
    _
  $region41: #{hetero_tcr_forward.15} parent=0 // pred_fallthru
    _
  // Predicated region
  $region42: #{hetero_tcr_forward.15} parent=0 // pred_check
    _
  $region43: #{hetero_tcr_forward.15} parent=0 // pred_check_branch
    %37 = sbr.rel (0) target = $region45
  $region44: #{hetero_tcr_forward.15} parent=0 // pred_region
    _
  $region45: #{hetero_tcr_forward.15} parent=0 // pred_fallthru
    _
  %v38 = vld [vmem:[%s0] sm:$0xff]
  %v39 = vunpack.c.0.s8 %v38
  %v40 = vunpack.c.1.s8 %v38
  %v41 = vunpack.c.2.s8 %v38
  %v42 = vunpack.c.3.s8 %v38
  %v43 = vcvt.s32.f32 %v39
  %v44 = vcvt.s32.f32 %v40
  %v45 = vcvt.s32.f32 %v41
  %v46 = vcvt.s32.f32 %v42
  %v47 = vpack.c.bf16 %v44, %v43
  %v48 = vpack.c.bf16 %v46, %v45
  %v49 = vld [vmem:[%s4] sm:$0xf]
  %v50 = vld [vmem:[%s4 + $0x4] sm:$0xf]
  %v51 = vld [vmem:[%s4 + $0x8] sm:$0xf]
  %v52 = vld [vmem:[%s4 + $0xc] sm:$0xf]
  %v53 = vld [vmem:[%s4 + $0x10] sm:$0xf]
  %v54 = vld [vmem:[%s4 + $0x14] sm:$0xf]
  %v55 = vld [vmem:[%s4 + $0x18] sm:$0xf]
  %v56 = vld [vmem:[%s4 + $0x1c] sm:$0xf]
  %v57 = vld [vmem:[%s4 + $0x20] sm:$0xf]
  %v58 = vld [vmem:[%s4 + $0x24] sm:$0xf]
  %v59 = vld [vmem:[%s4 + $0x28] sm:$0xf]
  %v60 = vld [vmem:[%s4 + $0x2c] sm:$0xf]
  %v61 = vld [vmem:[%s4 + $0x30] sm:$0xf]
  %v62 = vld [vmem:[%s4 + $0x34] sm:$0xf]
  %v63 = vld [vmem:[%s4 + $0x38] sm:$0xf]
  %v64 = vld [vmem:[%s4 + $0x3c] sm:$0xf]
  %v81 = vunpack.c.l.b16 %v49
  %v82 = vunpack.c.l.b16 %v50
  %v83 = vunpack.c.l.b16 %v51
  %v84 = vunpack.c.l.b16 %v52
  %v85 = vunpack.c.l.b16 %v53
  %v86 = vunpack.c.l.b16 %v54
  %v87 = vunpack.c.l.b16 %v55
  %v88 = vunpack.c.l.b16 %v56
  %v89 = vunpack.c.l.b16 %v57
  %v90 = vunpack.c.l.b16 %v58
  %v91 = vunpack.c.l.b16 %v59
  %v92 = vunpack.c.l.b16 %v60
  %v93 = vunpack.c.l.b16 %v61
  %v94 = vunpack.c.l.b16 %v62
  %v95 = vunpack.c.l.b16 %v63
  %v96 = vunpack.c.l.b16 %v64
  %v97 = vpack.c.b16 %v82, %v81
  %v98 = vpack.c.b16 %v84, %v83
  %v99 = vpack.c.b16 %v86, %v85
  %v100 = vpack.c.b16 %v88, %v87
  %v101 = vpack.c.b16 %v90, %v89
  %v102 = vpack.c.b16 %v92, %v91
  %v103 = vpack.c.b16 %v94, %v93
  %v104 = vpack.c.b16 %v96, %v95
  %113 = vmatpush.bf16.msra.mxu0 %v104
  %114 = vmatpush.bf16.msra.mxu0 %v103
  %115 = vmatpush.bf16.msra.mxu0 %v102
  %116 = vmatpush.bf16.msra.mxu0 %v101
  %117 = vmatpush.bf16.msra.mxu0 %v100
  %118 = vmatpush.bf16.msra.mxu0 %v99
  %119 = vmatpush.bf16.msra.mxu0 %v98
  %120 = vmatpush.bf16.msra.mxu0 %v97
  %121 = vmatmul.bf16.gmra.mxu0 %v47
  %v122 = vpop.f32.mrf.mxu0
  %v123 = vadd.f32 0.0, %v122
  %v124 = vpop.f32.mrf.mxu0
  %v125 = vadd.f32 0.0, %v124
  %126 = vmatmul.bf16.gmra.mxu0 %v48
  %v127 = vpop.f32.mrf.mxu0
  %v128 = vadd.f32 0.0, %v127
  %v129 = vpop.f32.mrf.mxu0
  %v130 = vadd.f32 0.0, %v129
  %131 = vdwg.mxu0
  %v132 = vld [vmem:[%s1] sm:$0xff]
  %v133 = vld [vmem:[%s1 + $0x8] sm:$0xff]
  %v134 = vld [vmem:[%s1 + $0x10] sm:$0xff]
  %v135 = vld [vmem:[%s1 + $0x18] sm:$0xff]
  %137 = vset.pattern.permute.xlu0 0
  %138 = vperm.xlu0 %137, %v132
  %v139 = vpop.permute.xlu0 %138
  %142 = vset.pattern.permute.xlu0 0
  %143 = vperm.xlu0 %142, %v133
  %v144 = vpop.permute.xlu0 %143
  %147 = vset.pattern.permute.xlu0 0
  %148 = vperm.xlu0 %147, %v134
  %v149 = vpop.permute.xlu0 %148
  %152 = vset.pattern.permute.xlu0 0
  %153 = vperm.xlu0 %152, %v135
  %v154 = vpop.permute.xlu0 %153
  %v156 = vmul.f32 %v123, %v139
  %v157 = vmul.f32 %v125, %v144
  %v158 = vmul.f32 %v128, %v149
  %v159 = vmul.f32 %v130, %v154
  %v160 = vld [vmem:[%s2] sm:$0xff]
  %v161 = vunpack.c.0.s8 %v160
  %v162 = vunpack.c.1.s8 %v160
  %v163 = vunpack.c.2.s8 %v160
  %v164 = vunpack.c.3.s8 %v160
  %v165 = vcvt.s32.f32 %v161
  %v166 = vcvt.s32.f32 %v162
  %v167 = vcvt.s32.f32 %v163
  %v168 = vcvt.s32.f32 %v164
  %v169 = vpack.c.bf16 %v166, %v165
  %v170 = vpack.c.bf16 %v168, %v167
  %v171 = vld [vmem:[%s5] sm:$0xf]
  %v172 = vld [vmem:[%s5 + $0x4] sm:$0xf]
  %v173 = vld [vmem:[%s5 + $0x8] sm:$0xf]
  %v174 = vld [vmem:[%s5 + $0xc] sm:$0xf]
  %v175 = vld [vmem:[%s5 + $0x10] sm:$0xf]
  %v176 = vld [vmem:[%s5 + $0x14] sm:$0xf]
  %v177 = vld [vmem:[%s5 + $0x18] sm:$0xf]
  %v178 = vld [vmem:[%s5 + $0x1c] sm:$0xf]
  %v179 = vld [vmem:[%s5 + $0x20] sm:$0xf]
  %v180 = vld [vmem:[%s5 + $0x24] sm:$0xf]
  %v181 = vld [vmem:[%s5 + $0x28] sm:$0xf]
  %v182 = vld [vmem:[%s5 + $0x2c] sm:$0xf]
  %v183 = vld [vmem:[%s5 + $0x30] sm:$0xf]
  %v184 = vld [vmem:[%s5 + $0x34] sm:$0xf]
  %v185 = vld [vmem:[%s5 + $0x38] sm:$0xf]
  %v186 = vld [vmem:[%s5 + $0x3c] sm:$0xf]
  %v203 = vunpack.c.l.b16 %v171
  %v204 = vunpack.c.l.b16 %v172
  %v205 = vunpack.c.l.b16 %v173
  %v206 = vunpack.c.l.b16 %v174
  %v207 = vunpack.c.l.b16 %v175
  %v208 = vunpack.c.l.b16 %v176
  %v209 = vunpack.c.l.b16 %v177
  %v210 = vunpack.c.l.b16 %v178
  %v211 = vunpack.c.l.b16 %v179
  %v212 = vunpack.c.l.b16 %v180
  %v213 = vunpack.c.l.b16 %v181
  %v214 = vunpack.c.l.b16 %v182
  %v215 = vunpack.c.l.b16 %v183
  %v216 = vunpack.c.l.b16 %v184
  %v217 = vunpack.c.l.b16 %v185
  %v218 = vunpack.c.l.b16 %v186
  %v219 = vpack.c.b16 %v204, %v203
  %v220 = vpack.c.b16 %v206, %v205
  %v221 = vpack.c.b16 %v208, %v207
  %v222 = vpack.c.b16 %v210, %v209
  %v223 = vpack.c.b16 %v212, %v211
  %v224 = vpack.c.b16 %v214, %v213
  %v225 = vpack.c.b16 %v216, %v215
  %v226 = vpack.c.b16 %v218, %v217
  %235 = vmatpush.bf16.msra.mxu0 %v226
  %236 = vmatpush.bf16.msra.mxu0 %v225
  %237 = vmatpush.bf16.msra.mxu0 %v224
  %238 = vmatpush.bf16.msra.mxu0 %v223
  %239 = vmatpush.bf16.msra.mxu0 %v222
  %240 = vmatpush.bf16.msra.mxu0 %v221
  %241 = vmatpush.bf16.msra.mxu0 %v220
  %242 = vmatpush.bf16.msra.mxu0 %v219
  %243 = vmatmul.bf16.gmra.mxu0 %v169
  %v244 = vpop.f32.mrf.mxu0
  %v245 = vadd.f32 0.0, %v244
  %v246 = vpop.f32.mrf.mxu0
  %v247 = vadd.f32 0.0, %v246
  %248 = vmatmul.bf16.gmra.mxu0 %v170
  %v249 = vpop.f32.mrf.mxu0
  %v250 = vadd.f32 0.0, %v249
  %v251 = vpop.f32.mrf.mxu0
  %v252 = vadd.f32 0.0, %v251
  %253 = vdwg.mxu0
  %v254 = vld [vmem:[%s3] sm:$0xff]
  %v255 = vld [vmem:[%s3 + $0x8] sm:$0xff]
  %v256 = vld [vmem:[%s3 + $0x10] sm:$0xff]
  %v257 = vld [vmem:[%s3 + $0x18] sm:$0xff]
  %259 = vset.pattern.permute.xlu0 0
  %260 = vperm.xlu0 %259, %v254
  %v261 = vpop.permute.xlu0 %260
  %264 = vset.pattern.permute.xlu0 0
  %265 = vperm.xlu0 %264, %v255
  %v266 = vpop.permute.xlu0 %265
  %269 = vset.pattern.permute.xlu0 0
  %270 = vperm.xlu0 %269, %v256
  %v271 = vpop.permute.xlu0 %270
  %274 = vset.pattern.permute.xlu0 0
  %275 = vperm.xlu0 %274, %v257
  %v276 = vpop.permute.xlu0 %275
  %v278 = vmul.f32 %v245, %v261
  %v279 = vmul.f32 %v247, %v266
  %v280 = vmul.f32 %v250, %v271
  %v281 = vmul.f32 %v252, %v276
  %v282 = vpack.c.bf16 %v157, %v156
  %v283 = vpack.c.bf16 %v159, %v158
  %v284 = vld [vmem:[%s7] sm:$0xf]
  %v285 = vld [vmem:[%s7 + $0x4] sm:$0xf]
  %v286 = vld [vmem:[%s7 + $0x8] sm:$0xf]
  %v287 = vld [vmem:[%s7 + $0xc] sm:$0xf]
  %v288 = vld [vmem:[%s7 + $0x10] sm:$0xf]
  %v289 = vld [vmem:[%s7 + $0x14] sm:$0xf]
  %v290 = vld [vmem:[%s7 + $0x18] sm:$0xf]
  %v291 = vld [vmem:[%s7 + $0x1c] sm:$0xf]
  %v292 = vld [vmem:[%s7 + $0x20] sm:$0xf]
  %v293 = vld [vmem:[%s7 + $0x24] sm:$0xf]
  %v294 = vld [vmem:[%s7 + $0x28] sm:$0xf]
  %v295 = vld [vmem:[%s7 + $0x2c] sm:$0xf]
  %v296 = vld [vmem:[%s7 + $0x30] sm:$0xf]
  %v297 = vld [vmem:[%s7 + $0x34] sm:$0xf]
  %v298 = vld [vmem:[%s7 + $0x38] sm:$0xf]
  %v299 = vld [vmem:[%s7 + $0x3c] sm:$0xf]
  %v300 = vpack.c.bf16 %v279, %v278
  %v301 = vpack.c.bf16 %v281, %v280
  %v302 = vld [vmem:[%s8] sm:$0xf]
  %v303 = vld [vmem:[%s8 + $0x4] sm:$0xf]
  %v304 = vld [vmem:[%s8 + $0x8] sm:$0xf]
  %v305 = vld [vmem:[%s8 + $0xc] sm:$0xf]
  %v306 = vld [vmem:[%s8 + $0x10] sm:$0xf]
  %v307 = vld [vmem:[%s8 + $0x14] sm:$0xf]
  %v308 = vld [vmem:[%s8 + $0x18] sm:$0xf]
  %v309 = vld [vmem:[%s8 + $0x1c] sm:$0xf]
  %v310 = vld [vmem:[%s8 + $0x20] sm:$0xf]
  %v311 = vld [vmem:[%s8 + $0x24] sm:$0xf]
  %v312 = vld [vmem:[%s8 + $0x28] sm:$0xf]
  %v313 = vld [vmem:[%s8 + $0x2c] sm:$0xf]
  %v314 = vld [vmem:[%s8 + $0x30] sm:$0xf]
  %v315 = vld [vmem:[%s8 + $0x34] sm:$0xf]
  %v316 = vld [vmem:[%s8 + $0x38] sm:$0xf]
  %v317 = vld [vmem:[%s8 + $0x3c] sm:$0xf]
  %v334 = vunpack.c.l.b16 %v302
  %v335 = vunpack.c.l.b16 %v303
  %v336 = vunpack.c.l.b16 %v304
  %v337 = vunpack.c.l.b16 %v305
  %v338 = vunpack.c.l.b16 %v306
  %v339 = vunpack.c.l.b16 %v307
  %v340 = vunpack.c.l.b16 %v308
  %v341 = vunpack.c.l.b16 %v309
  %v342 = vunpack.c.l.b16 %v310
  %v343 = vunpack.c.l.b16 %v311
  %v344 = vunpack.c.l.b16 %v312
  %v345 = vunpack.c.l.b16 %v313
  %v346 = vunpack.c.l.b16 %v314
  %v347 = vunpack.c.l.b16 %v315
  %v348 = vunpack.c.l.b16 %v316
  %v349 = vunpack.c.l.b16 %v317
  %v350 = vpack.c.b16 %v335, %v334
  %v351 = vpack.c.b16 %v337, %v336
  %v352 = vpack.c.b16 %v339, %v338
  %v353 = vpack.c.b16 %v341, %v340
  %v354 = vpack.c.b16 %v343, %v342
  %v355 = vpack.c.b16 %v345, %v344
  %v356 = vpack.c.b16 %v347, %v346
  %v357 = vpack.c.b16 %v349, %v348
  %366 = vmatpush.bf16.msra.mxu0 %v357
  %367 = vmatpush.bf16.msra.mxu0 %v356
  %368 = vmatpush.bf16.msra.mxu0 %v355
  %369 = vmatpush.bf16.msra.mxu0 %v354
  %370 = vmatpush.bf16.msra.mxu0 %v353
  %371 = vmatpush.bf16.msra.mxu0 %v352
  %372 = vmatpush.bf16.msra.mxu0 %v351
  %373 = vmatpush.bf16.msra.mxu0 %v350
  %374 = vmatmul.bf16.gmra.mxu0 %v300
  %v375 = vpop.f32.mrf.mxu0
  %v376 = vadd.f32 0.0, %v375
  %v377 = vpop.f32.mrf.mxu0
  %v378 = vadd.f32 0.0, %v377
  %379 = vmatmul.bf16.gmra.mxu0 %v301
  %v380 = vpop.f32.mrf.mxu0
  %v381 = vadd.f32 0.0, %v380
  %v382 = vpop.f32.mrf.mxu0
  %v383 = vadd.f32 0.0, %v382
  %384 = vdwg.mxu0
  %v401 = vunpack.c.l.b16 %v284
  %v402 = vunpack.c.l.b16 %v285
  %v403 = vunpack.c.l.b16 %v286
  %v404 = vunpack.c.l.b16 %v287
  %v405 = vunpack.c.l.b16 %v288
  %v406 = vunpack.c.l.b16 %v289
  %v407 = vunpack.c.l.b16 %v290
  %v408 = vunpack.c.l.b16 %v291
  %v409 = vunpack.c.l.b16 %v292
  %v410 = vunpack.c.l.b16 %v293
  %v411 = vunpack.c.l.b16 %v294
  %v412 = vunpack.c.l.b16 %v295
  %v413 = vunpack.c.l.b16 %v296
  %v414 = vunpack.c.l.b16 %v297
  %v415 = vunpack.c.l.b16 %v298
  %v416 = vunpack.c.l.b16 %v299
  %v417 = vpack.c.b16 %v402, %v401
  %v418 = vpack.c.b16 %v404, %v403
  %v419 = vpack.c.b16 %v406, %v405
  %v420 = vpack.c.b16 %v408, %v407
  %v421 = vpack.c.b16 %v410, %v409
  %v422 = vpack.c.b16 %v412, %v411
  %v423 = vpack.c.b16 %v414, %v413
  %v424 = vpack.c.b16 %v416, %v415
  %433 = vmatpush.bf16.msra.mxu0 %v424
  %434 = vmatpush.bf16.msra.mxu0 %v423
  %435 = vmatpush.bf16.msra.mxu0 %v422
  %436 = vmatpush.bf16.msra.mxu0 %v421
  %437 = vmatpush.bf16.msra.mxu0 %v420
  %438 = vmatpush.bf16.msra.mxu0 %v419
  %439 = vmatpush.bf16.msra.mxu0 %v418
  %440 = vmatpush.bf16.msra.mxu0 %v417
  %441 = vmatmul.bf16.gmra.mxu0 %v282
  %v442 = vpop.f32.mrf.mxu0
  %v443 = vadd.f32 %v376, %v442
  %v444 = vpop.f32.mrf.mxu0
  %v445 = vadd.f32 %v378, %v444
  %446 = vmatmul.bf16.gmra.mxu0 %v283
  %v447 = vpop.f32.mrf.mxu0
  %v448 = vadd.f32 %v381, %v447
  %v449 = vpop.f32.mrf.mxu0
  %v450 = vadd.f32 %v383, %v449
  %451 = vdwg.mxu0
  %v452 = vld [vmem:[%s6] sm:$0xf]
  %v453 = vld [vmem:[%s6 + $0x4] sm:$0xf]
  %v454 = vld [vmem:[%s6 + $0x8] sm:$0xf]
  %v455 = vld [vmem:[%s6 + $0xc] sm:$0xf]
  %v456 = vld [vmem:[%s9] sm:$0xf]
  %v457 = vld [vmem:[%s9 + $0x4] sm:$0xf]
  %v458 = vld [vmem:[%s9 + $0x8] sm:$0xf]
  %v459 = vld [vmem:[%s9 + $0xc] sm:$0xf]
  %v460 = vld [vmem:[%s9 + $0x10] sm:$0xf]
  %v461 = vld [vmem:[%s9 + $0x14] sm:$0xf]
  %v462 = vld [vmem:[%s9 + $0x18] sm:$0xf]
  %v463 = vld [vmem:[%s9 + $0x1c] sm:$0xf]
  %v464 = vld [vmem:[%s9 + $0x20] sm:$0xf]
  %v465 = vld [vmem:[%s9 + $0x24] sm:$0xf]
  %v466 = vld [vmem:[%s9 + $0x28] sm:$0xf]
  %v467 = vld [vmem:[%s9 + $0x2c] sm:$0xf]
  %v468 = vld [vmem:[%s9 + $0x30] sm:$0xf]
  %v469 = vld [vmem:[%s9 + $0x34] sm:$0xf]
  %v470 = vld [vmem:[%s9 + $0x38] sm:$0xf]
  %v471 = vld [vmem:[%s9 + $0x3c] sm:$0xf]
  %v476 = vunpack.c.l.b16 %v452
  %v477 = vunpack.c.l.b16 %v453
  %v478 = vunpack.c.l.b16 %v454
  %v479 = vunpack.c.l.b16 %v455
  %v480 = vpack.c.b16 %v477, %v476
  %v481 = vpack.c.b16 %v479, %v478
  %v500 = vunpack.c.l.b16 %v456
  %v501 = vunpack.c.l.b16 %v457
  %v502 = vunpack.c.l.b16 %v458
  %v503 = vunpack.c.l.b16 %v459
  %v504 = vunpack.c.l.b16 %v460
  %v505 = vunpack.c.l.b16 %v461
  %v506 = vunpack.c.l.b16 %v462
  %v507 = vunpack.c.l.b16 %v463
  %v508 = vunpack.c.l.b16 %v464
  %v509 = vunpack.c.l.b16 %v465
  %v510 = vunpack.c.l.b16 %v466
  %v511 = vunpack.c.l.b16 %v467
  %v512 = vunpack.c.l.b16 %v468
  %v513 = vunpack.c.l.b16 %v469
  %v514 = vunpack.c.l.b16 %v470
  %v515 = vunpack.c.l.b16 %v471
  %v516 = vpack.c.b16 %v501, %v500
  %v517 = vpack.c.b16 %v503, %v502
  %v518 = vpack.c.b16 %v505, %v504
  %v519 = vpack.c.b16 %v507, %v506
  %v520 = vpack.c.b16 %v509, %v508
  %v521 = vpack.c.b16 %v511, %v510
  %v522 = vpack.c.b16 %v513, %v512
  %v523 = vpack.c.b16 %v515, %v514
  %532 = vmatpush.bf16.msra.mxu0 %v523
  %533 = vmatpush.bf16.msra.mxu0 %v522
  %534 = vmatpush.bf16.msra.mxu0 %v521
  %535 = vmatpush.bf16.msra.mxu0 %v520
  %536 = vmatpush.bf16.msra.mxu0 %v519
  %537 = vmatpush.bf16.msra.mxu0 %v518
  %538 = vmatpush.bf16.msra.mxu0 %v517
  %539 = vmatpush.bf16.msra.mxu0 %v516
  %540 = vmatmul.bf16.gmra.mxu0 %v480
  %v541 = vpop.f32.mrf.mxu0
  %v542 = vadd.f32 0.0, %v541
  %v543 = vpop.f32.mrf.mxu0
  %v544 = vadd.f32 0.0, %v543
  %545 = vmatmul.bf16.gmra.mxu0 %v481
  %v546 = vpop.f32.mrf.mxu0
  %v547 = vadd.f32 0.0, %v546
  %v548 = vpop.f32.mrf.mxu0
  %v549 = vadd.f32 0.0, %v548
  %550 = vdwg.mxu0
  %v551 = vadd.f32 %v443, %v542
  %v552 = vadd.f32 %v445, %v544
  %v553 = vadd.f32 %v448, %v547
  %v554 = vadd.f32 %v450, %v549
  %v555 = vld [vmem:[%s10] sm:$0x1]
  %v557 = vperm.slane %v555, 0
  %v559 = vadd.f32 %v551, %v557
  %v560 = vadd.f32 %v552, %v557
  %v561 = vadd.f32 %v553, %v557
  %v562 = vadd.f32 %v554, %v557
  %vm563 = vcmp.gt.f32.partialorder %v559, 0.0
  %vm564 = vcmp.gt.f32.partialorder %v560, 0.0
  %vm565 = vcmp.gt.f32.partialorder %v561, 0.0
  %vm566 = vcmp.gt.f32.partialorder %v562, 0.0
  %v567 = vmul.f32 %v559, 0.01
  %v568 = vmul.f32 %v560, 0.01
  %v569 = vmul.f32 %v561, 0.01
  %v570 = vmul.f32 %v562, 0.01
  %v571 = vsel %vm563, %v559, %v567
  %v572 = vsel %vm564, %v560, %v568
  %v573 = vsel %vm565, %v561, %v569
  %v574 = vsel %vm566, %v562, %v570
  %v575 = vpack.c.bf16 %v571, %v571
  %v576 = vpack.c.bf16 %v572, %v572
  %v577 = vpack.c.bf16 %v573, %v573
  %v578 = vpack.c.bf16 %v574, %v574
  %579 = vst [vmem:[%s11] sm:$0xf] %v575
  %580 = vst [vmem:[%s11 + $0x4] sm:$0xf] %v576
  %581 = vst [vmem:[%s11 + $0x8] sm:$0xf] %v577
  %582 = vst [vmem:[%s11 + $0xc] sm:$0xf] %v578
  // Predicated region
  $region46: #{hetero_tcr_forward.15} parent=0 // pred_check
    _
  $region47: #{hetero_tcr_forward.15} parent=0 // pred_check_branch
    %584 = sbr.rel (0) target = $region49
  $region48: #{hetero_tcr_forward.15} parent=0 // pred_region
    _
  $region49: #{hetero_tcr_forward.15} parent=0 // pred_fallthru
    _
  // Predicated region
  $region50: #{hetero_tcr_forward.15} parent=0 // pred_check
    _
  $region51: #{hetero_tcr_forward.15} parent=0 // pred_check_branch
    %586 = sbr.rel (0) target = $region53
  $region52: #{hetero_tcr_forward.15} parent=0 // pred_region
    _
  $region53: #{hetero_tcr_forward.15} parent=0 // pred_fallthru
    _

// kernel: hetero_tcr_forward.19
$region0: #{hetero_tcr_forward.19}
  #allocation0 [shape = 'u32[]', space=smem, size = 0x4, offset = 0x4, fixed_abs, tag = 'smem constant byte address 0x4 - core index']
  #allocation1 [shape = 'u32[72,128]{1,0:T(1,128)}', space=vmem, size = 0x9000, scoped, tag = 'internal scratch']
  %s0 = inlined_call_operand.vmem [shape: bf16[32,256], index: 0, kind: input, shape index: {}]
  %s1 = inlined_call_operand.vmem [shape: bf16[256,512], index: 1, kind: input, shape index: {}]
  %s2 = inlined_call_operand.vmem [shape: f32[1,512], index: 2, kind: input, shape index: {}]
  %s3 = inlined_call_operand.vmem [shape: f32[1,512], index: 3, kind: input, shape index: {}]
  %s4 = inlined_call_operand.vmem [shape: f32[1,512], index: 4, kind: input, shape index: {}]
  %s5 = inlined_call_operand.vmem [shape: bf16[512,256], index: 5, kind: input, shape index: {}]
  %s6 = inlined_call_operand.vmem [shape: f32[1,256], index: 6, kind: input, shape index: {}]
  %s7 = inlined_call_operand.vmem [shape: f32[1,256], index: 7, kind: input, shape index: {}]
  %s8 = inlined_call_operand.vmem [shape: f32[1,256], index: 8, kind: input, shape index: {}]
  %s9 = inlined_call_operand.vmem [shape: bf16[256,128], index: 9, kind: input, shape index: {}]
  %s10 = inlined_call_operand.vmem [shape: f32[1,128], index: 10, kind: input, shape index: {}]
  %s11 = inlined_call_operand.vmem [shape: bf16[32,128], index: 11, kind: output, shape index: {}]
  %s12 = sld [smem:[#allocation0]]
  $region77: #{hetero_tcr_forward.19} parent=0
    _
  %s14 = ssub.s32 1, %s12
  %s15 = scalar_select 0, %s14, %s12
  loop: start=0, step=1, limit=4
  $region2: #{hetero_tcr_forward.19} parent=0 // loop_pre_header
    _
  $region3: #{hetero_tcr_forward.19} parent=0 // loop_header
    %s17 = sphi 0, %s21
    %p18 = scmp.ge.s32.totalorder %s17, 4
    %s27 = sphi 0, %s29
    %s30 = sphi 0, %s27
    %s31 = sphi 0, %s30
    %s47 = sphi 0, %s31
    %s51 = sphi 0, %s51
    %s53 = sphi 0, %s51
    %s54 = sphi 0, %s53
    %s68 = sphi 0, %s54
    %s72 = sphi 0, %s72
    %s74 = sphi 0, %s72
    %s75 = sphi 0, %s74
    %s89 = sphi 0, %s75
    %s93 = sphi 0, %s93
    %s95 = sphi 0, %s93
    %s96 = sphi 0, %s95
    %s110 = sphi 0, %s96
    %s114 = sphi 0, %s114
    %s116 = sphi 0, %s114
    %s117 = sphi 0, %s116
    %s131 = sphi 0, %s117
    %s135 = sphi 0, %s135
    %s137 = sphi 0, %s135
    %s138 = sphi 0, %s137
    %s152 = sphi 0, %s138
    %s156 = sphi 0, %s156
    %s158 = sphi 0, %s156
    %s159 = sphi 0, %s158
    %s173 = sphi 0, %s159
    %s177 = sphi 0, %s177
    %s179 = sphi 0, %s177
    %s180 = sphi 0, %s179
    %s194 = sphi 0, %s180
    %s198 = sphi 0, %s198
    %s200 = sphi 0, %s198
    %s201 = sphi 0, %s200
    %s215 = sphi 0, %s201
    %s219 = sphi 0, %s219
    %s221 = sphi 0, %s219
    %s222 = sphi 0, %s221
    %s236 = sphi 0, %s222
    %s240 = sphi 0, %s240
    %s242 = sphi 0, %s240
    %s243 = sphi 0, %s242
    %s257 = sphi 0, %s243
    %s263 = sphi 0, %s265
    %s266 = sphi 0, %s263
    %s267 = sphi 0, %s266
    %s283 = sphi 0, %s267
  $region4: #{hetero_tcr_forward.19} parent=0 // loop_header_branch
    %20 = sbr.rel (%p18) target = $region8
  $region5: #{hetero_tcr_forward.19} parent=0 // loop_body
    %s22 = ssub.s32 %s17, 1
    %s23 = ssub.s32 %s17, 2
    %s24 = sadd.s32 %s17, 1
    %s25 = ssub.s32 %s17, %s24
    %p26 = scmp.eq.s32.totalorder %s25, 0
    %s28 = sadd.s32 %s27, 1
    %s29 = scalar_select %p26, %s27, %s28
    %p32 = pneg %p26
    %p33 = scmp.eq.s32.totalorder %s17, 1
    %p34 = por %p32, %p33
    %p35 = scmp.ne.s32.totalorder %s27, %s30
    %p36 = scmp.eq.s32.totalorder %s17, 0
    %p37 = por %p35, %p36
    %p38 = scmp.ne.s32.totalorder %s27, %s30
    %p39 = scmp.eq.s32.totalorder %s22, 1
    %p40 = por %p38, %p39
    %p41 = scmp.ne.s32.totalorder %s30, %s31
    %p42 = scmp.eq.s32.totalorder %s22, 0
    %p43 = por %p41, %p42
    %p44 = scmp.ne.s32.totalorder %s30, %s31
    %p45 = scmp.eq.s32.totalorder %s23, 1
    %p46 = por %p44, %p45
    %p48 = scmp.ne.s32.totalorder %s31, %s47
    %p49 = scmp.eq.s32.totalorder %s23, 0
    %p50 = por %p48, %p49
    %s52 = sadd.s32 %s51, 1
    %p55 = scmp.eq.s32.totalorder %s17, 1
    %p56 = scmp.ne.s32.totalorder %s51, %s53
    %p57 = scmp.eq.s32.totalorder %s17, 0
    %p58 = por %p56, %p57
    %p59 = scmp.ne.s32.totalorder %s51, %s53
    %p60 = scmp.eq.s32.totalorder %s22, 1
    %p61 = por %p59, %p60
    %p62 = scmp.ne.s32.totalorder %s53, %s54
    %p63 = scmp.eq.s32.totalorder %s22, 0
    %p64 = por %p62, %p63
    %p65 = scmp.ne.s32.totalorder %s53, %s54
    %p66 = scmp.eq.s32.totalorder %s23, 1
    %p67 = por %p65, %p66
    %p69 = scmp.ne.s32.totalorder %s54, %s68
    %p70 = scmp.eq.s32.totalorder %s23, 0
    %p71 = por %p69, %p70
    %s73 = sadd.s32 %s72, 1
    %p76 = scmp.eq.s32.totalorder %s17, 1
    %p77 = scmp.ne.s32.totalorder %s72, %s74
    %p78 = scmp.eq.s32.totalorder %s17, 0
    %p79 = por %p77, %p78
    %p80 = scmp.ne.s32.totalorder %s72, %s74
    %p81 = scmp.eq.s32.totalorder %s22, 1
    %p82 = por %p80, %p81
    %p83 = scmp.ne.s32.totalorder %s74, %s75
    %p84 = scmp.eq.s32.totalorder %s22, 0
    %p85 = por %p83, %p84
    %p86 = scmp.ne.s32.totalorder %s74, %s75
    %p87 = scmp.eq.s32.totalorder %s23, 1
    %p88 = por %p86, %p87
    %p90 = scmp.ne.s32.totalorder %s75, %s89
    %p91 = scmp.eq.s32.totalorder %s23, 0
    %p92 = por %p90, %p91
    %s94 = sadd.s32 %s93, 1
    %p97 = scmp.eq.s32.totalorder %s17, 1
    %p98 = scmp.ne.s32.totalorder %s93, %s95
    %p99 = scmp.eq.s32.totalorder %s17, 0
    %p100 = por %p98, %p99
    %p101 = scmp.ne.s32.totalorder %s93, %s95
    %p102 = scmp.eq.s32.totalorder %s22, 1
    %p103 = por %p101, %p102
    %p104 = scmp.ne.s32.totalorder %s95, %s96
    %p105 = scmp.eq.s32.totalorder %s22, 0
    %p106 = por %p104, %p105
    %p107 = scmp.ne.s32.totalorder %s95, %s96
    %p108 = scmp.eq.s32.totalorder %s23, 1
    %p109 = por %p107, %p108
    %p111 = scmp.ne.s32.totalorder %s96, %s110
    %p112 = scmp.eq.s32.totalorder %s23, 0
    %p113 = por %p111, %p112
    %s115 = sadd.s32 %s114, 1
    %p118 = scmp.eq.s32.totalorder %s17, 1
    %p119 = scmp.ne.s32.totalorder %s114, %s116
    %p120 = scmp.eq.s32.totalorder %s17, 0
    %p121 = por %p119, %p120
    %p122 = scmp.ne.s32.totalorder %s114, %s116
    %p123 = scmp.eq.s32.totalorder %s22, 1
    %p124 = por %p122, %p123
    %p125 = scmp.ne.s32.totalorder %s116, %s117
    %p126 = scmp.eq.s32.totalorder %s22, 0
    %p127 = por %p125, %p126
    %p128 = scmp.ne.s32.totalorder %s116, %s117
    %p129 = scmp.eq.s32.totalorder %s23, 1
    %p130 = por %p128, %p129
    %p132 = scmp.ne.s32.totalorder %s117, %s131
    %p133 = scmp.eq.s32.totalorder %s23, 0
    %p134 = por %p132, %p133
    %s136 = sadd.s32 %s135, 1
    %p139 = scmp.eq.s32.totalorder %s17, 1
    %p140 = scmp.ne.s32.totalorder %s135, %s137
    %p141 = scmp.eq.s32.totalorder %s17, 0
    %p142 = por %p140, %p141
    %p143 = scmp.ne.s32.totalorder %s135, %s137
    %p144 = scmp.eq.s32.totalorder %s22, 1
    %p145 = por %p143, %p144
    %p146 = scmp.ne.s32.totalorder %s137, %s138
    %p147 = scmp.eq.s32.totalorder %s22, 0
    %p148 = por %p146, %p147
    %p149 = scmp.ne.s32.totalorder %s137, %s138
    %p150 = scmp.eq.s32.totalorder %s23, 1
    %p151 = por %p149, %p150
    %p153 = scmp.ne.s32.totalorder %s138, %s152
    %p154 = scmp.eq.s32.totalorder %s23, 0
    %p155 = por %p153, %p154
    %s157 = sadd.s32 %s156, 1
    %p160 = scmp.eq.s32.totalorder %s17, 1
    %p161 = scmp.ne.s32.totalorder %s156, %s158
    %p162 = scmp.eq.s32.totalorder %s17, 0
    %p163 = por %p161, %p162
    %p164 = scmp.ne.s32.totalorder %s156, %s158
    %p165 = scmp.eq.s32.totalorder %s22, 1
    %p166 = por %p164, %p165
    %p167 = scmp.ne.s32.totalorder %s158, %s159
    %p168 = scmp.eq.s32.totalorder %s22, 0
    %p169 = por %p167, %p168
    %p170 = scmp.ne.s32.totalorder %s158, %s159
    %p171 = scmp.eq.s32.totalorder %s23, 1
    %p172 = por %p170, %p171
    %p174 = scmp.ne.s32.totalorder %s159, %s173
    %p175 = scmp.eq.s32.totalorder %s23, 0
    %p176 = por %p174, %p175
    %s178 = sadd.s32 %s177, 1
    %p181 = scmp.eq.s32.totalorder %s17, 1
    %p182 = scmp.ne.s32.totalorder %s177, %s179
    %p183 = scmp.eq.s32.totalorder %s17, 0
    %p184 = por %p182, %p183
    %p185 = scmp.ne.s32.totalorder %s177, %s179
    %p186 = scmp.eq.s32.totalorder %s22, 1
    %p187 = por %p185, %p186
    %p188 = scmp.ne.s32.totalorder %s179, %s180
    %p189 = scmp.eq.s32.totalorder %s22, 0
    %p190 = por %p188, %p189
    %p191 = scmp.ne.s32.totalorder %s179, %s180
    %p192 = scmp.eq.s32.totalorder %s23, 1
    %p193 = por %p191, %p192
    %p195 = scmp.ne.s32.totalorder %s180, %s194
    %p196 = scmp.eq.s32.totalorder %s23, 0
    %p197 = por %p195, %p196
    %s199 = sadd.s32 %s198, 1
    %p202 = scmp.eq.s32.totalorder %s17, 1
    %p203 = scmp.ne.s32.totalorder %s198, %s200
    %p204 = scmp.eq.s32.totalorder %s17, 0
    %p205 = por %p203, %p204
    %p206 = scmp.ne.s32.totalorder %s198, %s200
    %p207 = scmp.eq.s32.totalorder %s22, 1
    %p208 = por %p206, %p207
    %p209 = scmp.ne.s32.totalorder %s200, %s201
    %p210 = scmp.eq.s32.totalorder %s22, 0
    %p211 = por %p209, %p210
    %p212 = scmp.ne.s32.totalorder %s200, %s201
    %p213 = scmp.eq.s32.totalorder %s23, 1
    %p214 = por %p212, %p213
    %p216 = scmp.ne.s32.totalorder %s201, %s215
    %p217 = scmp.eq.s32.totalorder %s23, 0
    %p218 = por %p216, %p217
    %s220 = sadd.s32 %s219, 1
    %p223 = scmp.eq.s32.totalorder %s17, 1
    %p224 = scmp.ne.s32.totalorder %s219, %s221
    %p225 = scmp.eq.s32.totalorder %s17, 0
    %p226 = por %p224, %p225
    %p227 = scmp.ne.s32.totalorder %s219, %s221
    %p228 = scmp.eq.s32.totalorder %s22, 1
    %p229 = por %p227, %p228
    %p230 = scmp.ne.s32.totalorder %s221, %s222
    %p231 = scmp.eq.s32.totalorder %s22, 0
    %p232 = por %p230, %p231
    %p233 = scmp.ne.s32.totalorder %s221, %s222
    %p234 = scmp.eq.s32.totalorder %s23, 1
    %p235 = por %p233, %p234
    %p237 = scmp.ne.s32.totalorder %s222, %s236
    %p238 = scmp.eq.s32.totalorder %s23, 0
    %p239 = por %p237, %p238
    %s241 = sadd.s32 %s240, 1
    %p244 = scmp.eq.s32.totalorder %s17, 1
    %p245 = scmp.ne.s32.totalorder %s240, %s242
    %p246 = scmp.eq.s32.totalorder %s17, 0
    %p247 = por %p245, %p246
    %p248 = scmp.ne.s32.totalorder %s240, %s242
    %p249 = scmp.eq.s32.totalorder %s22, 1
    %p250 = por %p248, %p249
    %p251 = scmp.ne.s32.totalorder %s242, %s243
    %p252 = scmp.eq.s32.totalorder %s22, 0
    %p253 = por %p251, %p252
    %p254 = scmp.ne.s32.totalorder %s242, %s243
    %p255 = scmp.eq.s32.totalorder %s23, 1
    %p256 = por %p254, %p255
    %p258 = scmp.ne.s32.totalorder %s243, %s257
    %p259 = scmp.eq.s32.totalorder %s23, 0
    %p260 = por %p258, %p259
    %s261 = ssub.s32 %s17, %s24
    %p262 = scmp.eq.s32.totalorder %s261, 0
    %s264 = sadd.s32 %s263, 1
    %s265 = scalar_select %p262, %s263, %s264
    %p268 = pneg %p262
    %p269 = scmp.eq.s32.totalorder %s17, 1
    %p270 = por %p268, %p269
    %p271 = scmp.ne.s32.totalorder %s263, %s266
    %p272 = scmp.eq.s32.totalorder %s17, 0
    %p273 = por %p271, %p272
    %p274 = scmp.ne.s32.totalorder %s263, %s266
    %p275 = scmp.eq.s32.totalorder %s22, 1
    %p276 = por %p274, %p275
    %p277 = scmp.ne.s32.totalorder %s266, %s267
    %p278 = scmp.eq.s32.totalorder %s22, 0
    %p279 = por %p277, %p278
    %p280 = scmp.ne.s32.totalorder %s266, %s267
    %p281 = scmp.eq.s32.totalorder %s23, 1
    %p282 = por %p280, %p281
    %p284 = scmp.ne.s32.totalorder %s267, %s283
    %p285 = scmp.eq.s32.totalorder %s23, 0
    %p286 = por %p284, %p285
    %p287 = scmp.le.s32.totalorder 1, %s17
    %p288 = scmp.lt.s32.totalorder %s17, 3
    %p289 = pnand %p287, %p288
    %p290 = pneg %p289
    // Predicated region
    $region9: #{hetero_tcr_forward.19} parent=5 // pred_check
      _
    $region10: #{hetero_tcr_forward.19} parent=5 // pred_check_branch
      %292 = sbr.rel (%p289) target = $region12
    $region11: #{hetero_tcr_forward.19} parent=5 // pred_region
      %s293 = ssub.s32 %s17, 1
      // Predicated region
      $region13: #{hetero_tcr_forward.19} parent=11 // pred_check
        %p294 = pneg %p64
      $region14: #{hetero_tcr_forward.19} parent=11 // pred_check_branch
        %296 = sbr.rel (%p294) target = $region16
      $region15: #{hetero_tcr_forward.19} parent=11 // pred_region
        _
      $region16: #{hetero_tcr_forward.19} parent=11 // pred_fallthru
        _
      // Predicated region
      $region17: #{hetero_tcr_forward.19} parent=11 // pred_check
        %p297 = pneg %p85
      $region18: #{hetero_tcr_forward.19} parent=11 // pred_check_branch
        %299 = sbr.rel (%p297) target = $region20
      $region19: #{hetero_tcr_forward.19} parent=11 // pred_region
        _
      $region20: #{hetero_tcr_forward.19} parent=11 // pred_fallthru
        _
      // Predicated region
      $region21: #{hetero_tcr_forward.19} parent=11 // pred_check
        %p300 = pneg %p106
      $region22: #{hetero_tcr_forward.19} parent=11 // pred_check_branch
        %302 = sbr.rel (%p300) target = $region24
      $region23: #{hetero_tcr_forward.19} parent=11 // pred_region
        _
      $region24: #{hetero_tcr_forward.19} parent=11 // pred_fallthru
        _
      // Predicated region
      $region25: #{hetero_tcr_forward.19} parent=11 // pred_check
        %p303 = pneg %p127
      $region26: #{hetero_tcr_forward.19} parent=11 // pred_check_branch
        %305 = sbr.rel (%p303) target = $region28
      $region27: #{hetero_tcr_forward.19} parent=11 // pred_region
        _
      $region28: #{hetero_tcr_forward.19} parent=11 // pred_fallthru
        _
      // Predicated region
      $region29: #{hetero_tcr_forward.19} parent=11 // pred_check
        %p306 = pneg %p148
      $region30: #{hetero_tcr_forward.19} parent=11 // pred_check_branch
        %308 = sbr.rel (%p306) target = $region32
      $region31: #{hetero_tcr_forward.19} parent=11 // pred_region
        _
      $region32: #{hetero_tcr_forward.19} parent=11 // pred_fallthru
        _
      // Predicated region
      $region33: #{hetero_tcr_forward.19} parent=11 // pred_check
        %p309 = pneg %p169
      $region34: #{hetero_tcr_forward.19} parent=11 // pred_check_branch
        %311 = sbr.rel (%p309) target = $region36
      $region35: #{hetero_tcr_forward.19} parent=11 // pred_region
        _
      $region36: #{hetero_tcr_forward.19} parent=11 // pred_fallthru
        _
      // Predicated region
      $region37: #{hetero_tcr_forward.19} parent=11 // pred_check
        %p312 = pneg %p190
      $region38: #{hetero_tcr_forward.19} parent=11 // pred_check_branch
        %314 = sbr.rel (%p312) target = $region40
      $region39: #{hetero_tcr_forward.19} parent=11 // pred_region
        _
      $region40: #{hetero_tcr_forward.19} parent=11 // pred_fallthru
        _
      // Predicated region
      $region41: #{hetero_tcr_forward.19} parent=11 // pred_check
        %p315 = pneg %p211
      $region42: #{hetero_tcr_forward.19} parent=11 // pred_check_branch
        %317 = sbr.rel (%p315) target = $region44
      $region43: #{hetero_tcr_forward.19} parent=11 // pred_region
        _
      $region44: #{hetero_tcr_forward.19} parent=11 // pred_fallthru
        _
      // Predicated region
      $region45: #{hetero_tcr_forward.19} parent=11 // pred_check
        %p318 = pneg %p232
      $region46: #{hetero_tcr_forward.19} parent=11 // pred_check_branch
        %320 = sbr.rel (%p318) target = $region48
      $region47: #{hetero_tcr_forward.19} parent=11 // pred_region
        _
      $region48: #{hetero_tcr_forward.19} parent=11 // pred_fallthru
        _
      // Predicated region
      $region49: #{hetero_tcr_forward.19} parent=11 // pred_check
        %p321 = pneg %p253
      $region50: #{hetero_tcr_forward.19} parent=11 // pred_check_branch
        %323 = sbr.rel (%p321) target = $region52
      $region51: #{hetero_tcr_forward.19} parent=11 // pred_region
        _
      $region52: #{hetero_tcr_forward.19} parent=11 // pred_fallthru
        _
    $region12: #{hetero_tcr_forward.19} parent=5 // pred_fallthru
      _
    %p324 = scmp.lt.s32.totalorder %s17, 2
    // Predicated region
    $region53: #{hetero_tcr_forward.19} parent=5 // pred_check
      %p325 = pneg %p324
    $region54: #{hetero_tcr_forward.19} parent=5 // pred_check_branch
      %327 = sbr.rel (%p325) target = $region56
    $region55: #{hetero_tcr_forward.19} parent=5 // pred_region
      // Predicated region
      $region57: #{hetero_tcr_forward.19} parent=55 // pred_check
        %p328 = pneg %p37
      $region58: #{hetero_tcr_forward.19} parent=55 // pred_check_branch
        %330 = sbr.rel (%p328) target = $region60
      $region59: #{hetero_tcr_forward.19} parent=55 // pred_region
        %s331 = smul.u32 2, %s17
        %p332 = scmp.lt.s32.totalorder %s331, 3
        %s333 = scalar_select %p332, %s331, 3
        %s334 = smul.addr %s333, 2
        %s335 = smul.addr %s334, 4
        %s336 = scalar_lea.vmem %s0, %s335
        %s337 = smul.u32 2, %s17
      $region60: #{hetero_tcr_forward.19} parent=55 // pred_fallthru
        _
    $region56: #{hetero_tcr_forward.19} parent=5 // pred_fallthru
      _
    %p338 = scmp.le.s32.totalorder 1, %s17
    %p339 = scmp.lt.s32.totalorder %s17, 3
    %p340 = pnand %p338, %p339
    %p341 = pneg %p340
    // Predicated region
    $region61: #{hetero_tcr_forward.19} parent=5 // pred_check
      _
    $region62: #{hetero_tcr_forward.19} parent=5 // pred_check_branch
      %343 = sbr.rel (%p340) target = $region64
    $region63: #{hetero_tcr_forward.19} parent=5 // pred_region
      %s344 = ssub.s32 %s17, 1
      %s345 = smul.u32 2, %s22
      %p346 = scmp.lt.s32.totalorder %s345, 3
      %s347 = scalar_select %p346, %s345, 3
      %s348 = smul.addr %s347, 2
      %s349 = smul.addr %s348, 4
      %s350 = scalar_lea.vmem %s0, %s349
      %p351 = pneg %p43
      %p352 = pneg %p40
      %p353 = pneg %p64
      %p354 = pneg %p61
      %p355 = pneg %p85
      %p356 = pneg %p82
      %p357 = pneg %p106
      %p358 = pneg %p103
      %p359 = pneg %p127
      %p360 = pneg %p124
      %p361 = pneg %p148
      %p362 = pneg %p145
      %p363 = pneg %p169
      %p364 = pneg %p166
      %p365 = pneg %p190
      %p366 = pneg %p187
      %p367 = pneg %p211
      %p368 = pneg %p208
      %p369 = pneg %p232
      %p370 = pneg %p229
      %p371 = pneg %p253
      %p372 = pneg %p250
      %p373 = pneg %p279
      %p374 = pneg %p276
      %s375 = smul.u32 2, %s22
      %p376 = scmp.lt.s32.totalorder %s375, 3
      %s377 = scalar_select %p376, %s375, 3
      %s378 = smul.addr %s377, 4
      %s379 = scalar_lea.vmem %s11, %s378
      %s380 = smul.u32 2, %s22
      %p381 = scmp.lt.s32.totalorder %s380, 3
      %s382 = scalar_select %p381, %s380, 3
      %s383 = smul.addr %s382, 2
      %s384 = smul.addr %s383, 4
      %s385 = scalar_lea.vmem %s0, %s384
      %s386 = smul.u32 2, %s22
      %s387 = smul.u32 2, %s22
      %p388 = scmp.lt.s32.totalorder %s387, 3
      %s389 = scalar_select %p388, %s387, 3
      %s390 = smul.addr %s389, 4
      %s391 = scalar_lea.vmem %s11, %s390
      %s392 = smul.u32 2, %s22
      %v393 = vld [vmem:[%s385] sm:$0xff]
      %v394 = vld [vmem:[%s385 + $0x8] sm:$0xff]
      %v395 = vld [vmem:[%s1] sm:$0xff]
      %v396 = vld [vmem:[%s1 + $0x8] sm:$0xff]
      %v397 = vld [vmem:[%s1 + $0x10] sm:$0xff]
      %v398 = vld [vmem:[%s1 + $0x18] sm:$0xff]
      %v399 = vld [vmem:[%s1 + $0x20] sm:$0xff]
      %v400 = vld [vmem:[%s1 + $0x28] sm:$0xff]
      %v401 = vld [vmem:[%s1 + $0x30] sm:$0xff]
      %v402 = vld [vmem:[%s1 + $0x38] sm:$0xff]
      %v403 = vld [vmem:[%s1 + $0x40] sm:$0xff]
      %v404 = vld [vmem:[%s1 + $0x48] sm:$0xff]
      %v405 = vld [vmem:[%s1 + $0x50] sm:$0xff]
      %v406 = vld [vmem:[%s1 + $0x58] sm:$0xff]
      %v407 = vld [vmem:[%s1 + $0x60] sm:$0xff]
      %v408 = vld [vmem:[%s1 + $0x68] sm:$0xff]
      %v409 = vld [vmem:[%s1 + $0x70] sm:$0xff]
      %v410 = vld [vmem:[%s1 + $0x78] sm:$0xff]
      %v411 = vld [vmem:[%s1 + $0x80] sm:$0xff]
      %v412 = vld [vmem:[%s1 + $0x88] sm:$0xff]
      %v413 = vld [vmem:[%s1 + $0x90] sm:$0xff]
      %v414 = vld [vmem:[%s1 + $0x98] sm:$0xff]
      %v415 = vld [vmem:[%s1 + $0xa0] sm:$0xff]
      %v416 = vld [vmem:[%s1 + $0xa8] sm:$0xff]
      %v417 = vld [vmem:[%s1 + $0xb0] sm:$0xff]
      %v418 = vld [vmem:[%s1 + $0xb8] sm:$0xff]
      %v419 = vld [vmem:[%s1 + $0xc0] sm:$0xff]
      %v420 = vld [vmem:[%s1 + $0xc8] sm:$0xff]
      %v421 = vld [vmem:[%s1 + $0xd0] sm:$0xff]
      %v422 = vld [vmem:[%s1 + $0xd8] sm:$0xff]
      %v423 = vld [vmem:[%s1 + $0xe0] sm:$0xff]
      %v424 = vld [vmem:[%s1 + $0xe8] sm:$0xff]
      %v425 = vld [vmem:[%s1 + $0xf0] sm:$0xff]
      %v426 = vld [vmem:[%s1 + $0xf8] sm:$0xff]
      %v427 = vld [vmem:[%s1 + $0x100] sm:$0xff]
      %v428 = vld [vmem:[%s1 + $0x108] sm:$0xff]
      %v429 = vld [vmem:[%s1 + $0x110] sm:$0xff]
      %v430 = vld [vmem:[%s1 + $0x118] sm:$0xff]
      %v431 = vld [vmem:[%s1 + $0x120] sm:$0xff]
      %v432 = vld [vmem:[%s1 + $0x128] sm:$0xff]
      %v433 = vld [vmem:[%s1 + $0x130] sm:$0xff]
      %v434 = vld [vmem:[%s1 + $0x138] sm:$0xff]
      %v435 = vld [vmem:[%s1 + $0x140] sm:$0xff]
      %v436 = vld [vmem:[%s1 + $0x148] sm:$0xff]
      %v437 = vld [vmem:[%s1 + $0x150] sm:$0xff]
      %v438 = vld [vmem:[%s1 + $0x158] sm:$0xff]
      %v439 = vld [vmem:[%s1 + $0x160] sm:$0xff]
      %v440 = vld [vmem:[%s1 + $0x168] sm:$0xff]
      %v441 = vld [vmem:[%s1 + $0x170] sm:$0xff]
      %v442 = vld [vmem:[%s1 + $0x178] sm:$0xff]
      %v443 = vld [vmem:[%s1 + $0x180] sm:$0xff]
      %v444 = vld [vmem:[%s1 + $0x188] sm:$0xff]
      %v445 = vld [vmem:[%s1 + $0x190] sm:$0xff]
      %v446 = vld [vmem:[%s1 + $0x198] sm:$0xff]
      %v447 = vld [vmem:[%s1 + $0x1a0] sm:$0xff]
      %v448 = vld [vmem:[%s1 + $0x1a8] sm:$0xff]
      %v449 = vld [vmem:[%s1 + $0x1b0] sm:$0xff]
      %v450 = vld [vmem:[%s1 + $0x1b8] sm:$0xff]
      %v451 = vld [vmem:[%s1 + $0x1c0] sm:$0xff]
      %v452 = vld [vmem:[%s1 + $0x1c8] sm:$0xff]
      %v453 = vld [vmem:[%s1 + $0x1d0] sm:$0xff]
      %v454 = vld [vmem:[%s1 + $0x1d8] sm:$0xff]
      %v455 = vld [vmem:[%s1 + $0x1e0] sm:$0xff]
      %v456 = vld [vmem:[%s1 + $0x1e8] sm:$0xff]
      %v457 = vld [vmem:[%s1 + $0x1f0] sm:$0xff]
      %v458 = vld [vmem:[%s1 + $0x1f8] sm:$0xff]
      %v459 = vld [vmem:[%s2] sm:$0xf]
      %v461 = vperm.slane %v459, 0
      %v462 = vperm.slane %v459, 1
      %v463 = vperm.slane %v459, 2
      %v464 = vperm.slane %v459, 3
      %v471 = vunpack.c.l.b16 %v393
      %v472 = vunpack.c.h.b16 %v393
      %v473 = vunpack.c.l.b16 %v394
      %v474 = vunpack.c.h.b16 %v394
      %v475 = vpack.c.b16 %v473, %v471
      %v476 = vpack.c.b16 %v474, %v472
      %v543 = vunpack.c.l.b16 %v395
      %v544 = vunpack.c.h.b16 %v395
      %v545 = vunpack.c.l.b16 %v396
      %v546 = vunpack.c.h.b16 %v396
      %v547 = vunpack.c.l.b16 %v397
      %v548 = vunpack.c.h.b16 %v397
      %v549 = vunpack.c.l.b16 %v398
      %v550 = vunpack.c.h.b16 %v398
      %v551 = vunpack.c.l.b16 %v399
      %v552 = vunpack.c.h.b16 %v399
      %v553 = vunpack.c.l.b16 %v400
      %v554 = vunpack.c.h.b16 %v400
      %v555 = vunpack.c.l.b16 %v401
      %v556 = vunpack.c.h.b16 %v401
      %v557 = vunpack.c.l.b16 %v402
      %v558 = vunpack.c.h.b16 %v402
      %v559 = vunpack.c.l.b16 %v403
      %v560 = vunpack.c.h.b16 %v403
      %v561 = vunpack.c.l.b16 %v404
      %v562 = vunpack.c.h.b16 %v404
      %v563 = vunpack.c.l.b16 %v405
      %v564 = vunpack.c.h.b16 %v405
      %v565 = vunpack.c.l.b16 %v406
      %v566 = vunpack.c.h.b16 %v406
      %v567 = vunpack.c.l.b16 %v407
      %v568 = vunpack.c.h.b16 %v407
      %v569 = vunpack.c.l.b16 %v408
      %v570 = vunpack.c.h.b16 %v408
      %v571 = vunpack.c.l.b16 %v409
      %v572 = vunpack.c.h.b16 %v409
      %v573 = vunpack.c.l.b16 %v410
      %v574 = vunpack.c.h.b16 %v410
      %v575 = vunpack.c.l.b16 %v411
      %v576 = vunpack.c.h.b16 %v411
      %v577 = vunpack.c.l.b16 %v412
      %v578 = vunpack.c.h.b16 %v412
      %v579 = vunpack.c.l.b16 %v413
      %v580 = vunpack.c.h.b16 %v413
      %v581 = vunpack.c.l.b16 %v414
      %v582 = vunpack.c.h.b16 %v414
      %v583 = vunpack.c.l.b16 %v415
      %v584 = vunpack.c.h.b16 %v415
      %v585 = vunpack.c.l.b16 %v416
      %v586 = vunpack.c.h.b16 %v416
      %v587 = vunpack.c.l.b16 %v417
      %v588 = vunpack.c.h.b16 %v417
      %v589 = vunpack.c.l.b16 %v418
      %v590 = vunpack.c.h.b16 %v418
      %v591 = vunpack.c.l.b16 %v419
      %v592 = vunpack.c.h.b16 %v419
      %v593 = vunpack.c.l.b16 %v420
      %v594 = vunpack.c.h.b16 %v420
      %v595 = vunpack.c.l.b16 %v421
      %v596 = vunpack.c.h.b16 %v421
      %v597 = vunpack.c.l.b16 %v422
      %v598 = vunpack.c.h.b16 %v422
      %v599 = vunpack.c.l.b16 %v423
      %v600 = vunpack.c.h.b16 %v423
      %v601 = vunpack.c.l.b16 %v424
      %v602 = vunpack.c.h.b16 %v424
      %v603 = vunpack.c.l.b16 %v425
      %v604 = vunpack.c.h.b16 %v425
      %v605 = vunpack.c.l.b16 %v426
      %v606 = vunpack.c.h.b16 %v426
      %v607 = vunpack.c.l.b16 %v427
      %v608 = vunpack.c.h.b16 %v427
      %v609 = vunpack.c.l.b16 %v428
      %v610 = vunpack.c.h.b16 %v428
      %v611 = vunpack.c.l.b16 %v429
      %v612 = vunpack.c.h.b16 %v429
      %v613 = vunpack.c.l.b16 %v430
      %v614 = vunpack.c.h.b16 %v430
      %v615 = vunpack.c.l.b16 %v431
      %v616 = vunpack.c.h.b16 %v431
      %v617 = vunpack.c.l.b16 %v432
      %v618 = vunpack.c.h.b16 %v432
      %v619 = vunpack.c.l.b16 %v433
      %v620 = vunpack.c.h.b16 %v433
      %v621 = vunpack.c.l.b16 %v434
      %v622 = vunpack.c.h.b16 %v434
      %v623 = vunpack.c.l.b16 %v435
      %v624 = vunpack.c.h.b16 %v435
      %v625 = vunpack.c.l.b16 %v436
      %v626 = vunpack.c.h.b16 %v436
      %v627 = vunpack.c.l.b16 %v437
      %v628 = vunpack.c.h.b16 %v437
      %v629 = vunpack.c.l.b16 %v438
      %v630 = vunpack.c.h.b16 %v438
      %v631 = vunpack.c.l.b16 %v439
      %v632 = vunpack.c.h.b16 %v439
      %v633 = vunpack.c.l.b16 %v440
      %v634 = vunpack.c.h.b16 %v440
      %v635 = vunpack.c.l.b16 %v441
      %v636 = vunpack.c.h.b16 %v441
      %v637 = vunpack.c.l.b16 %v442
      %v638 = vunpack.c.h.b16 %v442
      %v639 = vunpack.c.l.b16 %v443
      %v640 = vunpack.c.h.b16 %v443
      %v641 = vunpack.c.l.b16 %v444
      %v642 = vunpack.c.h.b16 %v444
      %v643 = vunpack.c.l.b16 %v445
      %v644 = vunpack.c.h.b16 %v445
      %v645 = vunpack.c.l.b16 %v446
      %v646 = vunpack.c.h.b16 %v446
      %v647 = vunpack.c.l.b16 %v447
      %v648 = vunpack.c.h.b16 %v447
      %v649 = vunpack.c.l.b16 %v448
      %v650 = vunpack.c.h.b16 %v448
      %v651 = vunpack.c.l.b16 %v449
      %v652 = vunpack.c.h.b16 %v449
      %v653 = vunpack.c.l.b16 %v450
      %v654 = vunpack.c.h.b16 %v450
      %v655 = vunpack.c.l.b16 %v451
      %v656 = vunpack.c.h.b16 %v451
      %v657 = vunpack.c.l.b16 %v452
      %v658 = vunpack.c.h.b16 %v452
      %v659 = vunpack.c.l.b16 %v453
      %v660 = vunpack.c.h.b16 %v453
      %v661 = vunpack.c.l.b16 %v454
      %v662 = vunpack.c.h.b16 %v454
      %v663 = vunpack.c.l.b16 %v455
      %v664 = vunpack.c.h.b16 %v455
      %v665 = vunpack.c.l.b16 %v456
      %v666 = vunpack.c.h.b16 %v456
      %v667 = vunpack.c.l.b16 %v457
      %v668 = vunpack.c.h.b16 %v457
      %v669 = vunpack.c.l.b16 %v458
      %v670 = vunpack.c.h.b16 %v458
      %v671 = vpack.c.b16 %v547, %v543
      %v672 = vpack.c.b16 %v548, %v544
      %v673 = vpack.c.b16 %v549, %v545
      %v674 = vpack.c.b16 %v550, %v546
      %v675 = vpack.c.b16 %v555, %v551
      %v676 = vpack.c.b16 %v556, %v552
      %v677 = vpack.c.b16 %v557, %v553
      %v678 = vpack.c.b16 %v558, %v554
      %v679 = vpack.c.b16 %v563, %v559
      %v680 = vpack.c.b16 %v564, %v560
      %v681 = vpack.c.b16 %v565, %v561
      %v682 = vpack.c.b16 %v566, %v562
      %v683 = vpack.c.b16 %v571, %v567
      %v684 = vpack.c.b16 %v572, %v568
      %v685 = vpack.c.b16 %v573, %v569
      %v686 = vpack.c.b16 %v574, %v570
      %v687 = vpack.c.b16 %v579, %v575
      %v688 = vpack.c.b16 %v580, %v576
      %v689 = vpack.c.b16 %v581, %v577
      %v690 = vpack.c.b16 %v582, %v578
      %v691 = vpack.c.b16 %v587, %v583
      %v692 = vpack.c.b16 %v588, %v584
      %v693 = vpack.c.b16 %v589, %v585
      %v694 = vpack.c.b16 %v590, %v586
      %v695 = vpack.c.b16 %v595, %v591
      %v696 = vpack.c.b16 %v596, %v592
      %v697 = vpack.c.b16 %v597, %v593
      %v698 = vpack.c.b16 %v598, %v594
      %v699 = vpack.c.b16 %v603, %v599
      %v700 = vpack.c.b16 %v604, %v600
      %v701 = vpack.c.b16 %v605, %v601
      %v702 = vpack.c.b16 %v606, %v602
      %v703 = vpack.c.b16 %v611, %v607
      %v704 = vpack.c.b16 %v612, %v608
      %v705 = vpack.c.b16 %v613, %v609
      %v706 = vpack.c.b16 %v614, %v610
      %v707 = vpack.c.b16 %v619, %v615
      %v708 = vpack.c.b16 %v620, %v616
      %v709 = vpack.c.b16 %v621, %v617
      %v710 = vpack.c.b16 %v622, %v618
      %v711 = vpack.c.b16 %v627, %v623
      %v712 = vpack.c.b16 %v628, %v624
      %v713 = vpack.c.b16 %v629, %v625
      %v714 = vpack.c.b16 %v630, %v626
      %v715 = vpack.c.b16 %v635, %v631
      %v716 = vpack.c.b16 %v636, %v632
      %v717 = vpack.c.b16 %v637, %v633
      %v718 = vpack.c.b16 %v638, %v634
      %v719 = vpack.c.b16 %v643, %v639
      %v720 = vpack.c.b16 %v644, %v640
      %v721 = vpack.c.b16 %v645, %v641
      %v722 = vpack.c.b16 %v646, %v642
      %v723 = vpack.c.b16 %v651, %v647
      %v724 = vpack.c.b16 %v652, %v648
      %v725 = vpack.c.b16 %v653, %v649
      %v726 = vpack.c.b16 %v654, %v650
      %v727 = vpack.c.b16 %v659, %v655
      %v728 = vpack.c.b16 %v660, %v656
      %v729 = vpack.c.b16 %v661, %v657
      %v730 = vpack.c.b16 %v662, %v658
      %v731 = vpack.c.b16 %v667, %v663
      %v732 = vpack.c.b16 %v668, %v664
      %v733 = vpack.c.b16 %v669, %v665
      %v734 = vpack.c.b16 %v670, %v666
      %799 = vmatpush.bf16.msra.mxu0 %v699
      %800 = vmatpush.bf16.msra.mxu0 %v695
      %801 = vmatpush.bf16.msra.mxu0 %v691
      %802 = vmatpush.bf16.msra.mxu0 %v687
      %803 = vmatpush.bf16.msra.mxu0 %v683
      %804 = vmatpush.bf16.msra.mxu0 %v679
      %805 = vmatpush.bf16.msra.mxu0 %v675
      %806 = vmatpush.bf16.msra.mxu0 %v671
      %807 = vmatmul.bf16.gmra.mxu0 %v475
      %v808 = vpop.f32.mrf.mxu0
      %v809 = vadd.f32 %v461, %v808
      %v810 = vpop.f32.mrf.mxu0
      %v811 = vadd.f32 %v461, %v810
      %812 = vdwg.mxu0
      %813 = vmatpush.bf16.msra.mxu0 %v731
      %814 = vmatpush.bf16.msra.mxu0 %v727
      %815 = vmatpush.bf16.msra.mxu0 %v723
      %816 = vmatpush.bf16.msra.mxu0 %v719
      %817 = vmatpush.bf16.msra.mxu0 %v715
      %818 = vmatpush.bf16.msra.mxu0 %v711
      %819 = vmatpush.bf16.msra.mxu0 %v707
      %820 = vmatpush.bf16.msra.mxu0 %v703
      %821 = vmatmul.bf16.gmra.mxu0 %v476
      %v822 = vpop.f32.mrf.mxu0
      %v823 = vadd.f32 %v809, %v822
      %v824 = vpop.f32.mrf.mxu0
      %v825 = vadd.f32 %v811, %v824
      %826 = vdwg.mxu0
      %827 = vmatpush.bf16.msra.mxu0 %v700
      %828 = vmatpush.bf16.msra.mxu0 %v696
      %829 = vmatpush.bf16.msra.mxu0 %v692
      %830 = vmatpush.bf16.msra.mxu0 %v688
      %831 = vmatpush.bf16.msra.mxu0 %v684
      %832 = vmatpush.bf16.msra.mxu0 %v680
      %833 = vmatpush.bf16.msra.mxu0 %v676
      %834 = vmatpush.bf16.msra.mxu0 %v672
      %835 = vmatmul.bf16.gmra.mxu0 %v475
      %v836 = vpop.f32.mrf.mxu0
      %v837 = vadd.f32 %v462, %v836
      %v838 = vpop.f32.mrf.mxu0
      %v839 = vadd.f32 %v462, %v838
      %840 = vdwg.mxu0
      %841 = vmatpush.bf16.msra.mxu0 %v732
      %842 = vmatpush.bf16.msra.mxu0 %v728
      %843 = vmatpush.bf16.msra.mxu0 %v724
      %844 = vmatpush.bf16.msra.mxu0 %v720
      %845 = vmatpush.bf16.msra.mxu0 %v716
      %846 = vmatpush.bf16.msra.mxu0 %v712
      %847 = vmatpush.bf16.msra.mxu0 %v708
      %848 = vmatpush.bf16.msra.mxu0 %v704
      %849 = vmatmul.bf16.gmra.mxu0 %v476
      %v850 = vpop.f32.mrf.mxu0
      %v851 = vadd.f32 %v837, %v850
      %v852 = vpop.f32.mrf.mxu0
      %v853 = vadd.f32 %v839, %v852
      %854 = vdwg.mxu0
      %855 = vmatpush.bf16.msra.mxu0 %v701
      %856 = vmatpush.bf16.msra.mxu0 %v697
      %857 = vmatpush.bf16.msra.mxu0 %v693
      %858 = vmatpush.bf16.msra.mxu0 %v689
      %859 = vmatpush.bf16.msra.mxu0 %v685
      %860 = vmatpush.bf16.msra.mxu0 %v681
      %861 = vmatpush.bf16.msra.mxu0 %v677
      %862 = vmatpush.bf16.msra.mxu0 %v673
      %863 = vmatmul.bf16.gmra.mxu0 %v475
      %v864 = vpop.f32.mrf.mxu0
      %v865 = vadd.f32 %v463, %v864
      %v866 = vpop.f32.mrf.mxu0
      %v867 = vadd.f32 %v463, %v866
      %868 = vdwg.mxu0
      %869 = vmatpush.bf16.msra.mxu0 %v733
      %870 = vmatpush.bf16.msra.mxu0 %v729
      %871 = vmatpush.bf16.msra.mxu0 %v725
      %872 = vmatpush.bf16.msra.mxu0 %v721
      %873 = vmatpush.bf16.msra.mxu0 %v717
      %874 = vmatpush.bf16.msra.mxu0 %v713
      %875 = vmatpush.bf16.msra.mxu0 %v709
      %876 = vmatpush.bf16.msra.mxu0 %v705
      %877 = vmatmul.bf16.gmra.mxu0 %v476
      %v878 = vpop.f32.mrf.mxu0
      %v879 = vadd.f32 %v865, %v878
      %v880 = vpop.f32.mrf.mxu0
      %v881 = vadd.f32 %v867, %v880
      %882 = vdwg.mxu0
      %883 = vmatpush.bf16.msra.mxu0 %v702
      %884 = vmatpush.bf16.msra.mxu0 %v698
      %885 = vmatpush.bf16.msra.mxu0 %v694
      %886 = vmatpush.bf16.msra.mxu0 %v690
      %887 = vmatpush.bf16.msra.mxu0 %v686
      %888 = vmatpush.bf16.msra.mxu0 %v682
      %889 = vmatpush.bf16.msra.mxu0 %v678
      %890 = vmatpush.bf16.msra.mxu0 %v674
      %891 = vmatmul.bf16.gmra.mxu0 %v475
      %v892 = vpop.f32.mrf.mxu0
      %v893 = vadd.f32 %v464, %v892
      %v894 = vpop.f32.mrf.mxu0
      %v895 = vadd.f32 %v464, %v894
      %896 = vdwg.mxu0
      %897 = vmatpush.bf16.msra.mxu0 %v734
      %898 = vmatpush.bf16.msra.mxu0 %v730
      %899 = vmatpush.bf16.msra.mxu0 %v726
      %900 = vmatpush.bf16.msra.mxu0 %v722
      %901 = vmatpush.bf16.msra.mxu0 %v718
      %902 = vmatpush.bf16.msra.mxu0 %v714
      %903 = vmatpush.bf16.msra.mxu0 %v710
      %904 = vmatpush.bf16.msra.mxu0 %v706
      %905 = vmatmul.bf16.gmra.mxu0 %v476
      %v906 = vpop.f32.mrf.mxu0
      %v907 = vadd.f32 %v893, %v906
      %v908 = vpop.f32.mrf.mxu0
      %v909 = vadd.f32 %v895, %v908
      %910 = vdwg.mxu0
      %v911 = vld [vmem:[%s3] sm:$0xf]
      %v913 = vperm.slane %v911, 0
      %v914 = vperm.slane %v911, 1
      %v915 = vperm.slane %v911, 2
      %v916 = vperm.slane %v911, 3
      %v921 = vmul.f32 %v823, %v913
      %v922 = vmul.f32 %v851, %v914
      %v923 = vmul.f32 %v879, %v915
      %v924 = vmul.f32 %v907, %v916
      %v925 = vmul.f32 %v825, %v913
      %v926 = vmul.f32 %v853, %v914
      %v927 = vmul.f32 %v881, %v915
      %v928 = vmul.f32 %v909, %v916
      %v929 = vld [vmem:[%s4] sm:$0xf]
      %v931 = vperm.slane %v929, 0
      %v932 = vperm.slane %v929, 1
      %v933 = vperm.slane %v929, 2
      %v934 = vperm.slane %v929, 3
      %v939 = vadd.f32 %v921, %v931
      %v940 = vadd.f32 %v922, %v932
      %v941 = vadd.f32 %v923, %v933
      %v942 = vadd.f32 %v924, %v934
      %v943 = vadd.f32 %v925, %v931
      %v944 = vadd.f32 %v926, %v932
      %v945 = vadd.f32 %v927, %v933
      %v946 = vadd.f32 %v928, %v934
      %v947 = vmax.f32 %v939, 0.0
      %v948 = vmax.f32 %v940, 0.0
      %v949 = vmax.f32 %v941, 0.0
      %v950 = vmax.f32 %v942, 0.0
      %v951 = vmax.f32 %v943, 0.0
      %v952 = vmax.f32 %v944, 0.0
      %v953 = vmax.f32 %v945, 0.0
      %v954 = vmax.f32 %v946, 0.0
      %v955 = vpack.c.bf16 %v951, %v947
      %v956 = vpack.c.bf16 %v952, %v948
      %v957 = vpack.c.bf16 %v953, %v949
      %v958 = vpack.c.bf16 %v954, %v950
      %v959 = vld [vmem:[%s5] sm:$0xff]
      %v960 = vld [vmem:[%s5 + $0x8] sm:$0xff]
      %v961 = vld [vmem:[%s5 + $0x10] sm:$0xff]
      %v962 = vld [vmem:[%s5 + $0x18] sm:$0xff]
      %v963 = vld [vmem:[%s5 + $0x20] sm:$0xff]
      %v964 = vld [vmem:[%s5 + $0x28] sm:$0xff]
      %v965 = vld [vmem:[%s5 + $0x30] sm:$0xff]
      %v966 = vld [vmem:[%s5 + $0x38] sm:$0xff]
      %v967 = vld [vmem:[%s5 + $0x40] sm:$0xff]
      %v968 = vld [vmem:[%s5 + $0x48] sm:$0xff]
      %v969 = vld [vmem:[%s5 + $0x50] sm:$0xff]
      %v970 = vld [vmem:[%s5 + $0x58] sm:$0xff]
      %v971 = vld [vmem:[%s5 + $0x60] sm:$0xff]
      %v972 = vld [vmem:[%s5 + $0x68] sm:$0xff]
      %v973 = vld [vmem:[%s5 + $0x70] sm:$0xff]
      %v974 = vld [vmem:[%s5 + $0x78] sm:$0xff]
      %v975 = vld [vmem:[%s5 + $0x80] sm:$0xff]
      %v976 = vld [vmem:[%s5 + $0x88] sm:$0xff]
      %v977 = vld [vmem:[%s5 + $0x90] sm:$0xff]
      %v978 = vld [vmem:[%s5 + $0x98] sm:$0xff]
      %v979 = vld [vmem:[%s5 + $0xa0] sm:$0xff]
      %v980 = vld [vmem:[%s5 + $0xa8] sm:$0xff]
      %v981 = vld [vmem:[%s5 + $0xb0] sm:$0xff]
      %v982 = vld [vmem:[%s5 + $0xb8] sm:$0xff]
      %v983 = vld [vmem:[%s5 + $0xc0] sm:$0xff]
      %v984 = vld [vmem:[%s5 + $0xc8] sm:$0xff]
      %v985 = vld [vmem:[%s5 + $0xd0] sm:$0xff]
      %v986 = vld [vmem:[%s5 + $0xd8] sm:$0xff]
      %v987 = vld [vmem:[%s5 + $0xe0] sm:$0xff]
      %v988 = vld [vmem:[%s5 + $0xe8] sm:$0xff]
      %v989 = vld [vmem:[%s5 + $0xf0] sm:$0xff]
      %v990 = vld [vmem:[%s5 + $0xf8] sm:$0xff]
      %v991 = vld [vmem:[%s5 + $0x100] sm:$0xff]
      %v992 = vld [vmem:[%s5 + $0x108] sm:$0xff]
      %v993 = vld [vmem:[%s5 + $0x110] sm:$0xff]
      %v994 = vld [vmem:[%s5 + $0x118] sm:$0xff]
      %v995 = vld [vmem:[%s5 + $0x120] sm:$0xff]
      %v996 = vld [vmem:[%s5 + $0x128] sm:$0xff]
      %v997 = vld [vmem:[%s5 + $0x130] sm:$0xff]
      %v998 = vld [vmem:[%s5 + $0x138] sm:$0xff]
      %v999 = vld [vmem:[%s5 + $0x140] sm:$0xff]
      %v1000 = vld [vmem:[%s5 + $0x148] sm:$0xff]
      %v1001 = vld [vmem:[%s5 + $0x150] sm:$0xff]
      %v1002 = vld [vmem:[%s5 + $0x158] sm:$0xff]
      %v1003 = vld [vmem:[%s5 + $0x160] sm:$0xff]
      %v1004 = vld [vmem:[%s5 + $0x168] sm:$0xff]
      %v1005 = vld [vmem:[%s5 + $0x170] sm:$0xff]
      %v1006 = vld [vmem:[%s5 + $0x178] sm:$0xff]
      %v1007 = vld [vmem:[%s5 + $0x180] sm:$0xff]
      %v1008 = vld [vmem:[%s5 + $0x188] sm:$0xff]
      %v1009 = vld [vmem:[%s5 + $0x190] sm:$0xff]
      %v1010 = vld [vmem:[%s5 + $0x198] sm:$0xff]
      %v1011 = vld [vmem:[%s5 + $0x1a0] sm:$0xff]
      %v1012 = vld [vmem:[%s5 + $0x1a8] sm:$0xff]
      %v1013 = vld [vmem:[%s5 + $0x1b0] sm:$0xff]
      %v1014 = vld [vmem:[%s5 + $0x1b8] sm:$0xff]
      %v1015 = vld [vmem:[%s5 + $0x1c0] sm:$0xff]
      %v1016 = vld [vmem:[%s5 + $0x1c8] sm:$0xff]
      %v1017 = vld [vmem:[%s5 + $0x1d0] sm:$0xff]
      %v1018 = vld [vmem:[%s5 + $0x1d8] sm:$0xff]
      %v1019 = vld [vmem:[%s5 + $0x1e0] sm:$0xff]
      %v1020 = vld [vmem:[%s5 + $0x1e8] sm:$0xff]
      %v1021 = vld [vmem:[%s5 + $0x1f0] sm:$0xff]
      %v1022 = vld [vmem:[%s5 + $0x1f8] sm:$0xff]
      %v1023 = vld [vmem:[%s6] sm:$0x3]
      %v1025 = vperm.slane %v1023, 0
      %v1026 = vperm.slane %v1023, 1
      %v1093 = vunpack.c.l.b16 %v959
      %v1094 = vunpack.c.h.b16 %v959
      %v1095 = vunpack.c.l.b16 %v960
      %v1096 = vunpack.c.h.b16 %v960
      %v1097 = vunpack.c.l.b16 %v961
      %v1098 = vunpack.c.h.b16 %v961
      %v1099 = vunpack.c.l.b16 %v962
      %v1100 = vunpack.c.h.b16 %v962
      %v1101 = vunpack.c.l.b16 %v963
      %v1102 = vunpack.c.h.b16 %v963
      %v1103 = vunpack.c.l.b16 %v964
      %v1104 = vunpack.c.h.b16 %v964
      %v1105 = vunpack.c.l.b16 %v965
      %v1106 = vunpack.c.h.b16 %v965
      %v1107 = vunpack.c.l.b16 %v966
      %v1108 = vunpack.c.h.b16 %v966
      %v1109 = vunpack.c.l.b16 %v967
      %v1110 = vunpack.c.h.b16 %v967
      %v1111 = vunpack.c.l.b16 %v968
      %v1112 = vunpack.c.h.b16 %v968
      %v1113 = vunpack.c.l.b16 %v969
      %v1114 = vunpack.c.h.b16 %v969
      %v1115 = vunpack.c.l.b16 %v970
      %v1116 = vunpack.c.h.b16 %v970
      %v1117 = vunpack.c.l.b16 %v971
      %v1118 = vunpack.c.h.b16 %v971
      %v1119 = vunpack.c.l.b16 %v972
      %v1120 = vunpack.c.h.b16 %v972
      %v1121 = vunpack.c.l.b16 %v973
      %v1122 = vunpack.c.h.b16 %v973
      %v1123 = vunpack.c.l.b16 %v974
      %v1124 = vunpack.c.h.b16 %v974
      %v1125 = vunpack.c.l.b16 %v975
      %v1126 = vunpack.c.h.b16 %v975
      %v1127 = vunpack.c.l.b16 %v976
      %v1128 = vunpack.c.h.b16 %v976
      %v1129 = vunpack.c.l.b16 %v977
      %v1130 = vunpack.c.h.b16 %v977
      %v1131 = vunpack.c.l.b16 %v978
      %v1132 = vunpack.c.h.b16 %v978
      %v1133 = vunpack.c.l.b16 %v979
      %v1134 = vunpack.c.h.b16 %v979
      %v1135 = vunpack.c.l.b16 %v980
      %v1136 = vunpack.c.h.b16 %v980
      %v1137 = vunpack.c.l.b16 %v981
      %v1138 = vunpack.c.h.b16 %v981
      %v1139 = vunpack.c.l.b16 %v982
      %v1140 = vunpack.c.h.b16 %v982
      %v1141 = vunpack.c.l.b16 %v983
      %v1142 = vunpack.c.h.b16 %v983
      %v1143 = vunpack.c.l.b16 %v984
      %v1144 = vunpack.c.h.b16 %v984
      %v1145 = vunpack.c.l.b16 %v985
      %v1146 = vunpack.c.h.b16 %v985
      %v1147 = vunpack.c.l.b16 %v986
      %v1148 = vunpack.c.h.b16 %v986
      %v1149 = vunpack.c.l.b16 %v987
      %v1150 = vunpack.c.h.b16 %v987
      %v1151 = vunpack.c.l.b16 %v988
      %v1152 = vunpack.c.h.b16 %v988
      %v1153 = vunpack.c.l.b16 %v989
      %v1154 = vunpack.c.h.b16 %v989
      %v1155 = vunpack.c.l.b16 %v990
      %v1156 = vunpack.c.h.b16 %v990
      %v1157 = vunpack.c.l.b16 %v991
      %v1158 = vunpack.c.h.b16 %v991
      %v1159 = vunpack.c.l.b16 %v992
      %v1160 = vunpack.c.h.b16 %v992
      %v1161 = vunpack.c.l.b16 %v993
      %v1162 = vunpack.c.h.b16 %v993
      %v1163 = vunpack.c.l.b16 %v994
      %v1164 = vunpack.c.h.b16 %v994
      %v1165 = vunpack.c.l.b16 %v995
      %v1166 = vunpack.c.h.b16 %v995
      %v1167 = vunpack.c.l.b16 %v996
      %v1168 = vunpack.c.h.b16 %v996
      %v1169 = vunpack.c.l.b16 %v997
      %v1170 = vunpack.c.h.b16 %v997
      %v1171 = vunpack.c.l.b16 %v998
      %v1172 = vunpack.c.h.b16 %v998
      %v1173 = vunpack.c.l.b16 %v999
      %v1174 = vunpack.c.h.b16 %v999
      %v1175 = vunpack.c.l.b16 %v1000
      %v1176 = vunpack.c.h.b16 %v1000
      %v1177 = vunpack.c.l.b16 %v1001
      %v1178 = vunpack.c.h.b16 %v1001
      %v1179 = vunpack.c.l.b16 %v1002
      %v1180 = vunpack.c.h.b16 %v1002
      %v1181 = vunpack.c.l.b16 %v1003
      %v1182 = vunpack.c.h.b16 %v1003
      %v1183 = vunpack.c.l.b16 %v1004
      %v1184 = vunpack.c.h.b16 %v1004
      %v1185 = vunpack.c.l.b16 %v1005
      %v1186 = vunpack.c.h.b16 %v1005
      %v1187 = vunpack.c.l.b16 %v1006
      %v1188 = vunpack.c.h.b16 %v1006
      %v1189 = vunpack.c.l.b16 %v1007
      %v1190 = vunpack.c.h.b16 %v1007
      %v1191 = vunpack.c.l.b16 %v1008
      %v1192 = vunpack.c.h.b16 %v1008
      %v1193 = vunpack.c.l.b16 %v1009
      %v1194 = vunpack.c.h.b16 %v1009
      %v1195 = vunpack.c.l.b16 %v1010
      %v1196 = vunpack.c.h.b16 %v1010
      %v1197 = vunpack.c.l.b16 %v1011
      %v1198 = vunpack.c.h.b16 %v1011
      %v1199 = vunpack.c.l.b16 %v1012
      %v1200 = vunpack.c.h.b16 %v1012
      %v1201 = vunpack.c.l.b16 %v1013
      %v1202 = vunpack.c.h.b16 %v1013
      %v1203 = vunpack.c.l.b16 %v1014
      %v1204 = vunpack.c.h.b16 %v1014
      %v1205 = vunpack.c.l.b16 %v1015
      %v1206 = vunpack.c.h.b16 %v1015
      %v1207 = vunpack.c.l.b16 %v1016
      %v1208 = vunpack.c.h.b16 %v1016
      %v1209 = vunpack.c.l.b16 %v1017
      %v1210 = vunpack.c.h.b16 %v1017
      %v1211 = vunpack.c.l.b16 %v1018
      %v1212 = vunpack.c.h.b16 %v1018
      %v1213 = vunpack.c.l.b16 %v1019
      %v1214 = vunpack.c.h.b16 %v1019
      %v1215 = vunpack.c.l.b16 %v1020
      %v1216 = vunpack.c.h.b16 %v1020
      %v1217 = vunpack.c.l.b16 %v1021
      %v1218 = vunpack.c.h.b16 %v1021
      %v1219 = vunpack.c.l.b16 %v1022
      %v1220 = vunpack.c.h.b16 %v1022
      %v1221 = vpack.c.b16 %v1095, %v1093
      %v1222 = vpack.c.b16 %v1096, %v1094
      %v1223 = vpack.c.b16 %v1099, %v1097
      %v1224 = vpack.c.b16 %v1100, %v1098
      %v1225 = vpack.c.b16 %v1103, %v1101
      %v1226 = vpack.c.b16 %v1104, %v1102
      %v1227 = vpack.c.b16 %v1107, %v1105
      %v1228 = vpack.c.b16 %v1108, %v1106
      %v1229 = vpack.c.b16 %v1111, %v1109
      %v1230 = vpack.c.b16 %v1112, %v1110
      %v1231 = vpack.c.b16 %v1115, %v1113
      %v1232 = vpack.c.b16 %v1116, %v1114
      %v1233 = vpack.c.b16 %v1119, %v1117
      %v1234 = vpack.c.b16 %v1120, %v1118
      %v1235 = vpack.c.b16 %v1123, %v1121
      %v1236 = vpack.c.b16 %v1124, %v1122
      %v1237 = vpack.c.b16 %v1127, %v1125
      %v1238 = vpack.c.b16 %v1128, %v1126
      %v1239 = vpack.c.b16 %v1131, %v1129
      %v1240 = vpack.c.b16 %v1132, %v1130
      %v1241 = vpack.c.b16 %v1135, %v1133
      %v1242 = vpack.c.b16 %v1136, %v1134
      %v1243 = vpack.c.b16 %v1139, %v1137
      %v1244 = vpack.c.b16 %v1140, %v1138
      %v1245 = vpack.c.b16 %v1143, %v1141
      %v1246 = vpack.c.b16 %v1144, %v1142
      %v1247 = vpack.c.b16 %v1147, %v1145
      %v1248 = vpack.c.b16 %v1148, %v1146
      %v1249 = vpack.c.b16 %v1151, %v1149
      %v1250 = vpack.c.b16 %v1152, %v1150
      %v1251 = vpack.c.b16 %v1155, %v1153
      %v1252 = vpack.c.b16 %v1156, %v1154
      %v1253 = vpack.c.b16 %v1159, %v1157
      %v1254 = vpack.c.b16 %v1160, %v1158
      %v1255 = vpack.c.b16 %v1163, %v1161
      %v1256 = vpack.c.b16 %v1164, %v1162
      %v1257 = vpack.c.b16 %v1167, %v1165
      %v1258 = vpack.c.b16 %v1168, %v1166
      %v1259 = vpack.c.b16 %v1171, %v1169
      %v1260 = vpack.c.b16 %v1172, %v1170
      %v1261 = vpack.c.b16 %v1175, %v1173
      %v1262 = vpack.c.b16 %v1176, %v1174
      %v1263 = vpack.c.b16 %v1179, %v1177
      %v1264 = vpack.c.b16 %v1180, %v1178
      %v1265 = vpack.c.b16 %v1183, %v1181
      %v1266 = vpack.c.b16 %v1184, %v1182
      %v1267 = vpack.c.b16 %v1187, %v1185
      %v1268 = vpack.c.b16 %v1188, %v1186
      %v1269 = vpack.c.b16 %v1191, %v1189
      %v1270 = vpack.c.b16 %v1192, %v1190
      %v1271 = vpack.c.b16 %v1195, %v1193
      %v1272 = vpack.c.b16 %v1196, %v1194
      %v1273 = vpack.c.b16 %v1199, %v1197
      %v1274 = vpack.c.b16 %v1200, %v1198
      %v1275 = vpack.c.b16 %v1203, %v1201
      %v1276 = vpack.c.b16 %v1204, %v1202
      %v1277 = vpack.c.b16 %v1207, %v1205
      %v1278 = vpack.c.b16 %v1208, %v1206
      %v1279 = vpack.c.b16 %v1211, %v1209
      %v1280 = vpack.c.b16 %v1212, %v1210
      %v1281 = vpack.c.b16 %v1215, %v1213
      %v1282 = vpack.c.b16 %v1216, %v1214
      %v1283 = vpack.c.b16 %v1219, %v1217
      %v1284 = vpack.c.b16 %v1220, %v1218
      %1349 = vmatpush.bf16.msra.mxu0 %v1235
      %1350 = vmatpush.bf16.msra.mxu0 %v1233
      %1351 = vmatpush.bf16.msra.mxu0 %v1231
      %1352 = vmatpush.bf16.msra.mxu0 %v1229
      %1353 = vmatpush.bf16.msra.mxu0 %v1227
      %1354 = vmatpush.bf16.msra.mxu0 %v1225
      %1355 = vmatpush.bf16.msra.mxu0 %v1223
      %1356 = vmatpush.bf16.msra.mxu0 %v1221
      %1357 = vmatmul.bf16.gmra.mxu0 %v955
      %v1358 = vpop.f32.mrf.mxu0
      %v1359 = vadd.f32 %v1025, %v1358
      %v1360 = vpop.f32.mrf.mxu0
      %v1361 = vadd.f32 %v1025, %v1360
      %1362 = vdwg.mxu0
      %1363 = vmatpush.bf16.msra.mxu0 %v1251
      %1364 = vmatpush.bf16.msra.mxu0 %v1249
      %1365 = vmatpush.bf16.msra.mxu0 %v1247
      %1366 = vmatpush.bf16.msra.mxu0 %v1245
      %1367 = vmatpush.bf16.msra.mxu0 %v1243
      %1368 = vmatpush.bf16.msra.mxu0 %v1241
      %1369 = vmatpush.bf16.msra.mxu0 %v1239
      %1370 = vmatpush.bf16.msra.mxu0 %v1237
      %1371 = vmatmul.bf16.gmra.mxu0 %v956
      %v1372 = vpop.f32.mrf.mxu0
      %v1373 = vadd.f32 %v1359, %v1372
      %v1374 = vpop.f32.mrf.mxu0
      %v1375 = vadd.f32 %v1361, %v1374
      %1376 = vdwg.mxu0
      %1377 = vmatpush.bf16.msra.mxu0 %v1267
      %1378 = vmatpush.bf16.msra.mxu0 %v1265
      %1379 = vmatpush.bf16.msra.mxu0 %v1263
      %1380 = vmatpush.bf16.msra.mxu0 %v1261
      %1381 = vmatpush.bf16.msra.mxu0 %v1259
      %1382 = vmatpush.bf16.msra.mxu0 %v1257
      %1383 = vmatpush.bf16.msra.mxu0 %v1255
      %1384 = vmatpush.bf16.msra.mxu0 %v1253
      %1385 = vmatmul.bf16.gmra.mxu0 %v957
      %v1386 = vpop.f32.mrf.mxu0
      %v1387 = vadd.f32 %v1373, %v1386
      %v1388 = vpop.f32.mrf.mxu0
      %v1389 = vadd.f32 %v1375, %v1388
      %1390 = vdwg.mxu0
      %1391 = vmatpush.bf16.msra.mxu0 %v1283
      %1392 = vmatpush.bf16.msra.mxu0 %v1281
      %1393 = vmatpush.bf16.msra.mxu0 %v1279
      %1394 = vmatpush.bf16.msra.mxu0 %v1277
      %1395 = vmatpush.bf16.msra.mxu0 %v1275
      %1396 = vmatpush.bf16.msra.mxu0 %v1273
      %1397 = vmatpush.bf16.msra.mxu0 %v1271
      %1398 = vmatpush.bf16.msra.mxu0 %v1269
      %1399 = vmatmul.bf16.gmra.mxu0 %v958
      %v1400 = vpop.f32.mrf.mxu0
      %v1401 = vadd.f32 %v1387, %v1400
      %v1402 = vpop.f32.mrf.mxu0
      %v1403 = vadd.f32 %v1389, %v1402
      %1404 = vdwg.mxu0
      %1405 = vmatpush.bf16.msra.mxu0 %v1236
      %1406 = vmatpush.bf16.msra.mxu0 %v1234
      %1407 = vmatpush.bf16.msra.mxu0 %v1232
      %1408 = vmatpush.bf16.msra.mxu0 %v1230
      %1409 = vmatpush.bf16.msra.mxu0 %v1228
      %1410 = vmatpush.bf16.msra.mxu0 %v1226
      %1411 = vmatpush.bf16.msra.mxu0 %v1224
      %1412 = vmatpush.bf16.msra.mxu0 %v1222
      %1413 = vmatmul.bf16.gmra.mxu0 %v955
      %v1414 = vpop.f32.mrf.mxu0
      %v1415 = vadd.f32 %v1026, %v1414
      %v1416 = vpop.f32.mrf.mxu0
      %v1417 = vadd.f32 %v1026, %v1416
      %1418 = vdwg.mxu0
      %1419 = vmatpush.bf16.msra.mxu0 %v1252
      %1420 = vmatpush.bf16.msra.mxu0 %v1250
      %1421 = vmatpush.bf16.msra.mxu0 %v1248
      %1422 = vmatpush.bf16.msra.mxu0 %v1246
      %1423 = vmatpush.bf16.msra.mxu0 %v1244
      %1424 = vmatpush.bf16.msra.mxu0 %v1242
      %1425 = vmatpush.bf16.msra.mxu0 %v1240
      %1426 = vmatpush.bf16.msra.mxu0 %v1238
      %1427 = vmatmul.bf16.gmra.mxu0 %v956
      %v1428 = vpop.f32.mrf.mxu0
      %v1429 = vadd.f32 %v1415, %v1428
      %v1430 = vpop.f32.mrf.mxu0
      %v1431 = vadd.f32 %v1417, %v1430
      %1432 = vdwg.mxu0
      %1433 = vmatpush.bf16.msra.mxu0 %v1268
      %1434 = vmatpush.bf16.msra.mxu0 %v1266
      %1435 = vmatpush.bf16.msra.mxu0 %v1264
      %1436 = vmatpush.bf16.msra.mxu0 %v1262
      %1437 = vmatpush.bf16.msra.mxu0 %v1260
      %1438 = vmatpush.bf16.msra.mxu0 %v1258
      %1439 = vmatpush.bf16.msra.mxu0 %v1256
      %1440 = vmatpush.bf16.msra.mxu0 %v1254
      %1441 = vmatmul.bf16.gmra.mxu0 %v957
      %v1442 = vpop.f32.mrf.mxu0
      %v1443 = vadd.f32 %v1429, %v1442
      %v1444 = vpop.f32.mrf.mxu0
      %v1445 = vadd.f32 %v1431, %v1444
      %1446 = vdwg.mxu0
      %1447 = vmatpush.bf16.msra.mxu0 %v1284
      %1448 = vmatpush.bf16.msra.mxu0 %v1282
      %1449 = vmatpush.bf16.msra.mxu0 %v1280
      %1450 = vmatpush.bf16.msra.mxu0 %v1278
      %1451 = vmatpush.bf16.msra.mxu0 %v1276
      %1452 = vmatpush.bf16.msra.mxu0 %v1274
      %1453 = vmatpush.bf16.msra.mxu0 %v1272
      %1454 = vmatpush.bf16.msra.mxu0 %v1270
      %1455 = vmatmul.bf16.gmra.mxu0 %v958
      %v1456 = vpop.f32.mrf.mxu0
      %v1457 = vadd.f32 %v1443, %v1456
      %v1458 = vpop.f32.mrf.mxu0
      %v1459 = vadd.f32 %v1445, %v1458
      %1460 = vdwg.mxu0
      %v1461 = vld [vmem:[%s7] sm:$0x3]
      %v1463 = vperm.slane %v1461, 0
      %v1464 = vperm.slane %v1461, 1
      %v1467 = vmul.f32 %v1401, %v1463
      %v1468 = vmul.f32 %v1457, %v1464
      %v1469 = vmul.f32 %v1403, %v1463
      %v1470 = vmul.f32 %v1459, %v1464
      %v1471 = vld [vmem:[%s8] sm:$0x3]
      %v1473 = vperm.slane %v1471, 0
      %v1474 = vperm.slane %v1471, 1
      %v1477 = vadd.f32 %v1467, %v1473
      %v1478 = vadd.f32 %v1468, %v1474
      %v1479 = vadd.f32 %v1469, %v1473
      %v1480 = vadd.f32 %v1470, %v1474
      %v1481 = vmax.f32 %v1477, 0.0
      %v1482 = vmax.f32 %v1478, 0.0
      %v1483 = vmax.f32 %v1479, 0.0
      %v1484 = vmax.f32 %v1480, 0.0
      %v1485 = vpack.c.bf16 %v1483, %v1481
      %v1486 = vpack.c.bf16 %v1484, %v1482
      %v1487 = vld [vmem:[%s9] sm:$0xf]
      %v1488 = vld [vmem:[%s9 + $0x4] sm:$0xf]
      %v1489 = vld [vmem:[%s9 + $0x8] sm:$0xf]
      %v1490 = vld [vmem:[%s9 + $0xc] sm:$0xf]
      %v1491 = vld [vmem:[%s9 + $0x10] sm:$0xf]
      %v1492 = vld [vmem:[%s9 + $0x14] sm:$0xf]
      %v1493 = vld [vmem:[%s9 + $0x18] sm:$0xf]
      %v1494 = vld [vmem:[%s9 + $0x1c] sm:$0xf]
      %v1495 = vld [vmem:[%s9 + $0x20] sm:$0xf]
      %v1496 = vld [vmem:[%s9 + $0x24] sm:$0xf]
      %v1497 = vld [vmem:[%s9 + $0x28] sm:$0xf]
      %v1498 = vld [vmem:[%s9 + $0x2c] sm:$0xf]
      %v1499 = vld [vmem:[%s9 + $0x30] sm:$0xf]
      %v1500 = vld [vmem:[%s9 + $0x34] sm:$0xf]
      %v1501 = vld [vmem:[%s9 + $0x38] sm:$0xf]
      %v1502 = vld [vmem:[%s9 + $0x3c] sm:$0xf]
      %v1503 = vld [vmem:[%s9 + $0x40] sm:$0xf]
      %v1504 = vld [vmem:[%s9 + $0x44] sm:$0xf]
      %v1505 = vld [vmem:[%s9 + $0x48] sm:$0xf]
      %v1506 = vld [vmem:[%s9 + $0x4c] sm:$0xf]
      %v1507 = vld [vmem:[%s9 + $0x50] sm:$0xf]
      %v1508 = vld [vmem:[%s9 + $0x54] sm:$0xf]
      %v1509 = vld [vmem:[%s9 + $0x58] sm:$0xf]
      %v1510 = vld [vmem:[%s9 + $0x5c] sm:$0xf]
      %v1511 = vld [vmem:[%s9 + $0x60] sm:$0xf]
      %v1512 = vld [vmem:[%s9 + $0x64] sm:$0xf]
      %v1513 = vld [vmem:[%s9 + $0x68] sm:$0xf]
      %v1514 = vld [vmem:[%s9 + $0x6c] sm:$0xf]
      %v1515 = vld [vmem:[%s9 + $0x70] sm:$0xf]
      %v1516 = vld [vmem:[%s9 + $0x74] sm:$0xf]
      %v1517 = vld [vmem:[%s9 + $0x78] sm:$0xf]
      %v1518 = vld [vmem:[%s9 + $0x7c] sm:$0xf]
      %v1519 = vld [vmem:[%s10] sm:$0x1]
      %v1521 = vperm.slane %v1519, 0
      %v1555 = vunpack.c.l.b16 %v1487
      %v1556 = vunpack.c.l.b16 %v1488
      %v1557 = vunpack.c.l.b16 %v1489
      %v1558 = vunpack.c.l.b16 %v1490
      %v1559 = vunpack.c.l.b16 %v1491
      %v1560 = vunpack.c.l.b16 %v1492
      %v1561 = vunpack.c.l.b16 %v1493
      %v1562 = vunpack.c.l.b16 %v1494
      %v1563 = vunpack.c.l.b16 %v1495
      %v1564 = vunpack.c.l.b16 %v1496
      %v1565 = vunpack.c.l.b16 %v1497
      %v1566 = vunpack.c.l.b16 %v1498
      %v1567 = vunpack.c.l.b16 %v1499
      %v1568 = vunpack.c.l.b16 %v1500
      %v1569 = vunpack.c.l.b16 %v1501
      %v1570 = vunpack.c.l.b16 %v1502
      %v1571 = vunpack.c.l.b16 %v1503
      %v1572 = vunpack.c.l.b16 %v1504
      %v1573 = vunpack.c.l.b16 %v1505
      %v1574 = vunpack.c.l.b16 %v1506
      %v1575 = vunpack.c.l.b16 %v1507
      %v1576 = vunpack.c.l.b16 %v1508
      %v1577 = vunpack.c.l.b16 %v1509
      %v1578 = vunpack.c.l.b16 %v1510
      %v1579 = vunpack.c.l.b16 %v1511
      %v1580 = vunpack.c.l.b16 %v1512
      %v1581 = vunpack.c.l.b16 %v1513
      %v1582 = vunpack.c.l.b16 %v1514
      %v1583 = vunpack.c.l.b16 %v1515
      %v1584 = vunpack.c.l.b16 %v1516
      %v1585 = vunpack.c.l.b16 %v1517
      %v1586 = vunpack.c.l.b16 %v1518
      %v1587 = vpack.c.b16 %v1556, %v1555
      %v1588 = vpack.c.b16 %v1558, %v1557
      %v1589 = vpack.c.b16 %v1560, %v1559
      %v1590 = vpack.c.b16 %v1562, %v1561
      %v1591 = vpack.c.b16 %v1564, %v1563
      %v1592 = vpack.c.b16 %v1566, %v1565
      %v1593 = vpack.c.b16 %v1568, %v1567
      %v1594 = vpack.c.b16 %v1570, %v1569
      %v1595 = vpack.c.b16 %v1572, %v1571
      %v1596 = vpack.c.b16 %v1574, %v1573
      %v1597 = vpack.c.b16 %v1576, %v1575
      %v1598 = vpack.c.b16 %v1578, %v1577
      %v1599 = vpack.c.b16 %v1580, %v1579
      %v1600 = vpack.c.b16 %v1582, %v1581
      %v1601 = vpack.c.b16 %v1584, %v1583
      %v1602 = vpack.c.b16 %v1586, %v1585
      %1619 = vmatpush.bf16.msra.mxu0 %v1594
      %1620 = vmatpush.bf16.msra.mxu0 %v1593
      %1621 = vmatpush.bf16.msra.mxu0 %v1592
      %1622 = vmatpush.bf16.msra.mxu0 %v1591
      %1623 = vmatpush.bf16.msra.mxu0 %v1590
      %1624 = vmatpush.bf16.msra.mxu0 %v1589
      %1625 = vmatpush.bf16.msra.mxu0 %v1588
      %1626 = vmatpush.bf16.msra.mxu0 %v1587
      %1627 = vmatmul.bf16.gmra.mxu0 %v1485
      %v1628 = vpop.f32.mrf.mxu0
      %v1629 = vadd.f32 %v1521, %v1628
      %v1630 = vpop.f32.mrf.mxu0
      %v1631 = vadd.f32 %v1521, %v1630
      %1632 = vdwg.mxu0
      %1633 = vmatpush.bf16.msra.mxu0 %v1602
      %1634 = vmatpush.bf16.msra.mxu0 %v1601
      %1635 = vmatpush.bf16.msra.mxu0 %v1600
      %1636 = vmatpush.bf16.msra.mxu0 %v1599
      %1637 = vmatpush.bf16.msra.mxu0 %v1598
      %1638 = vmatpush.bf16.msra.mxu0 %v1597
      %1639 = vmatpush.bf16.msra.mxu0 %v1596
      %1640 = vmatpush.bf16.msra.mxu0 %v1595
      %1641 = vmatmul.bf16.gmra.mxu0 %v1486
      %v1642 = vpop.f32.mrf.mxu0
      %v1643 = vadd.f32 %v1629, %v1642
      %v1644 = vpop.f32.mrf.mxu0
      %v1645 = vadd.f32 %v1631, %v1644
      %1646 = vdwg.mxu0
      %v1647 = vpack.c.bf16 %v1643, %v1643
      %v1648 = vpack.c.bf16 %v1645, %v1645
      %1649 = vst [vmem:[%s391] sm:$0xf] %v1647
      %1650 = vst [vmem:[%s391 + $0x4] sm:$0xf] %v1648
      %s1651 = smul.u32 2, %s22
      %p1652 = scmp.lt.s32.totalorder %s1651, 3
      %s1653 = scalar_select %p1652, %s1651, 3
      %s1654 = smul.addr %s1653, 4
      %s1655 = scalar_lea.vmem %s11, %s1654
      // Predicated region
      $region65: #{hetero_tcr_forward.19} parent=63 // pred_check
        %p1656 = pneg %p276
      $region66: #{hetero_tcr_forward.19} parent=63 // pred_check_branch
        %1658 = sbr.rel (%p1656) target = $region68
      $region67: #{hetero_tcr_forward.19} parent=63 // pred_region
        %s1659 = smul.u32 2, %s22
      $region68: #{hetero_tcr_forward.19} parent=63 // pred_fallthru
        _
    $region64: #{hetero_tcr_forward.19} parent=5 // pred_fallthru
      _
    %p1660 = scmp.le.s32.totalorder 2, %s17
    // Predicated region
    $region69: #{hetero_tcr_forward.19} parent=5 // pred_check
      %p1661 = pneg %p1660
    $region70: #{hetero_tcr_forward.19} parent=5 // pred_check_branch
      %1663 = sbr.rel (%p1661) target = $region72
    $region71: #{hetero_tcr_forward.19} parent=5 // pred_region
      %s1664 = ssub.s32 %s17, 2
      // Predicated region
      $region73: #{hetero_tcr_forward.19} parent=71 // pred_check
        %p1665 = pneg %p282
      $region74: #{hetero_tcr_forward.19} parent=71 // pred_check_branch
        %1667 = sbr.rel (%p1665) target = $region76
      $region75: #{hetero_tcr_forward.19} parent=71 // pred_region
        %s1668 = smul.u32 2, %s23
        %p1669 = scmp.lt.s32.totalorder %s1668, 3
        %s1670 = scalar_select %p1669, %s1668, 3
        %s1671 = smul.addr %s1670, 4
        %s1672 = scalar_lea.vmem %s11, %s1671
      $region76: #{hetero_tcr_forward.19} parent=71 // pred_fallthru
        _
    $region72: #{hetero_tcr_forward.19} parent=5 // pred_fallthru
      _
  $region6: #{hetero_tcr_forward.19} parent=0 // loop_footer
    %s21 = sadd.s32 1, %s17
  $region7: #{hetero_tcr_forward.19} parent=0 // loop_footer_branch
    %16 = sbr.rel target = $region3
  $region8: #{hetero_tcr_forward.19} parent=0 // loop_exit
    _

</llo_original>
